<compile_context>
chip_gen: v6e
topology: v6e:2x2x1
jax: 0.10.0
libtpu: 0.0.40
codegen_flags: <defaults>
</compile_context>

<pallas_src>
import jax
import jax.numpy as jnp
from jax import lax
from jax.experimental import pallas as pl
from jax.experimental.pallas import tpu as pltpu


def _make_cbam_kernel(C, H, W, ks):
    HW = H * W
    PAD = ks // 2
    Hp, Wp = H + 2 * PAD, W + 2 * PAD
    inv_hw = 1.0 / float(HW)
    inv_c = 1.0 / float(C)

    def kernel(x_ref, wfc_ref, bfc_ref, w7_ref, o_ref, pad_ref, flat_ref):
        # x_ref:   (1, C, HW) VMEM      wfc_ref: (C, C) VMEM   bfc_ref: (C, 1) VMEM
        # w7_ref:  (2*ks*ks,)  SMEM scalars (spatial conv taps)
        # o_ref:   (1, C, HW) VMEM
        # pad_ref: (2, Hp, Wp) VMEM scratch (zero-padded mean/max maps)
        # flat_ref:(1, HW)     VMEM scratch (flattened spatial attention)
        x = x_ref[0, :, :]                                        # (C, HW) f32

        # ---------- channel attention: global avg pool -> 1x1 conv -> sigmoid
        pooled = jnp.sum(x, axis=1, keepdims=True) * inv_hw       # (C, 1)
        logits = jnp.dot(wfc_ref[...], pooled,
                         preferred_element_type=jnp.float32) + bfc_ref[...]
        att_c = 1.0 / (1.0 + jnp.exp(-logits))                    # (C, 1)
        y = x * att_c                                             # (C, HW)

        # ---------- spatial attention: channel mean / max over y
        ch_mean = jnp.sum(y, axis=0, keepdims=True) * inv_c       # (1, HW)
        ch_max = jnp.max(y, axis=0, keepdims=True)                # (1, HW)

        # zero the padded planes, then scatter the two maps row-by-row
        # (static slices only; borders stay zero => "same" padding)
        pad_ref[...] = jnp.zeros((2, Hp, Wp), jnp.float32)
        for h in range(H):
            pad_ref[0, PAD + h:PAD + h + 1, PAD:PAD + W] = ch_mean[:, h * W:(h + 1) * W]
            pad_ref[1, PAD + h:PAD + h + 1, PAD:PAD + W] = ch_max[:, h * W:(h + 1) * W]

        # ks x ks conv over the 2-channel (mean, max) map: 2*ks*ks shifted MACs,
        # each tap weight read as a scalar from SMEM.
        acc = jnp.zeros((H, W), jnp.float32)
        for c in range(2):
            base = c * ks * ks
            for dh in range(ks):
                for dw in range(ks):
                    wtap = w7_ref[base + dh * ks + dw]
                    acc = acc + wtap * pad_ref[c, dh:dh + H, dw:dw + W]
        att_s = 1.0 / (1.0 + jnp.exp(-acc))                       # (H, W)

        # flatten att_s back to (1, HW) row-by-row (avoids lane<->sublane reshape)
        for h in range(H):
            flat_ref[:, h * W:(h + 1) * W] = att_s[h:h + 1, :]

        # ---------- final recalibration, lane-dense store
        o_ref[0, :, :] = y * flat_ref[...]

    return kernel


def cbam_forward(x_nchw, w_fc, b_fc, w_sp, kernel_size=7):
    """CBAM.forward: spatial_attention(channel_attention(x)).  x is NCHW f32.

    w_fc: (C, C, 1, 1) Conv2d weight of ChannelAttention.fc, b_fc: (C,) its bias.
    w_sp: (1, 2, k, k) Conv2d weight of SpatialAttention.cv1 (no bias).
    """
    N, C, H, W = x_nchw.shape
    HW = H * W
    ks = kernel_size
    assert w_sp.shape == (1, 2, ks, ks)
    PAD = ks // 2

    # host-side glue: contiguous (free) reshapes only
    x2 = x_nchw.reshape(N, C, HW).astype(jnp.float32)
    wfc = w_fc.reshape(C, C).astype(jnp.float32)        # (C_out, C_in)
    bfc = b_fc.reshape(C, 1).astype(jnp.float32)
    w7f = w_sp.reshape(-1).astype(jnp.float32)          # (2*ks*ks,) -> SMEM scalars

    kern = _make_cbam_kernel(C, H, W, ks)

    out2 = pl.pallas_call(
        kern,
        out_shape=jax.ShapeDtypeStruct((N, C, HW), jnp.float32),
        grid=(N,),
        in_specs=[
            pl.BlockSpec((1, C, HW), lambda n: (n, 0, 0)),           # x (per sample)
            pl.BlockSpec((C, C), lambda n: (0, 0)),                  # fc weight (resident)
            pl.BlockSpec((C, 1), lambda n: (0, 0)),                  # fc bias (resident)
            pl.BlockSpec(memory_space=pltpu.MemorySpace.SMEM),       # spatial conv taps
        ],
        out_specs=pl.BlockSpec((1, C, HW), lambda n: (n, 0, 0)),
        scratch_shapes=[
            pltpu.VMEM((2, H + 2 * PAD, W + 2 * PAD), jnp.float32),  # padded mean/max
            pltpu.VMEM((1, HW), jnp.float32),                        # flat spatial att
        ],
        compiler_params=pltpu.CompilerParams(
            dimension_semantics=("parallel",)),                      # megacore on v7x
    )(x2, wfc, bfc, w7f)

    return out2.reshape(N, C, H, W)


def _reference(x, w_fc, b_fc, w_sp):
    """Pure-JAX reference of CBAM forward for the correctness check."""
    N, C, H, W = x.shape
    pooled = jnp.mean(x, axis=(2, 3), keepdims=True)                 # (N, C, 1, 1)
    wfc = w_fc.reshape(C, C)
    logits = jnp.einsum("oi,nijk->nojk", wfc, pooled) + b_fc[None, :, None, None]
    y = x * jax.nn.sigmoid(logits)
    ch_mean = jnp.mean(y, axis=1, keepdims=True)
    ch_max = jnp.max(y, axis=1, keepdims=True)
    s_in = jnp.concatenate([ch_mean, ch_max], axis=1)                # (N, 2, H, W)
    pad = w_sp.shape[-1] // 2
    dn = lax.conv_dimension_numbers(s_in.shape, w_sp.shape, ("NCHW", "OIHW", "NCHW"))
    s = lax.conv_general_dilated(s_in, w_sp, (1, 1), ((pad, pad), (pad, pad)),
                                 dimension_numbers=dn)               # (N, 1, H, W)
    return y * jax.nn.sigmoid(s)


if __name__ == "__main__":
    key = jax.random.PRNGKey(0)
    k_x, k_wfc, k_bfc, k_ws = jax.random.split(key, 4)

    N, C, H, W = 2, 4, 16, 16
    ks = 7

    x = jax.random.normal(k_x, (N, C, H, W), dtype=jnp.float32)
    # deterministic synthetic parameters (shapes per nn.Conv2d of the module)
    w_fc = 0.3 * jax.random.normal(k_wfc, (C, C, 1, 1), dtype=jnp.float32)
    b_fc = 0.1 * jax.random.normal(k_bfc, (C,), dtype=jnp.float32)
    w_sp = 0.2 * jax.random.normal(k_ws, (1, 2, ks, ks), dtype=jnp.float32)

    out = cbam_forward(x, w_fc, b_fc, w_sp, kernel_size=ks)
    jax.block_until_ready(out)

    ref = _reference(x, w_fc, b_fc, w_sp)
    assert out.shape == (N, C, H, W)
    assert jnp.allclose(out, ref, atol=1e-4, rtol=1e-4), "mismatch vs reference"

    print("KERNEL_OK")
</pallas_src>

<mosaic_0001>
module attributes {stable_mosaic.version = 11 : i64} {
  func.func @kernel(%arg0: i32, %arg1: memref<1x4x256xf32, #tpu.memory_space<vmem>>, %arg2: memref<4x4xf32, #tpu.memory_space<vmem>>, %arg3: memref<4x1xf32, #tpu.memory_space<vmem>>, %arg4: memref<98xf32, #tpu.memory_space<smem>>, %arg5: memref<1x4x256xf32, #tpu.memory_space<vmem>>, %arg6: memref<2x22x22xf32, #tpu.memory_space<vmem>>, %arg7: memref<1x256xf32, #tpu.memory_space<vmem>>) attributes {dimension_semantics = [#tpu.dimension_semantics<parallel>], iteration_bounds = array<i64: 2>, scalar_prefetch = 0 : i64, scratch_operands = 2 : i64, tpu.core_type = #tpu.core_type<tc>, window_params = [{transform_indices = @transform_0, window_bounds = array<i64: 1, 4, 256>}, {pipeline_mode = #tpu.pipeline_mode<synchronous>, transform_indices = @transform_1, window_bounds = array<i64: 4, 4>}, {pipeline_mode = #tpu.pipeline_mode<synchronous>, transform_indices = @transform_2, window_bounds = array<i64: 4, 1>}, {transform_indices = @transform_3, window_bounds = array<i64: 98>}, {transform_indices = @transform_4, window_bounds = array<i64: 1, 4, 256>}]} {
    %c0 = arith.constant 0 : index
    %c0_0 = arith.constant 0 : index
    %c0_1 = arith.constant 0 : index
    %0 = vector.load %arg1[%c0, %c0_0, %c0_1] : memref<1x4x256xf32, #tpu.memory_space<vmem>>, vector<1x4x256xf32>
    %1 = vector.shape_cast %0 : vector<1x4x256xf32> to vector<4x256xf32>
    %cst = arith.constant dense<0.000000e+00> : vector<4xf32>
    %2 = vector.multi_reduction <add>, %1, %cst [1] : vector<4x256xf32> to vector<4xf32>
    %3 = vector.shape_cast %2 : vector<4xf32> to vector<4x1xf32>
    %cst_2 = arith.constant 3.906250e-03 : f32
    %4 = vector.broadcast %cst_2 : f32 to vector<4x1xf32>
    %5 = arith.mulf %3, %4 : vector<4x1xf32>
    %c0_3 = arith.constant 0 : index
    %c0_4 = arith.constant 0 : index
    %6 = vector.load %arg2[%c0_3, %c0_4] : memref<4x4xf32, #tpu.memory_space<vmem>>, vector<4x4xf32>
    %cst_5 = arith.constant dense<0.000000e+00> : vector<4x1xf32>
    %7 = tpu.matmul %6, %5, %cst_5 {dimension_numbers = #tpu.dot_dimension_numbers<[1], [0], [0], [1], [0, 0, 1, 1], [], []>} : vector<4x4xf32>, vector<4x1xf32>, vector<4x1xf32> -> vector<4x1xf32>
    %c0_6 = arith.constant 0 : index
    %c0_7 = arith.constant 0 : index
    %8 = vector.load %arg3[%c0_6, %c0_7] : memref<4x1xf32, #tpu.memory_space<vmem>>, vector<4x1xf32>
    %9 = arith.addf %7, %8 : vector<4x1xf32>
    %cst_8 = arith.constant 0.000000e+00 : f32
    %10 = vector.broadcast %cst_8 : f32 to vector<4x1xf32>
    %11 = arith.subf %10, %9 : vector<4x1xf32>
    %12 = math.exp %11 : vector<4x1xf32>
    %cst_9 = arith.constant 1.000000e+00 : f32
    %13 = vector.broadcast %cst_9 : f32 to vector<4x1xf32>
    %14 = arith.addf %13, %12 : vector<4x1xf32>
    %cst_10 = arith.constant 1.000000e+00 : f32
    %15 = vector.broadcast %cst_10 : f32 to vector<4x1xf32>
    %16 = arith.divf %15, %14 : vector<4x1xf32>
    %17 = vector.broadcast %16 : vector<4x1xf32> to vector<4x256xf32>
    %18 = arith.mulf %1, %17 : vector<4x256xf32>
    %cst_11 = arith.constant dense<0.000000e+00> : vector<256xf32>
    %19 = vector.multi_reduction <add>, %18, %cst_11 [0] : vector<4x256xf32> to vector<256xf32>
    %20 = vector.shape_cast %19 : vector<256xf32> to vector<1x256xf32>
    %cst_12 = arith.constant 2.500000e-01 : f32
    %21 = vector.broadcast %cst_12 : f32 to vector<1x256xf32>
    %22 = arith.mulf %20, %21 : vector<1x256xf32>
    %cst_13 = arith.constant dense<0xFF800000> : vector<256xf32>
    %23 = vector.multi_reduction <maximumf>, %18, %cst_13 [0] : vector<4x256xf32> to vector<256xf32>
    %24 = vector.shape_cast %23 : vector<256xf32> to vector<1x256xf32>
    %cst_14 = arith.constant 0.000000e+00 : f32
    %25 = vector.broadcast %cst_14 : f32 to vector<2x22x22xf32>
    %c0_15 = arith.constant 0 : index
    %c0_16 = arith.constant 0 : index
    %c0_17 = arith.constant 0 : index
    %26 = vector.load %arg6[%c0_15, %c0_16, %c0_17] : memref<2x22x22xf32, #tpu.memory_space<vmem>>, vector<2x22x22xf32>
    tpu.vector_store %arg6[%c0_15, %c0_16, %c0_17], %25 {strides = array<i32>} : memref<2x22x22xf32, #tpu.memory_space<vmem>>, vector<2x22x22xf32>,
    %27 = vector.extract_strided_slice %22 {offsets = [0, 0], sizes = [1, 16], strides = [1, 1]} : vector<1x256xf32> to vector<1x16xf32>
    %c0_18 = arith.constant 0 : index
    %c3 = arith.constant 3 : index
    %c3_19 = arith.constant 3 : index
    %28 = vector.load %arg6[%c0_18, %c3, %c3_19] : memref<2x22x22xf32, #tpu.memory_space<vmem>>, vector<1x1x16xf32>
    %29 = vector.shape_cast %28 : vector<1x1x16xf32> to vector<1x16xf32>
    %30 = vector.shape_cast %27 : vector<1x16xf32> to vector<1x1x16xf32>
    tpu.vector_store %arg6[%c0_18, %c3, %c3_19], %30 {strides = array<i32>} : memref<2x22x22xf32, #tpu.memory_space<vmem>>, vector<1x1x16xf32>,
    %31 = vector.extract_strided_slice %24 {offsets = [0, 0], sizes = [1, 16], strides = [1, 1]} : vector<1x256xf32> to vector<1x16xf32>
    %c1 = arith.constant 1 : index
    %c3_20 = arith.constant 3 : index
    %c3_21 = arith.constant 3 : index
    %32 = vector.load %arg6[%c1, %c3_20, %c3_21] : memref<2x22x22xf32, #tpu.memory_space<vmem>>, vector<1x1x16xf32>
    %33 = vector.shape_cast %32 : vector<1x1x16xf32> to vector<1x16xf32>
    %34 = vector.shape_cast %31 : vector<1x16xf32> to vector<1x1x16xf32>
    tpu.vector_store %arg6[%c1, %c3_20, %c3_21], %34 {strides = array<i32>} : memref<2x22x22xf32, #tpu.memory_space<vmem>>, vector<1x1x16xf32>,
    %35 = vector.extract_strided_slice %22 {offsets = [0, 16], sizes = [1, 16], strides = [1, 1]} : vector<1x256xf32> to vector<1x16xf32>
    %c0_22 = arith.constant 0 : index
    %c4 = arith.constant 4 : index
    %c3_23 = arith.constant 3 : index
    %36 = vector.load %arg6[%c0_22, %c4, %c3_23] : memref<2x22x22xf32, #tpu.memory_space<vmem>>, vector<1x1x16xf32>
    %37 = vector.shape_cast %36 : vector<1x1x16xf32> to vector<1x16xf32>
    %38 = vector.shape_cast %35 : vector<1x16xf32> to vector<1x1x16xf32>
    tpu.vector_store %arg6[%c0_22, %c4, %c3_23], %38 {strides = array<i32>} : memref<2x22x22xf32, #tpu.memory_space<vmem>>, vector<1x1x16xf32>,
    %39 = vector.extract_strided_slice %24 {offsets = [0, 16], sizes = [1, 16], strides = [1, 1]} : vector<1x256xf32> to vector<1x16xf32>
    %c1_24 = arith.constant 1 : index
    %c4_25 = arith.constant 4 : index
    %c3_26 = arith.constant 3 : index
    %40 = vector.load %arg6[%c1_24, %c4_25, %c3_26] : memref<2x22x22xf32, #tpu.memory_space<vmem>>, vector<1x1x16xf32>
    %41 = vector.shape_cast %40 : vector<1x1x16xf32> to vector<1x16xf32>
    %42 = vector.shape_cast %39 : vector<1x16xf32> to vector<1x1x16xf32>
    tpu.vector_store %arg6[%c1_24, %c4_25, %c3_26], %42 {strides = array<i32>} : memref<2x22x22xf32, #tpu.memory_space<vmem>>, vector<1x1x16xf32>,
    %43 = vector.extract_strided_slice %22 {offsets = [0, 32], sizes = [1, 16], strides = [1, 1]} : vector<1x256xf32> to vector<1x16xf32>
    %c0_27 = arith.constant 0 : index
    %c5 = arith.constant 5 : index
    %c3_28 = arith.constant 3 : index
    %44 = vector.load %arg6[%c0_27, %c5, %c3_28] : memref<2x22x22xf32, #tpu.memory_space<vmem>>, vector<1x1x16xf32>
    %45 = vector.shape_cast %44 : vector<1x1x16xf32> to vector<1x16xf32>
    %46 = vector.shape_cast %43 : vector<1x16xf32> to vector<1x1x16xf32>
    tpu.vector_store %arg6[%c0_27, %c5, %c3_28], %46 {strides = array<i32>} : memref<2x22x22xf32, #tpu.memory_space<vmem>>, vector<1x1x16xf32>,
    %47 = vector.extract_strided_slice %24 {offsets = [0, 32], sizes = [1, 16], strides = [1, 1]} : vector<1x256xf32> to vector<1x16xf32>
    %c1_29 = arith.constant 1 : index
    %c5_30 = arith.constant 5 : index
    %c3_31 = arith.constant 3 : index
    %48 = vector.load %arg6[%c1_29, %c5_30, %c3_31] : memref<2x22x22xf32, #tpu.memory_space<vmem>>, vector<1x1x16xf32>
    %49 = vector.shape_cast %48 : vector<1x1x16xf32> to vector<1x16xf32>
    %50 = vector.shape_cast %47 : vector<1x16xf32> to vector<1x1x16xf32>
    tpu.vector_store %arg6[%c1_29, %c5_30, %c3_31], %50 {strides = array<i32>} : memref<2x22x22xf32, #tpu.memory_space<vmem>>, vector<1x1x16xf32>,
    %51 = vector.extract_strided_slice %22 {offsets = [0, 48], sizes = [1, 16], strides = [1, 1]} : vector<1x256xf32> to vector<1x16xf32>
    %c0_32 = arith.constant 0 : index
    %c6 = arith.constant 6 : index
    %c3_33 = arith.constant 3 : index
    %52 = vector.load %arg6[%c0_32, %c6, %c3_33] : memref<2x22x22xf32, #tpu.memory_space<vmem>>, vector<1x1x16xf32>
    %53 = vector.shape_cast %52 : vector<1x1x16xf32> to vector<1x16xf32>
    %54 = vector.shape_cast %51 : vector<1x16xf32> to vector<1x1x16xf32>
    tpu.vector_store %arg6[%c0_32, %c6, %c3_33], %54 {strides = array<i32>} : memref<2x22x22xf32, #tpu.memory_space<vmem>>, vector<1x1x16xf32>,
    %55 = vector.extract_strided_slice %24 {offsets = [0, 48], sizes = [1, 16], strides = [1, 1]} : vector<1x256xf32> to vector<1x16xf32>
    %c1_34 = arith.constant 1 : index
    %c6_35 = arith.constant 6 : index
    %c3_36 = arith.constant 3 : index
    %56 = vector.load %arg6[%c1_34, %c6_35, %c3_36] : memref<2x22x22xf32, #tpu.memory_space<vmem>>, vector<1x1x16xf32>
    %57 = vector.shape_cast %56 : vector<1x1x16xf32> to vector<1x16xf32>
    %58 = vector.shape_cast %55 : vector<1x16xf32> to vector<1x1x16xf32>
    tpu.vector_store %arg6[%c1_34, %c6_35, %c3_36], %58 {strides = array<i32>} : memref<2x22x22xf32, #tpu.memory_space<vmem>>, vector<1x1x16xf32>,
    %59 = vector.extract_strided_slice %22 {offsets = [0, 64], sizes = [1, 16], strides = [1, 1]} : vector<1x256xf32> to vector<1x16xf32>
    %c0_37 = arith.constant 0 : index
    %c7 = arith.constant 7 : index
    %c3_38 = arith.constant 3 : index
    %60 = vector.load %arg6[%c0_37, %c7, %c3_38] : memref<2x22x22xf32, #tpu.memory_space<vmem>>, vector<1x1x16xf32>
    %61 = vector.shape_cast %60 : vector<1x1x16xf32> to vector<1x16xf32>
    %62 = vector.shape_cast %59 : vector<1x16xf32> to vector<1x1x16xf32>
    tpu.vector_store %arg6[%c0_37, %c7, %c3_38], %62 {strides = array<i32>} : memref<2x22x22xf32, #tpu.memory_space<vmem>>, vector<1x1x16xf32>,
    %63 = vector.extract_strided_slice %24 {offsets = [0, 64], sizes = [1, 16], strides = [1, 1]} : vector<1x256xf32> to vector<1x16xf32>
    %c1_39 = arith.constant 1 : index
    %c7_40 = arith.constant 7 : index
    %c3_41 = arith.constant 3 : index
    %64 = vector.load %arg6[%c1_39, %c7_40, %c3_41] : memref<2x22x22xf32, #tpu.memory_space<vmem>>, vector<1x1x16xf32>
    %65 = vector.shape_cast %64 : vector<1x1x16xf32> to vector<1x16xf32>
    %66 = vector.shape_cast %63 : vector<1x16xf32> to vector<1x1x16xf32>
    tpu.vector_store %arg6[%c1_39, %c7_40, %c3_41], %66 {strides = array<i32>} : memref<2x22x22xf32, #tpu.memory_space<vmem>>, vector<1x1x16xf32>,
    %67 = vector.extract_strided_slice %22 {offsets = [0, 80], sizes = [1, 16], strides = [1, 1]} : vector<1x256xf32> to vector<1x16xf32>
    %c0_42 = arith.constant 0 : index
    %c8 = arith.constant 8 : index
    %c3_43 = arith.constant 3 : index
    %68 = vector.load %arg6[%c0_42, %c8, %c3_43] : memref<2x22x22xf32, #tpu.memory_space<vmem>>, vector<1x1x16xf32>
    %69 = vector.shape_cast %68 : vector<1x1x16xf32> to vector<1x16xf32>
    %70 = vector.shape_cast %67 : vector<1x16xf32> to vector<1x1x16xf32>
    tpu.vector_store %arg6[%c0_42, %c8, %c3_43], %70 {strides = array<i32>} : memref<2x22x22xf32, #tpu.memory_space<vmem>>, vector<1x1x16xf32>,
    %71 = vector.extract_strided_slice %24 {offsets = [0, 80], sizes = [1, 16], strides = [1, 1]} : vector<1x256xf32> to vector<1x16xf32>
    %c1_44 = arith.constant 1 : index
    %c8_45 = arith.constant 8 : index
    %c3_46 = arith.constant 3 : index
    %72 = vector.load %arg6[%c1_44, %c8_45, %c3_46] : memref<2x22x22xf32, #tpu.memory_space<vmem>>, vector<1x1x16xf32>
    %73 = vector.shape_cast %72 : vector<1x1x16xf32> to vector<1x16xf32>
    %74 = vector.shape_cast %71 : vector<1x16xf32> to vector<1x1x16xf32>
    tpu.vector_store %arg6[%c1_44, %c8_45, %c3_46], %74 {strides = array<i32>} : memref<2x22x22xf32, #tpu.memory_space<vmem>>, vector<1x1x16xf32>,
    %75 = vector.extract_strided_slice %22 {offsets = [0, 96], sizes = [1, 16], strides = [1, 1]} : vector<1x256xf32> to vector<1x16xf32>
    %c0_47 = arith.constant 0 : index
    %c9 = arith.constant 9 : index
    %c3_48 = arith.constant 3 : index
    %76 = vector.load %arg6[%c0_47, %c9, %c3_48] : memref<2x22x22xf32, #tpu.memory_space<vmem>>, vector<1x1x16xf32>
    %77 = vector.shape_cast %76 : vector<1x1x16xf32> to vector<1x16xf32>
    %78 = vector.shape_cast %75 : vector<1x16xf32> to vector<1x1x16xf32>
    tpu.vector_store %arg6[%c0_47, %c9, %c3_48], %78 {strides = array<i32>} : memref<2x22x22xf32, #tpu.memory_space<vmem>>, vector<1x1x16xf32>,
    %79 = vector.extract_strided_slice %24 {offsets = [0, 96], sizes = [1, 16], strides = [1, 1]} : vector<1x256xf32> to vector<1x16xf32>
    %c1_49 = arith.constant 1 : index
    %c9_50 = arith.constant 9 : index
    %c3_51 = arith.constant 3 : index
    %80 = vector.load %arg6[%c1_49, %c9_50, %c3_51] : memref<2x22x22xf32, #tpu.memory_space<vmem>>, vector<1x1x16xf32>
    %81 = vector.shape_cast %80 : vector<1x1x16xf32> to vector<1x16xf32>
    %82 = vector.shape_cast %79 : vector<1x16xf32> to vector<1x1x16xf32>
    tpu.vector_store %arg6[%c1_49, %c9_50, %c3_51], %82 {strides = array<i32>} : memref<2x22x22xf32, #tpu.memory_space<vmem>>, vector<1x1x16xf32>,
    %83 = vector.extract_strided_slice %22 {offsets = [0, 112], sizes = [1, 16], strides = [1, 1]} : vector<1x256xf32> to vector<1x16xf32>
    %c0_52 = arith.constant 0 : index
    %c10 = arith.constant 10 : index
    %c3_53 = arith.constant 3 : index
    %84 = vector.load %arg6[%c0_52, %c10, %c3_53] : memref<2x22x22xf32, #tpu.memory_space<vmem>>, vector<1x1x16xf32>
    %85 = vector.shape_cast %84 : vector<1x1x16xf32> to vector<1x16xf32>
    %86 = vector.shape_cast %83 : vector<1x16xf32> to vector<1x1x16xf32>
    tpu.vector_store %arg6[%c0_52, %c10, %c3_53], %86 {strides = array<i32>} : memref<2x22x22xf32, #tpu.memory_space<vmem>>, vector<1x1x16xf32>,
    %87 = vector.extract_strided_slice %24 {offsets = [0, 112], sizes = [1, 16], strides = [1, 1]} : vector<1x256xf32> to vector<1x16xf32>
    %c1_54 = arith.constant 1 : index
    %c10_55 = arith.constant 10 : index
    %c3_56 = arith.constant 3 : index
    %88 = vector.load %arg6[%c1_54, %c10_55, %c3_56] : memref<2x22x22xf32, #tpu.memory_space<vmem>>, vector<1x1x16xf32>
    %89 = vector.shape_cast %88 : vector<1x1x16xf32> to vector<1x16xf32>
    %90 = vector.shape_cast %87 : vector<1x16xf32> to vector<1x1x16xf32>
    tpu.vector_store %arg6[%c1_54, %c10_55, %c3_56], %90 {strides = array<i32>} : memref<2x22x22xf32, #tpu.memory_space<vmem>>, vector<1x1x16xf32>,
    %91 = vector.extract_strided_slice %22 {offsets = [0, 128], sizes = [1, 16], strides = [1, 1]} : vector<1x256xf32> to vector<1x16xf32>
    %c0_57 = arith.constant 0 : index
    %c11 = arith.constant 11 : index
    %c3_58 = arith.constant 3 : index
    %92 = vector.load %arg6[%c0_57, %c11, %c3_58] : memref<2x22x22xf32, #tpu.memory_space<vmem>>, vector<1x1x16xf32>
    %93 = vector.shape_cast %92 : vector<1x1x16xf32> to vector<1x16xf32>
    %94 = vector.shape_cast %91 : vector<1x16xf32> to vector<1x1x16xf32>
    tpu.vector_store %arg6[%c0_57, %c11, %c3_58], %94 {strides = array<i32>} : memref<2x22x22xf32, #tpu.memory_space<vmem>>, vector<1x1x16xf32>,
    %95 = vector.extract_strided_slice %24 {offsets = [0, 128], sizes = [1, 16], strides = [1, 1]} : vector<1x256xf32> to vector<1x16xf32>
    %c1_59 = arith.constant 1 : index
    %c11_60 = arith.constant 11 : index
    %c3_61 = arith.constant 3 : index
    %96 = vector.load %arg6[%c1_59, %c11_60, %c3_61] : memref<2x22x22xf32, #tpu.memory_space<vmem>>, vector<1x1x16xf32>
    %97 = vector.shape_cast %96 : vector<1x1x16xf32> to vector<1x16xf32>
    %98 = vector.shape_cast %95 : vector<1x16xf32> to vector<1x1x16xf32>
    tpu.vector_store %arg6[%c1_59, %c11_60, %c3_61], %98 {strides = array<i32>} : memref<2x22x22xf32, #tpu.memory_space<vmem>>, vector<1x1x16xf32>,
    %99 = vector.extract_strided_slice %22 {offsets = [0, 144], sizes = [1, 16], strides = [1, 1]} : vector<1x256xf32> to vector<1x16xf32>
    %c0_62 = arith.constant 0 : index
    %c12 = arith.constant 12 : index
    %c3_63 = arith.constant 3 : index
    %100 = vector.load %arg6[%c0_62, %c12, %c3_63] : memref<2x22x22xf32, #tpu.memory_space<vmem>>, vector<1x1x16xf32>
    %101 = vector.shape_cast %100 : vector<1x1x16xf32> to vector<1x16xf32>
    %102 = vector.shape_cast %99 : vector<1x16xf32> to vector<1x1x16xf32>
    tpu.vector_store %arg6[%c0_62, %c12, %c3_63], %102 {strides = array<i32>} : memref<2x22x22xf32, #tpu.memory_space<vmem>>, vector<1x1x16xf32>,
    %103 = vector.extract_strided_slice %24 {offsets = [0, 144], sizes = [1, 16], strides = [1, 1]} : vector<1x256xf32> to vector<1x16xf32>
    %c1_64 = arith.constant 1 : index
    %c12_65 = arith.constant 12 : index
    %c3_66 = arith.constant 3 : index
    %104 = vector.load %arg6[%c1_64, %c12_65, %c3_66] : memref<2x22x22xf32, #tpu.memory_space<vmem>>, vector<1x1x16xf32>
    %105 = vector.shape_cast %104 : vector<1x1x16xf32> to vector<1x16xf32>
    %106 = vector.shape_cast %103 : vector<1x16xf32> to vector<1x1x16xf32>
    tpu.vector_store %arg6[%c1_64, %c12_65, %c3_66], %106 {strides = array<i32>} : memref<2x22x22xf32, #tpu.memory_space<vmem>>, vector<1x1x16xf32>,
    %107 = vector.extract_strided_slice %22 {offsets = [0, 160], sizes = [1, 16], strides = [1, 1]} : vector<1x256xf32> to vector<1x16xf32>
    %c0_67 = arith.constant 0 : index
    %c13 = arith.constant 13 : index
    %c3_68 = arith.constant 3 : index
    %108 = vector.load %arg6[%c0_67, %c13, %c3_68] : memref<2x22x22xf32, #tpu.memory_space<vmem>>, vector<1x1x16xf32>
    %109 = vector.shape_cast %108 : vector<1x1x16xf32> to vector<1x16xf32>
    %110 = vector.shape_cast %107 : vector<1x16xf32> to vector<1x1x16xf32>
    tpu.vector_store %arg6[%c0_67, %c13, %c3_68], %110 {strides = array<i32>} : memref<2x22x22xf32, #tpu.memory_space<vmem>>, vector<1x1x16xf32>,
    %111 = vector.extract_strided_slice %24 {offsets = [0, 160], sizes = [1, 16], strides = [1, 1]} : vector<1x256xf32> to vector<1x16xf32>
    %c1_69 = arith.constant 1 : index
    %c13_70 = arith.constant 13 : index
    %c3_71 = arith.constant 3 : index
    %112 = vector.load %arg6[%c1_69, %c13_70, %c3_71] : memref<2x22x22xf32, #tpu.memory_space<vmem>>, vector<1x1x16xf32>
    %113 = vector.shape_cast %112 : vector<1x1x16xf32> to vector<1x16xf32>
    %114 = vector.shape_cast %111 : vector<1x16xf32> to vector<1x1x16xf32>
    tpu.vector_store %arg6[%c1_69, %c13_70, %c3_71], %114 {strides = array<i32>} : memref<2x22x22xf32, #tpu.memory_space<vmem>>, vector<1x1x16xf32>,
    %115 = vector.extract_strided_slice %22 {offsets = [0, 176], sizes = [1, 16], strides = [1, 1]} : vector<1x256xf32> to vector<1x16xf32>
    %c0_72 = arith.constant 0 : index
    %c14 = arith.constant 14 : index
    %c3_73 = arith.constant 3 : index
    %116 = vector.load %arg6[%c0_72, %c14, %c3_73] : memref<2x22x22xf32, #tpu.memory_space<vmem>>, vector<1x1x16xf32>
    %117 = vector.shape_cast %116 : vector<1x1x16xf32> to vector<1x16xf32>
    %118 = vector.shape_cast %115 : vector<1x16xf32> to vector<1x1x16xf32>
    tpu.vector_store %arg6[%c0_72, %c14, %c3_73], %118 {strides = array<i32>} : memref<2x22x22xf32, #tpu.memory_space<vmem>>, vector<1x1x16xf32>,
    %119 = vector.extract_strided_slice %24 {offsets = [0, 176], sizes = [1, 16], strides = [1, 1]} : vector<1x256xf32> to vector<1x16xf32>
    %c1_74 = arith.constant 1 : index
    %c14_75 = arith.constant 14 : index
    %c3_76 = arith.constant 3 : index
    %120 = vector.load %arg6[%c1_74, %c14_75, %c3_76] : memref<2x22x22xf32, #tpu.memory_space<vmem>>, vector<1x1x16xf32>
    %121 = vector.shape_cast %120 : vector<1x1x16xf32> to vector<1x16xf32>
    %122 = vector.shape_cast %119 : vector<1x16xf32> to vector<1x1x16xf32>
    tpu.vector_store %arg6[%c1_74, %c14_75, %c3_76], %122 {strides = array<i32>} : memref<2x22x22xf32, #tpu.memory_space<vmem>>, vector<1x1x16xf32>,
    %123 = vector.extract_strided_slice %22 {offsets = [0, 192], sizes = [1, 16], strides = [1, 1]} : vector<1x256xf32> to vector<1x16xf32>
    %c0_77 = arith.constant 0 : index
    %c15 = arith.constant 15 : index
    %c3_78 = arith.constant 3 : index
    %124 = vector.load %arg6[%c0_77, %c15, %c3_78] : memref<2x22x22xf32, #tpu.memory_space<vmem>>, vector<1x1x16xf32>
    %125 = vector.shape_cast %124 : vector<1x1x16xf32> to vector<1x16xf32>
    %126 = vector.shape_cast %123 : vector<1x16xf32> to vector<1x1x16xf32>
    tpu.vector_store %arg6[%c0_77, %c15, %c3_78], %126 {strides = array<i32>} : memref<2x22x22xf32, #tpu.memory_space<vmem>>, vector<1x1x16xf32>,
    %127 = vector.extract_strided_slice %24 {offsets = [0, 192], sizes = [1, 16], strides = [1, 1]} : vector<1x256xf32> to vector<1x16xf32>
    %c1_79 = arith.constant 1 : index
    %c15_80 = arith.constant 15 : index
    %c3_81 = arith.constant 3 : index
    %128 = vector.load %arg6[%c1_79, %c15_80, %c3_81] : memref<2x22x22xf32, #tpu.memory_space<vmem>>, vector<1x1x16xf32>
    %129 = vector.shape_cast %128 : vector<1x1x16xf32> to vector<1x16xf32>
    %130 = vector.shape_cast %127 : vector<1x16xf32> to vector<1x1x16xf32>
    tpu.vector_store %arg6[%c1_79, %c15_80, %c3_81], %130 {strides = array<i32>} : memref<2x22x22xf32, #tpu.memory_space<vmem>>, vector<1x1x16xf32>,
    %131 = vector.extract_strided_slice %22 {offsets = [0, 208], sizes = [1, 16], strides = [1, 1]} : vector<1x256xf32> to vector<1x16xf32>
    %c0_82 = arith.constant 0 : index
    %c16 = arith.constant 16 : index
    %c3_83 = arith.constant 3 : index
    %132 = vector.load %arg6[%c0_82, %c16, %c3_83] : memref<2x22x22xf32, #tpu.memory_space<vmem>>, vector<1x1x16xf32>
    %133 = vector.shape_cast %132 : vector<1x1x16xf32> to vector<1x16xf32>
    %134 = vector.shape_cast %131 : vector<1x16xf32> to vector<1x1x16xf32>
    tpu.vector_store %arg6[%c0_82, %c16, %c3_83], %134 {strides = array<i32>} : memref<2x22x22xf32, #tpu.memory_space<vmem>>, vector<1x1x16xf32>,
    %135 = vector.extract_strided_slice %24 {offsets = [0, 208], sizes = [1, 16], strides = [1, 1]} : vector<1x256xf32> to vector<1x16xf32>
    %c1_84 = arith.constant 1 : index
    %c16_85 = arith.constant 16 : index
    %c3_86 = arith.constant 3 : index
    %136 = vector.load %arg6[%c1_84, %c16_85, %c3_86] : memref<2x22x22xf32, #tpu.memory_space<vmem>>, vector<1x1x16xf32>
    %137 = vector.shape_cast %136 : vector<1x1x16xf32> to vector<1x16xf32>
    %138 = vector.shape_cast %135 : vector<1x16xf32> to vector<1x1x16xf32>
    tpu.vector_store %arg6[%c1_84, %c16_85, %c3_86], %138 {strides = array<i32>} : memref<2x22x22xf32, #tpu.memory_space<vmem>>, vector<1x1x16xf32>,
    %139 = vector.extract_strided_slice %22 {offsets = [0, 224], sizes = [1, 16], strides = [1, 1]} : vector<1x256xf32> to vector<1x16xf32>
    %c0_87 = arith.constant 0 : index
    %c17 = arith.constant 17 : index
    %c3_88 = arith.constant 3 : index
    %140 = vector.load %arg6[%c0_87, %c17, %c3_88] : memref<2x22x22xf32, #tpu.memory_space<vmem>>, vector<1x1x16xf32>
    %141 = vector.shape_cast %140 : vector<1x1x16xf32> to vector<1x16xf32>
    %142 = vector.shape_cast %139 : vector<1x16xf32> to vector<1x1x16xf32>
    tpu.vector_store %arg6[%c0_87, %c17, %c3_88], %142 {strides = array<i32>} : memref<2x22x22xf32, #tpu.memory_space<vmem>>, vector<1x1x16xf32>,
    %143 = vector.extract_strided_slice %24 {offsets = [0, 224], sizes = [1, 16], strides = [1, 1]} : vector<1x256xf32> to vector<1x16xf32>
    %c1_89 = arith.constant 1 : index
    %c17_90 = arith.constant 17 : index
    %c3_91 = arith.constant 3 : index
    %144 = vector.load %arg6[%c1_89, %c17_90, %c3_91] : memref<2x22x22xf32, #tpu.memory_space<vmem>>, vector<1x1x16xf32>
    %145 = vector.shape_cast %144 : vector<1x1x16xf32> to vector<1x16xf32>
    %146 = vector.shape_cast %143 : vector<1x16xf32> to vector<1x1x16xf32>
    tpu.vector_store %arg6[%c1_89, %c17_90, %c3_91], %146 {strides = array<i32>} : memref<2x22x22xf32, #tpu.memory_space<vmem>>, vector<1x1x16xf32>,
    %147 = vector.extract_strided_slice %22 {offsets = [0, 240], sizes = [1, 16], strides = [1, 1]} : vector<1x256xf32> to vector<1x16xf32>
    %c0_92 = arith.constant 0 : index
    %c18 = arith.constant 18 : index
    %c3_93 = arith.constant 3 : index
    %148 = vector.load %arg6[%c0_92, %c18, %c3_93] : memref<2x22x22xf32, #tpu.memory_space<vmem>>, vector<1x1x16xf32>
    %149 = vector.shape_cast %148 : vector<1x1x16xf32> to vector<1x16xf32>
    %150 = vector.shape_cast %147 : vector<1x16xf32> to vector<1x1x16xf32>
    tpu.vector_store %arg6[%c0_92, %c18, %c3_93], %150 {strides = array<i32>} : memref<2x22x22xf32, #tpu.memory_space<vmem>>, vector<1x1x16xf32>,
    %151 = vector.extract_strided_slice %24 {offsets = [0, 240], sizes = [1, 16], strides = [1, 1]} : vector<1x256xf32> to vector<1x16xf32>
    %c1_94 = arith.constant 1 : index
    %c18_95 = arith.constant 18 : index
    %c3_96 = arith.constant 3 : index
    %152 = vector.load %arg6[%c1_94, %c18_95, %c3_96] : memref<2x22x22xf32, #tpu.memory_space<vmem>>, vector<1x1x16xf32>
    %153 = vector.shape_cast %152 : vector<1x1x16xf32> to vector<1x16xf32>
    %154 = vector.shape_cast %151 : vector<1x16xf32> to vector<1x1x16xf32>
    tpu.vector_store %arg6[%c1_94, %c18_95, %c3_96], %154 {strides = array<i32>} : memref<2x22x22xf32, #tpu.memory_space<vmem>>, vector<1x1x16xf32>,
    %cst_97 = arith.constant 0.000000e+00 : f32
    %155 = vector.broadcast %cst_97 : f32 to vector<16x16xf32>
    %c0_98 = arith.constant 0 : index
    %156 = memref.load %arg4[%c0_98] : memref<98xf32, #tpu.memory_space<smem>>
    %c0_99 = arith.constant 0 : index
    %c0_100 = arith.constant 0 : index
    %c0_101 = arith.constant 0 : index
    %157 = vector.load %arg6[%c0_99, %c0_100, %c0_101] : memref<2x22x22xf32, #tpu.memory_space<vmem>>, vector<1x16x16xf32>
    %158 = vector.shape_cast %157 : vector<1x16x16xf32> to vector<16x16xf32>
    %159 = vector.broadcast %156 : f32 to vector<16x16xf32>
    %160 = arith.mulf %159, %158 : vector<16x16xf32>
    %161 = arith.addf %155, %160 : vector<16x16xf32>
    %c1_102 = arith.constant 1 : index
    %162 = memref.load %arg4[%c1_102] : memref<98xf32, #tpu.memory_space<smem>>
    %c0_103 = arith.constant 0 : index
    %c0_104 = arith.constant 0 : index
    %c1_105 = arith.constant 1 : index
    %163 = vector.load %arg6[%c0_103, %c0_104, %c1_105] : memref<2x22x22xf32, #tpu.memory_space<vmem>>, vector<1x16x16xf32>
    %164 = vector.shape_cast %163 : vector<1x16x16xf32> to vector<16x16xf32>
    %165 = vector.broadcast %162 : f32 to vector<16x16xf32>
    %166 = arith.mulf %165, %164 : vector<16x16xf32>
    %167 = arith.addf %161, %166 : vector<16x16xf32>
    %c2 = arith.constant 2 : index
    %168 = memref.load %arg4[%c2] : memref<98xf32, #tpu.memory_space<smem>>
    %c0_106 = arith.constant 0 : index
    %c0_107 = arith.constant 0 : index
    %c2_108 = arith.constant 2 : index
    %169 = vector.load %arg6[%c0_106, %c0_107, %c2_108] : memref<2x22x22xf32, #tpu.memory_space<vmem>>, vector<1x16x16xf32>
    %170 = vector.shape_cast %169 : vector<1x16x16xf32> to vector<16x16xf32>
    %171 = vector.broadcast %168 : f32 to vector<16x16xf32>
    %172 = arith.mulf %171, %170 : vector<16x16xf32>
    %173 = arith.addf %167, %172 : vector<16x16xf32>
    %c3_109 = arith.constant 3 : index
    %174 = memref.load %arg4[%c3_109] : memref<98xf32, #tpu.memory_space<smem>>
    %c0_110 = arith.constant 0 : index
    %c0_111 = arith.constant 0 : index
    %c3_112 = arith.constant 3 : index
    %175 = vector.load %arg6[%c0_110, %c0_111, %c3_112] : memref<2x22x22xf32, #tpu.memory_space<vmem>>, vector<1x16x16xf32>
    %176 = vector.shape_cast %175 : vector<1x16x16xf32> to vector<16x16xf32>
    %177 = vector.broadcast %174 : f32 to vector<16x16xf32>
    %178 = arith.mulf %177, %176 : vector<16x16xf32>
    %179 = arith.addf %173, %178 : vector<16x16xf32>
    %c4_113 = arith.constant 4 : index
    %180 = memref.load %arg4[%c4_113] : memref<98xf32, #tpu.memory_space<smem>>
    %c0_114 = arith.constant 0 : index
    %c0_115 = arith.constant 0 : index
    %c4_116 = arith.constant 4 : index
    %181 = vector.load %arg6[%c0_114, %c0_115, %c4_116] : memref<2x22x22xf32, #tpu.memory_space<vmem>>, vector<1x16x16xf32>
    %182 = vector.shape_cast %181 : vector<1x16x16xf32> to vector<16x16xf32>
    %183 = vector.broadcast %180 : f32 to vector<16x16xf32>
    %184 = arith.mulf %183, %182 : vector<16x16xf32>
    %185 = arith.addf %179, %184 : vector<16x16xf32>
    %c5_117 = arith.constant 5 : index
    %186 = memref.load %arg4[%c5_117] : memref<98xf32, #tpu.memory_space<smem>>
    %c0_118 = arith.constant 0 : index
    %c0_119 = arith.constant 0 : index
    %c5_120 = arith.constant 5 : index
    %187 = vector.load %arg6[%c0_118, %c0_119, %c5_120] : memref<2x22x22xf32, #tpu.memory_space<vmem>>, vector<1x16x16xf32>
    %188 = vector.shape_cast %187 : vector<1x16x16xf32> to vector<16x16xf32>
    %189 = vector.broadcast %186 : f32 to vector<16x16xf32>
    %190 = arith.mulf %189, %188 : vector<16x16xf32>
    %191 = arith.addf %185, %190 : vector<16x16xf32>
    %c6_121 = arith.constant 6 : index
    %192 = memref.load %arg4[%c6_121] : memref<98xf32, #tpu.memory_space<smem>>
    %c0_122 = arith.constant 0 : index
    %c0_123 = arith.constant 0 : index
    %c6_124 = arith.constant 6 : index
    %193 = vector.load %arg6[%c0_122, %c0_123, %c6_124] : memref<2x22x22xf32, #tpu.memory_space<vmem>>, vector<1x16x16xf32>
    %194 = vector.shape_cast %193 : vector<1x16x16xf32> to vector<16x16xf32>
    %195 = vector.broadcast %192 : f32 to vector<16x16xf32>
    %196 = arith.mulf %195, %194 : vector<16x16xf32>
    %197 = arith.addf %191, %196 : vector<16x16xf32>
    %c7_125 = arith.constant 7 : index
    %198 = memref.load %arg4[%c7_125] : memref<98xf32, #tpu.memory_space<smem>>
    %c0_126 = arith.constant 0 : index
    %c1_127 = arith.constant 1 : index
    %c0_128 = arith.constant 0 : index
    %199 = vector.load %arg6[%c0_126, %c1_127, %c0_128] : memref<2x22x22xf32, #tpu.memory_space<vmem>>, vector<1x16x16xf32>
    %200 = vector.shape_cast %199 : vector<1x16x16xf32> to vector<16x16xf32>
    %201 = vector.broadcast %198 : f32 to vector<16x16xf32>
    %202 = arith.mulf %201, %200 : vector<16x16xf32>
    %203 = arith.addf %197, %202 : vector<16x16xf32>
    %c8_129 = arith.constant 8 : index
    %204 = memref.load %arg4[%c8_129] : memref<98xf32, #tpu.memory_space<smem>>
    %c0_130 = arith.constant 0 : index
    %c1_131 = arith.constant 1 : index
    %c1_132 = arith.constant 1 : index
    %205 = vector.load %arg6[%c0_130, %c1_131, %c1_132] : memref<2x22x22xf32, #tpu.memory_space<vmem>>, vector<1x16x16xf32>
    %206 = vector.shape_cast %205 : vector<1x16x16xf32> to vector<16x16xf32>
    %207 = vector.broadcast %204 : f32 to vector<16x16xf32>
    %208 = arith.mulf %207, %206 : vector<16x16xf32>
    %209 = arith.addf %203, %208 : vector<16x16xf32>
    %c9_133 = arith.constant 9 : index
    %210 = memref.load %arg4[%c9_133] : memref<98xf32, #tpu.memory_space<smem>>
    %c0_134 = arith.constant 0 : index
    %c1_135 = arith.constant 1 : index
    %c2_136 = arith.constant 2 : index
    %211 = vector.load %arg6[%c0_134, %c1_135, %c2_136] : memref<2x22x22xf32, #tpu.memory_space<vmem>>, vector<1x16x16xf32>
    %212 = vector.shape_cast %211 : vector<1x16x16xf32> to vector<16x16xf32>
    %213 = vector.broadcast %210 : f32 to vector<16x16xf32>
    %214 = arith.mulf %213, %212 : vector<16x16xf32>
    %215 = arith.addf %209, %214 : vector<16x16xf32>
    %c10_137 = arith.constant 10 : index
    %216 = memref.load %arg4[%c10_137] : memref<98xf32, #tpu.memory_space<smem>>
    %c0_138 = arith.constant 0 : index
    %c1_139 = arith.constant 1 : index
    %c3_140 = arith.constant 3 : index
    %217 = vector.load %arg6[%c0_138, %c1_139, %c3_140] : memref<2x22x22xf32, #tpu.memory_space<vmem>>, vector<1x16x16xf32>
    %218 = vector.shape_cast %217 : vector<1x16x16xf32> to vector<16x16xf32>
    %219 = vector.broadcast %216 : f32 to vector<16x16xf32>
    %220 = arith.mulf %219, %218 : vector<16x16xf32>
    %221 = arith.addf %215, %220 : vector<16x16xf32>
    %c11_141 = arith.constant 11 : index
    %222 = memref.load %arg4[%c11_141] : memref<98xf32, #tpu.memory_space<smem>>
    %c0_142 = arith.constant 0 : index
    %c1_143 = arith.constant 1 : index
    %c4_144 = arith.constant 4 : index
    %223 = vector.load %arg6[%c0_142, %c1_143, %c4_144] : memref<2x22x22xf32, #tpu.memory_space<vmem>>, vector<1x16x16xf32>
    %224 = vector.shape_cast %223 : vector<1x16x16xf32> to vector<16x16xf32>
    %225 = vector.broadcast %222 : f32 to vector<16x16xf32>
    %226 = arith.mulf %225, %224 : vector<16x16xf32>
    %227 = arith.addf %221, %226 : vector<16x16xf32>
    %c12_145 = arith.constant 12 : index
    %228 = memref.load %arg4[%c12_145] : memref<98xf32, #tpu.memory_space<smem>>
    %c0_146 = arith.constant 0 : index
    %c1_147 = arith.constant 1 : index
    %c5_148 = arith.constant 5 : index
    %229 = vector.load %arg6[%c0_146, %c1_147, %c5_148] : memref<2x22x22xf32, #tpu.memory_space<vmem>>, vector<1x16x16xf32>
    %230 = vector.shape_cast %229 : vector<1x16x16xf32> to vector<16x16xf32>
    %231 = vector.broadcast %228 : f32 to vector<16x16xf32>
    %232 = arith.mulf %231, %230 : vector<16x16xf32>
    %233 = arith.addf %227, %232 : vector<16x16xf32>
    %c13_149 = arith.constant 13 : index
    %234 = memref.load %arg4[%c13_149] : memref<98xf32, #tpu.memory_space<smem>>
    %c0_150 = arith.constant 0 : index
    %c1_151 = arith.constant 1 : index
    %c6_152 = arith.constant 6 : index
    %235 = vector.load %arg6[%c0_150, %c1_151, %c6_152] : memref<2x22x22xf32, #tpu.memory_space<vmem>>, vector<1x16x16xf32>
    %236 = vector.shape_cast %235 : vector<1x16x16xf32> to vector<16x16xf32>
    %237 = vector.broadcast %234 : f32 to vector<16x16xf32>
    %238 = arith.mulf %237, %236 : vector<16x16xf32>
    %239 = arith.addf %233, %238 : vector<16x16xf32>
    %c14_153 = arith.constant 14 : index
    %240 = memref.load %arg4[%c14_153] : memref<98xf32, #tpu.memory_space<smem>>
    %c0_154 = arith.constant 0 : index
    %c2_155 = arith.constant 2 : index
    %c0_156 = arith.constant 0 : index
    %241 = vector.load %arg6[%c0_154, %c2_155, %c0_156] : memref<2x22x22xf32, #tpu.memory_space<vmem>>, vector<1x16x16xf32>
    %242 = vector.shape_cast %241 : vector<1x16x16xf32> to vector<16x16xf32>
    %243 = vector.broadcast %240 : f32 to vector<16x16xf32>
    %244 = arith.mulf %243, %242 : vector<16x16xf32>
    %245 = arith.addf %239, %244 : vector<16x16xf32>
    %c15_157 = arith.constant 15 : index
    %246 = memref.load %arg4[%c15_157] : memref<98xf32, #tpu.memory_space<smem>>
    %c0_158 = arith.constant 0 : index
    %c2_159 = arith.constant 2 : index
    %c1_160 = arith.constant 1 : index
    %247 = vector.load %arg6[%c0_158, %c2_159, %c1_160] : memref<2x22x22xf32, #tpu.memory_space<vmem>>, vector<1x16x16xf32>
    %248 = vector.shape_cast %247 : vector<1x16x16xf32> to vector<16x16xf32>
    %249 = vector.broadcast %246 : f32 to vector<16x16xf32>
    %250 = arith.mulf %249, %248 : vector<16x16xf32>
    %251 = arith.addf %245, %250 : vector<16x16xf32>
    %c16_161 = arith.constant 16 : index
    %252 = memref.load %arg4[%c16_161] : memref<98xf32, #tpu.memory_space<smem>>
    %c0_162 = arith.constant 0 : index
    %c2_163 = arith.constant 2 : index
    %c2_164 = arith.constant 2 : index
    %253 = vector.load %arg6[%c0_162, %c2_163, %c2_164] : memref<2x22x22xf32, #tpu.memory_space<vmem>>, vector<1x16x16xf32>
    %254 = vector.shape_cast %253 : vector<1x16x16xf32> to vector<16x16xf32>
    %255 = vector.broadcast %252 : f32 to vector<16x16xf32>
    %256 = arith.mulf %255, %254 : vector<16x16xf32>
    %257 = arith.addf %251, %256 : vector<16x16xf32>
    %c17_165 = arith.constant 17 : index
    %258 = memref.load %arg4[%c17_165] : memref<98xf32, #tpu.memory_space<smem>>
    %c0_166 = arith.constant 0 : index
    %c2_167 = arith.constant 2 : index
    %c3_168 = arith.constant 3 : index
    %259 = vector.load %arg6[%c0_166, %c2_167, %c3_168] : memref<2x22x22xf32, #tpu.memory_space<vmem>>, vector<1x16x16xf32>
    %260 = vector.shape_cast %259 : vector<1x16x16xf32> to vector<16x16xf32>
    %261 = vector.broadcast %258 : f32 to vector<16x16xf32>
    %262 = arith.mulf %261, %260 : vector<16x16xf32>
    %263 = arith.addf %257, %262 : vector<16x16xf32>
    %c18_169 = arith.constant 18 : index
    %264 = memref.load %arg4[%c18_169] : memref<98xf32, #tpu.memory_space<smem>>
    %c0_170 = arith.constant 0 : index
    %c2_171 = arith.constant 2 : index
    %c4_172 = arith.constant 4 : index
    %265 = vector.load %arg6[%c0_170, %c2_171, %c4_172] : memref<2x22x22xf32, #tpu.memory_space<vmem>>, vector<1x16x16xf32>
    %266 = vector.shape_cast %265 : vector<1x16x16xf32> to vector<16x16xf32>
    %267 = vector.broadcast %264 : f32 to vector<16x16xf32>
    %268 = arith.mulf %267, %266 : vector<16x16xf32>
    %269 = arith.addf %263, %268 : vector<16x16xf32>
    %c19 = arith.constant 19 : index
    %270 = memref.load %arg4[%c19] : memref<98xf32, #tpu.memory_space<smem>>
    %c0_173 = arith.constant 0 : index
    %c2_174 = arith.constant 2 : index
    %c5_175 = arith.constant 5 : index
    %271 = vector.load %arg6[%c0_173, %c2_174, %c5_175] : memref<2x22x22xf32, #tpu.memory_space<vmem>>, vector<1x16x16xf32>
    %272 = vector.shape_cast %271 : vector<1x16x16xf32> to vector<16x16xf32>
    %273 = vector.broadcast %270 : f32 to vector<16x16xf32>
    %274 = arith.mulf %273, %272 : vector<16x16xf32>
    %275 = arith.addf %269, %274 : vector<16x16xf32>
    %c20 = arith.constant 20 : index
    %276 = memref.load %arg4[%c20] : memref<98xf32, #tpu.memory_space<smem>>
    %c0_176 = arith.constant 0 : index
    %c2_177 = arith.constant 2 : index
    %c6_178 = arith.constant 6 : index
    %277 = vector.load %arg6[%c0_176, %c2_177, %c6_178] : memref<2x22x22xf32, #tpu.memory_space<vmem>>, vector<1x16x16xf32>
    %278 = vector.shape_cast %277 : vector<1x16x16xf32> to vector<16x16xf32>
    %279 = vector.broadcast %276 : f32 to vector<16x16xf32>
    %280 = arith.mulf %279, %278 : vector<16x16xf32>
    %281 = arith.addf %275, %280 : vector<16x16xf32>
    %c21 = arith.constant 21 : index
    %282 = memref.load %arg4[%c21] : memref<98xf32, #tpu.memory_space<smem>>
    %c0_179 = arith.constant 0 : index
    %c3_180 = arith.constant 3 : index
    %c0_181 = arith.constant 0 : index
    %283 = vector.load %arg6[%c0_179, %c3_180, %c0_181] : memref<2x22x22xf32, #tpu.memory_space<vmem>>, vector<1x16x16xf32>
    %284 = vector.shape_cast %283 : vector<1x16x16xf32> to vector<16x16xf32>
    %285 = vector.broadcast %282 : f32 to vector<16x16xf32>
    %286 = arith.mulf %285, %284 : vector<16x16xf32>
    %287 = arith.addf %281, %286 : vector<16x16xf32>
    %c22 = arith.constant 22 : index
    %288 = memref.load %arg4[%c22] : memref<98xf32, #tpu.memory_space<smem>>
    %c0_182 = arith.constant 0 : index
    %c3_183 = arith.constant 3 : index
    %c1_184 = arith.constant 1 : index
    %289 = vector.load %arg6[%c0_182, %c3_183, %c1_184] : memref<2x22x22xf32, #tpu.memory_space<vmem>>, vector<1x16x16xf32>
    %290 = vector.shape_cast %289 : vector<1x16x16xf32> to vector<16x16xf32>
    %291 = vector.broadcast %288 : f32 to vector<16x16xf32>
    %292 = arith.mulf %291, %290 : vector<16x16xf32>
    %293 = arith.addf %287, %292 : vector<16x16xf32>
    %c23 = arith.constant 23 : index
    %294 = memref.load %arg4[%c23] : memref<98xf32, #tpu.memory_space<smem>>
    %c0_185 = arith.constant 0 : index
    %c3_186 = arith.constant 3 : index
    %c2_187 = arith.constant 2 : index
    %295 = vector.load %arg6[%c0_185, %c3_186, %c2_187] : memref<2x22x22xf32, #tpu.memory_space<vmem>>, vector<1x16x16xf32>
    %296 = vector.shape_cast %295 : vector<1x16x16xf32> to vector<16x16xf32>
    %297 = vector.broadcast %294 : f32 to vector<16x16xf32>
    %298 = arith.mulf %297, %296 : vector<16x16xf32>
    %299 = arith.addf %293, %298 : vector<16x16xf32>
    %c24 = arith.constant 24 : index
    %300 = memref.load %arg4[%c24] : memref<98xf32, #tpu.memory_space<smem>>
    %c0_188 = arith.constant 0 : index
    %c3_189 = arith.constant 3 : index
    %c3_190 = arith.constant 3 : index
    %301 = vector.load %arg6[%c0_188, %c3_189, %c3_190] : memref<2x22x22xf32, #tpu.memory_space<vmem>>, vector<1x16x16xf32>
    %302 = vector.shape_cast %301 : vector<1x16x16xf32> to vector<16x16xf32>
    %303 = vector.broadcast %300 : f32 to vector<16x16xf32>
    %304 = arith.mulf %303, %302 : vector<16x16xf32>
    %305 = arith.addf %299, %304 : vector<16x16xf32>
    %c25 = arith.constant 25 : index
    %306 = memref.load %arg4[%c25] : memref<98xf32, #tpu.memory_space<smem>>
    %c0_191 = arith.constant 0 : index
    %c3_192 = arith.constant 3 : index
    %c4_193 = arith.constant 4 : index
    %307 = vector.load %arg6[%c0_191, %c3_192, %c4_193] : memref<2x22x22xf32, #tpu.memory_space<vmem>>, vector<1x16x16xf32>
    %308 = vector.shape_cast %307 : vector<1x16x16xf32> to vector<16x16xf32>
    %309 = vector.broadcast %306 : f32 to vector<16x16xf32>
    %310 = arith.mulf %309, %308 : vector<16x16xf32>
    %311 = arith.addf %305, %310 : vector<16x16xf32>
    %c26 = arith.constant 26 : index
    %312 = memref.load %arg4[%c26] : memref<98xf32, #tpu.memory_space<smem>>
    %c0_194 = arith.constant 0 : index
    %c3_195 = arith.constant 3 : index
    %c5_196 = arith.constant 5 : index
    %313 = vector.load %arg6[%c0_194, %c3_195, %c5_196] : memref<2x22x22xf32, #tpu.memory_space<vmem>>, vector<1x16x16xf32>
    %314 = vector.shape_cast %313 : vector<1x16x16xf32> to vector<16x16xf32>
    %315 = vector.broadcast %312 : f32 to vector<16x16xf32>
    %316 = arith.mulf %315, %314 : vector<16x16xf32>
    %317 = arith.addf %311, %316 : vector<16x16xf32>
    %c27 = arith.constant 27 : index
    %318 = memref.load %arg4[%c27] : memref<98xf32, #tpu.memory_space<smem>>
    %c0_197 = arith.constant 0 : index
    %c3_198 = arith.constant 3 : index
    %c6_199 = arith.constant 6 : index
    %319 = vector.load %arg6[%c0_197, %c3_198, %c6_199] : memref<2x22x22xf32, #tpu.memory_space<vmem>>, vector<1x16x16xf32>
    %320 = vector.shape_cast %319 : vector<1x16x16xf32> to vector<16x16xf32>
    %321 = vector.broadcast %318 : f32 to vector<16x16xf32>
    %322 = arith.mulf %321, %320 : vector<16x16xf32>
    %323 = arith.addf %317, %322 : vector<16x16xf32>
    %c28 = arith.constant 28 : index
    %324 = memref.load %arg4[%c28] : memref<98xf32, #tpu.memory_space<smem>>
    %c0_200 = arith.constant 0 : index
    %c4_201 = arith.constant 4 : index
    %c0_202 = arith.constant 0 : index
    %325 = vector.load %arg6[%c0_200, %c4_201, %c0_202] : memref<2x22x22xf32, #tpu.memory_space<vmem>>, vector<1x16x16xf32>
    %326 = vector.shape_cast %325 : vector<1x16x16xf32> to vector<16x16xf32>
    %327 = vector.broadcast %324 : f32 to vector<16x16xf32>
    %328 = arith.mulf %327, %326 : vector<16x16xf32>
    %329 = arith.addf %323, %328 : vector<16x16xf32>
    %c29 = arith.constant 29 : index
    %330 = memref.load %arg4[%c29] : memref<98xf32, #tpu.memory_space<smem>>
    %c0_203 = arith.constant 0 : index
    %c4_204 = arith.constant 4 : index
    %c1_205 = arith.constant 1 : index
    %331 = vector.load %arg6[%c0_203, %c4_204, %c1_205] : memref<2x22x22xf32, #tpu.memory_space<vmem>>, vector<1x16x16xf32>
    %332 = vector.shape_cast %331 : vector<1x16x16xf32> to vector<16x16xf32>
    %333 = vector.broadcast %330 : f32 to vector<16x16xf32>
    %334 = arith.mulf %333, %332 : vector<16x16xf32>
    %335 = arith.addf %329, %334 : vector<16x16xf32>
    %c30 = arith.constant 30 : index
    %336 = memref.load %arg4[%c30] : memref<98xf32, #tpu.memory_space<smem>>
    %c0_206 = arith.constant 0 : index
    %c4_207 = arith.constant 4 : index
    %c2_208 = arith.constant 2 : index
    %337 = vector.load %arg6[%c0_206, %c4_207, %c2_208] : memref<2x22x22xf32, #tpu.memory_space<vmem>>, vector<1x16x16xf32>
    %338 = vector.shape_cast %337 : vector<1x16x16xf32> to vector<16x16xf32>
    %339 = vector.broadcast %336 : f32 to vector<16x16xf32>
    %340 = arith.mulf %339, %338 : vector<16x16xf32>
    %341 = arith.addf %335, %340 : vector<16x16xf32>
    %c31 = arith.constant 31 : index
    %342 = memref.load %arg4[%c31] : memref<98xf32, #tpu.memory_space<smem>>
    %c0_209 = arith.constant 0 : index
    %c4_210 = arith.constant 4 : index
    %c3_211 = arith.constant 3 : index
    %343 = vector.load %arg6[%c0_209, %c4_210, %c3_211] : memref<2x22x22xf32, #tpu.memory_space<vmem>>, vector<1x16x16xf32>
    %344 = vector.shape_cast %343 : vector<1x16x16xf32> to vector<16x16xf32>
    %345 = vector.broadcast %342 : f32 to vector<16x16xf32>
    %346 = arith.mulf %345, %344 : vector<16x16xf32>
    %347 = arith.addf %341, %346 : vector<16x16xf32>
    %c32 = arith.constant 32 : index
    %348 = memref.load %arg4[%c32] : memref<98xf32, #tpu.memory_space<smem>>
    %c0_212 = arith.constant 0 : index
    %c4_213 = arith.constant 4 : index
    %c4_214 = arith.constant 4 : index
    %349 = vector.load %arg6[%c0_212, %c4_213, %c4_214] : memref<2x22x22xf32, #tpu.memory_space<vmem>>, vector<1x16x16xf32>
    %350 = vector.shape_cast %349 : vector<1x16x16xf32> to vector<16x16xf32>
    %351 = vector.broadcast %348 : f32 to vector<16x16xf32>
    %352 = arith.mulf %351, %350 : vector<16x16xf32>
    %353 = arith.addf %347, %352 : vector<16x16xf32>
    %c33 = arith.constant 33 : index
    %354 = memref.load %arg4[%c33] : memref<98xf32, #tpu.memory_space<smem>>
    %c0_215 = arith.constant 0 : index
    %c4_216 = arith.constant 4 : index
    %c5_217 = arith.constant 5 : index
    %355 = vector.load %arg6[%c0_215, %c4_216, %c5_217] : memref<2x22x22xf32, #tpu.memory_space<vmem>>, vector<1x16x16xf32>
    %356 = vector.shape_cast %355 : vector<1x16x16xf32> to vector<16x16xf32>
    %357 = vector.broadcast %354 : f32 to vector<16x16xf32>
    %358 = arith.mulf %357, %356 : vector<16x16xf32>
    %359 = arith.addf %353, %358 : vector<16x16xf32>
    %c34 = arith.constant 34 : index
    %360 = memref.load %arg4[%c34] : memref<98xf32, #tpu.memory_space<smem>>
    %c0_218 = arith.constant 0 : index
    %c4_219 = arith.constant 4 : index
    %c6_220 = arith.constant 6 : index
    %361 = vector.load %arg6[%c0_218, %c4_219, %c6_220] : memref<2x22x22xf32, #tpu.memory_space<vmem>>, vector<1x16x16xf32>
    %362 = vector.shape_cast %361 : vector<1x16x16xf32> to vector<16x16xf32>
    %363 = vector.broadcast %360 : f32 to vector<16x16xf32>
    %364 = arith.mulf %363, %362 : vector<16x16xf32>
    %365 = arith.addf %359, %364 : vector<16x16xf32>
    %c35 = arith.constant 35 : index
    %366 = memref.load %arg4[%c35] : memref<98xf32, #tpu.memory_space<smem>>
    %c0_221 = arith.constant 0 : index
    %c5_222 = arith.constant 5 : index
    %c0_223 = arith.constant 0 : index
    %367 = vector.load %arg6[%c0_221, %c5_222, %c0_223] : memref<2x22x22xf32, #tpu.memory_space<vmem>>, vector<1x16x16xf32>
    %368 = vector.shape_cast %367 : vector<1x16x16xf32> to vector<16x16xf32>
    %369 = vector.broadcast %366 : f32 to vector<16x16xf32>
    %370 = arith.mulf %369, %368 : vector<16x16xf32>
    %371 = arith.addf %365, %370 : vector<16x16xf32>
    %c36 = arith.constant 36 : index
    %372 = memref.load %arg4[%c36] : memref<98xf32, #tpu.memory_space<smem>>
    %c0_224 = arith.constant 0 : index
    %c5_225 = arith.constant 5 : index
    %c1_226 = arith.constant 1 : index
    %373 = vector.load %arg6[%c0_224, %c5_225, %c1_226] : memref<2x22x22xf32, #tpu.memory_space<vmem>>, vector<1x16x16xf32>
    %374 = vector.shape_cast %373 : vector<1x16x16xf32> to vector<16x16xf32>
    %375 = vector.broadcast %372 : f32 to vector<16x16xf32>
    %376 = arith.mulf %375, %374 : vector<16x16xf32>
    %377 = arith.addf %371, %376 : vector<16x16xf32>
    %c37 = arith.constant 37 : index
    %378 = memref.load %arg4[%c37] : memref<98xf32, #tpu.memory_space<smem>>
    %c0_227 = arith.constant 0 : index
    %c5_228 = arith.constant 5 : index
    %c2_229 = arith.constant 2 : index
    %379 = vector.load %arg6[%c0_227, %c5_228, %c2_229] : memref<2x22x22xf32, #tpu.memory_space<vmem>>, vector<1x16x16xf32>
    %380 = vector.shape_cast %379 : vector<1x16x16xf32> to vector<16x16xf32>
    %381 = vector.broadcast %378 : f32 to vector<16x16xf32>
    %382 = arith.mulf %381, %380 : vector<16x16xf32>
    %383 = arith.addf %377, %382 : vector<16x16xf32>
    %c38 = arith.constant 38 : index
    %384 = memref.load %arg4[%c38] : memref<98xf32, #tpu.memory_space<smem>>
    %c0_230 = arith.constant 0 : index
    %c5_231 = arith.constant 5 : index
    %c3_232 = arith.constant 3 : index
    %385 = vector.load %arg6[%c0_230, %c5_231, %c3_232] : memref<2x22x22xf32, #tpu.memory_space<vmem>>, vector<1x16x16xf32>
    %386 = vector.shape_cast %385 : vector<1x16x16xf32> to vector<16x16xf32>
    %387 = vector.broadcast %384 : f32 to vector<16x16xf32>
    %388 = arith.mulf %387, %386 : vector<16x16xf32>
    %389 = arith.addf %383, %388 : vector<16x16xf32>
    %c39 = arith.constant 39 : index
    %390 = memref.load %arg4[%c39] : memref<98xf32, #tpu.memory_space<smem>>
    %c0_233 = arith.constant 0 : index
    %c5_234 = arith.constant 5 : index
    %c4_235 = arith.constant 4 : index
    %391 = vector.load %arg6[%c0_233, %c5_234, %c4_235] : memref<2x22x22xf32, #tpu.memory_space<vmem>>, vector<1x16x16xf32>
    %392 = vector.shape_cast %391 : vector<1x16x16xf32> to vector<16x16xf32>
    %393 = vector.broadcast %390 : f32 to vector<16x16xf32>
    %394 = arith.mulf %393, %392 : vector<16x16xf32>
    %395 = arith.addf %389, %394 : vector<16x16xf32>
    %c40 = arith.constant 40 : index
    %396 = memref.load %arg4[%c40] : memref<98xf32, #tpu.memory_space<smem>>
    %c0_236 = arith.constant 0 : index
    %c5_237 = arith.constant 5 : index
    %c5_238 = arith.constant 5 : index
    %397 = vector.load %arg6[%c0_236, %c5_237, %c5_238] : memref<2x22x22xf32, #tpu.memory_space<vmem>>, vector<1x16x16xf32>
    %398 = vector.shape_cast %397 : vector<1x16x16xf32> to vector<16x16xf32>
    %399 = vector.broadcast %396 : f32 to vector<16x16xf32>
    %400 = arith.mulf %399, %398 : vector<16x16xf32>
    %401 = arith.addf %395, %400 : vector<16x16xf32>
    %c41 = arith.constant 41 : index
    %402 = memref.load %arg4[%c41] : memref<98xf32, #tpu.memory_space<smem>>
    %c0_239 = arith.constant 0 : index
    %c5_240 = arith.constant 5 : index
    %c6_241 = arith.constant 6 : index
    %403 = vector.load %arg6[%c0_239, %c5_240, %c6_241] : memref<2x22x22xf32, #tpu.memory_space<vmem>>, vector<1x16x16xf32>
    %404 = vector.shape_cast %403 : vector<1x16x16xf32> to vector<16x16xf32>
    %405 = vector.broadcast %402 : f32 to vector<16x16xf32>
    %406 = arith.mulf %405, %404 : vector<16x16xf32>
    %407 = arith.addf %401, %406 : vector<16x16xf32>
    %c42 = arith.constant 42 : index
    %408 = memref.load %arg4[%c42] : memref<98xf32, #tpu.memory_space<smem>>
    %c0_242 = arith.constant 0 : index
    %c6_243 = arith.constant 6 : index
    %c0_244 = arith.constant 0 : index
    %409 = vector.load %arg6[%c0_242, %c6_243, %c0_244] : memref<2x22x22xf32, #tpu.memory_space<vmem>>, vector<1x16x16xf32>
    %410 = vector.shape_cast %409 : vector<1x16x16xf32> to vector<16x16xf32>
    %411 = vector.broadcast %408 : f32 to vector<16x16xf32>
    %412 = arith.mulf %411, %410 : vector<16x16xf32>
    %413 = arith.addf %407, %412 : vector<16x16xf32>
    %c43 = arith.constant 43 : index
    %414 = memref.load %arg4[%c43] : memref<98xf32, #tpu.memory_space<smem>>
    %c0_245 = arith.constant 0 : index
    %c6_246 = arith.constant 6 : index
    %c1_247 = arith.constant 1 : index
    %415 = vector.load %arg6[%c0_245, %c6_246, %c1_247] : memref<2x22x22xf32, #tpu.memory_space<vmem>>, vector<1x16x16xf32>
    %416 = vector.shape_cast %415 : vector<1x16x16xf32> to vector<16x16xf32>
    %417 = vector.broadcast %414 : f32 to vector<16x16xf32>
    %418 = arith.mulf %417, %416 : vector<16x16xf32>
    %419 = arith.addf %413, %418 : vector<16x16xf32>
    %c44 = arith.constant 44 : index
    %420 = memref.load %arg4[%c44] : memref<98xf32, #tpu.memory_space<smem>>
    %c0_248 = arith.constant 0 : index
    %c6_249 = arith.constant 6 : index
    %c2_250 = arith.constant 2 : index
    %421 = vector.load %arg6[%c0_248, %c6_249, %c2_250] : memref<2x22x22xf32, #tpu.memory_space<vmem>>, vector<1x16x16xf32>
    %422 = vector.shape_cast %421 : vector<1x16x16xf32> to vector<16x16xf32>
    %423 = vector.broadcast %420 : f32 to vector<16x16xf32>
    %424 = arith.mulf %423, %422 : vector<16x16xf32>
    %425 = arith.addf %419, %424 : vector<16x16xf32>
    %c45 = arith.constant 45 : index
    %426 = memref.load %arg4[%c45] : memref<98xf32, #tpu.memory_space<smem>>
    %c0_251 = arith.constant 0 : index
    %c6_252 = arith.constant 6 : index
    %c3_253 = arith.constant 3 : index
    %427 = vector.load %arg6[%c0_251, %c6_252, %c3_253] : memref<2x22x22xf32, #tpu.memory_space<vmem>>, vector<1x16x16xf32>
    %428 = vector.shape_cast %427 : vector<1x16x16xf32> to vector<16x16xf32>
    %429 = vector.broadcast %426 : f32 to vector<16x16xf32>
    %430 = arith.mulf %429, %428 : vector<16x16xf32>
    %431 = arith.addf %425, %430 : vector<16x16xf32>
    %c46 = arith.constant 46 : index
    %432 = memref.load %arg4[%c46] : memref<98xf32, #tpu.memory_space<smem>>
    %c0_254 = arith.constant 0 : index
    %c6_255 = arith.constant 6 : index
    %c4_256 = arith.constant 4 : index
    %433 = vector.load %arg6[%c0_254, %c6_255, %c4_256] : memref<2x22x22xf32, #tpu.memory_space<vmem>>, vector<1x16x16xf32>
    %434 = vector.shape_cast %433 : vector<1x16x16xf32> to vector<16x16xf32>
    %435 = vector.broadcast %432 : f32 to vector<16x16xf32>
    %436 = arith.mulf %435, %434 : vector<16x16xf32>
    %437 = arith.addf %431, %436 : vector<16x16xf32>
    %c47 = arith.constant 47 : index
    %438 = memref.load %arg4[%c47] : memref<98xf32, #tpu.memory_space<smem>>
    %c0_257 = arith.constant 0 : index
    %c6_258 = arith.constant 6 : index
    %c5_259 = arith.constant 5 : index
    %439 = vector.load %arg6[%c0_257, %c6_258, %c5_259] : memref<2x22x22xf32, #tpu.memory_space<vmem>>, vector<1x16x16xf32>
    %440 = vector.shape_cast %439 : vector<1x16x16xf32> to vector<16x16xf32>
    %441 = vector.broadcast %438 : f32 to vector<16x16xf32>
    %442 = arith.mulf %441, %440 : vector<16x16xf32>
    %443 = arith.addf %437, %442 : vector<16x16xf32>
    %c48 = arith.constant 48 : index
    %444 = memref.load %arg4[%c48] : memref<98xf32, #tpu.memory_space<smem>>
    %c0_260 = arith.constant 0 : index
    %c6_261 = arith.constant 6 : index
    %c6_262 = arith.constant 6 : index
    %445 = vector.load %arg6[%c0_260, %c6_261, %c6_262] : memref<2x22x22xf32, #tpu.memory_space<vmem>>, vector<1x16x16xf32>
    %446 = vector.shape_cast %445 : vector<1x16x16xf32> to vector<16x16xf32>
    %447 = vector.broadcast %444 : f32 to vector<16x16xf32>
    %448 = arith.mulf %447, %446 : vector<16x16xf32>
    %449 = arith.addf %443, %448 : vector<16x16xf32>
    %c49 = arith.constant 49 : index
    %450 = memref.load %arg4[%c49] : memref<98xf32, #tpu.memory_space<smem>>
    %c1_263 = arith.constant 1 : index
    %c0_264 = arith.constant 0 : index
    %c0_265 = arith.constant 0 : index
    %451 = vector.load %arg6[%c1_263, %c0_264, %c0_265] : memref<2x22x22xf32, #tpu.memory_space<vmem>>, vector<1x16x16xf32>
    %452 = vector.shape_cast %451 : vector<1x16x16xf32> to vector<16x16xf32>
    %453 = vector.broadcast %450 : f32 to vector<16x16xf32>
    %454 = arith.mulf %453, %452 : vector<16x16xf32>
    %455 = arith.addf %449, %454 : vector<16x16xf32>
    %c50 = arith.constant 50 : index
    %456 = memref.load %arg4[%c50] : memref<98xf32, #tpu.memory_space<smem>>
    %c1_266 = arith.constant 1 : index
    %c0_267 = arith.constant 0 : index
    %c1_268 = arith.constant 1 : index
    %457 = vector.load %arg6[%c1_266, %c0_267, %c1_268] : memref<2x22x22xf32, #tpu.memory_space<vmem>>, vector<1x16x16xf32>
    %458 = vector.shape_cast %457 : vector<1x16x16xf32> to vector<16x16xf32>
    %459 = vector.broadcast %456 : f32 to vector<16x16xf32>
    %460 = arith.mulf %459, %458 : vector<16x16xf32>
    %461 = arith.addf %455, %460 : vector<16x16xf32>
    %c51 = arith.constant 51 : index
    %462 = memref.load %arg4[%c51] : memref<98xf32, #tpu.memory_space<smem>>
    %c1_269 = arith.constant 1 : index
    %c0_270 = arith.constant 0 : index
    %c2_271 = arith.constant 2 : index
    %463 = vector.load %arg6[%c1_269, %c0_270, %c2_271] : memref<2x22x22xf32, #tpu.memory_space<vmem>>, vector<1x16x16xf32>
    %464 = vector.shape_cast %463 : vector<1x16x16xf32> to vector<16x16xf32>
    %465 = vector.broadcast %462 : f32 to vector<16x16xf32>
    %466 = arith.mulf %465, %464 : vector<16x16xf32>
    %467 = arith.addf %461, %466 : vector<16x16xf32>
    %c52 = arith.constant 52 : index
    %468 = memref.load %arg4[%c52] : memref<98xf32, #tpu.memory_space<smem>>
    %c1_272 = arith.constant 1 : index
    %c0_273 = arith.constant 0 : index
    %c3_274 = arith.constant 3 : index
    %469 = vector.load %arg6[%c1_272, %c0_273, %c3_274] : memref<2x22x22xf32, #tpu.memory_space<vmem>>, vector<1x16x16xf32>
    %470 = vector.shape_cast %469 : vector<1x16x16xf32> to vector<16x16xf32>
    %471 = vector.broadcast %468 : f32 to vector<16x16xf32>
    %472 = arith.mulf %471, %470 : vector<16x16xf32>
    %473 = arith.addf %467, %472 : vector<16x16xf32>
    %c53 = arith.constant 53 : index
    %474 = memref.load %arg4[%c53] : memref<98xf32, #tpu.memory_space<smem>>
    %c1_275 = arith.constant 1 : index
    %c0_276 = arith.constant 0 : index
    %c4_277 = arith.constant 4 : index
    %475 = vector.load %arg6[%c1_275, %c0_276, %c4_277] : memref<2x22x22xf32, #tpu.memory_space<vmem>>, vector<1x16x16xf32>
    %476 = vector.shape_cast %475 : vector<1x16x16xf32> to vector<16x16xf32>
    %477 = vector.broadcast %474 : f32 to vector<16x16xf32>
    %478 = arith.mulf %477, %476 : vector<16x16xf32>
    %479 = arith.addf %473, %478 : vector<16x16xf32>
    %c54 = arith.constant 54 : index
    %480 = memref.load %arg4[%c54] : memref<98xf32, #tpu.memory_space<smem>>
    %c1_278 = arith.constant 1 : index
    %c0_279 = arith.constant 0 : index
    %c5_280 = arith.constant 5 : index
    %481 = vector.load %arg6[%c1_278, %c0_279, %c5_280] : memref<2x22x22xf32, #tpu.memory_space<vmem>>, vector<1x16x16xf32>
    %482 = vector.shape_cast %481 : vector<1x16x16xf32> to vector<16x16xf32>
    %483 = vector.broadcast %480 : f32 to vector<16x16xf32>
    %484 = arith.mulf %483, %482 : vector<16x16xf32>
    %485 = arith.addf %479, %484 : vector<16x16xf32>
    %c55 = arith.constant 55 : index
    %486 = memref.load %arg4[%c55] : memref<98xf32, #tpu.memory_space<smem>>
    %c1_281 = arith.constant 1 : index
    %c0_282 = arith.constant 0 : index
    %c6_283 = arith.constant 6 : index
    %487 = vector.load %arg6[%c1_281, %c0_282, %c6_283] : memref<2x22x22xf32, #tpu.memory_space<vmem>>, vector<1x16x16xf32>
    %488 = vector.shape_cast %487 : vector<1x16x16xf32> to vector<16x16xf32>
    %489 = vector.broadcast %486 : f32 to vector<16x16xf32>
    %490 = arith.mulf %489, %488 : vector<16x16xf32>
    %491 = arith.addf %485, %490 : vector<16x16xf32>
    %c56 = arith.constant 56 : index
    %492 = memref.load %arg4[%c56] : memref<98xf32, #tpu.memory_space<smem>>
    %c1_284 = arith.constant 1 : index
    %c1_285 = arith.constant 1 : index
    %c0_286 = arith.constant 0 : index
    %493 = vector.load %arg6[%c1_284, %c1_285, %c0_286] : memref<2x22x22xf32, #tpu.memory_space<vmem>>, vector<1x16x16xf32>
    %494 = vector.shape_cast %493 : vector<1x16x16xf32> to vector<16x16xf32>
    %495 = vector.broadcast %492 : f32 to vector<16x16xf32>
    %496 = arith.mulf %495, %494 : vector<16x16xf32>
    %497 = arith.addf %491, %496 : vector<16x16xf32>
    %c57 = arith.constant 57 : index
    %498 = memref.load %arg4[%c57] : memref<98xf32, #tpu.memory_space<smem>>
    %c1_287 = arith.constant 1 : index
    %c1_288 = arith.constant 1 : index
    %c1_289 = arith.constant 1 : index
    %499 = vector.load %arg6[%c1_287, %c1_288, %c1_289] : memref<2x22x22xf32, #tpu.memory_space<vmem>>, vector<1x16x16xf32>
    %500 = vector.shape_cast %499 : vector<1x16x16xf32> to vector<16x16xf32>
    %501 = vector.broadcast %498 : f32 to vector<16x16xf32>
    %502 = arith.mulf %501, %500 : vector<16x16xf32>
    %503 = arith.addf %497, %502 : vector<16x16xf32>
    %c58 = arith.constant 58 : index
    %504 = memref.load %arg4[%c58] : memref<98xf32, #tpu.memory_space<smem>>
    %c1_290 = arith.constant 1 : index
    %c1_291 = arith.constant 1 : index
    %c2_292 = arith.constant 2 : index
    %505 = vector.load %arg6[%c1_290, %c1_291, %c2_292] : memref<2x22x22xf32, #tpu.memory_space<vmem>>, vector<1x16x16xf32>
    %506 = vector.shape_cast %505 : vector<1x16x16xf32> to vector<16x16xf32>
    %507 = vector.broadcast %504 : f32 to vector<16x16xf32>
    %508 = arith.mulf %507, %506 : vector<16x16xf32>
    %509 = arith.addf %503, %508 : vector<16x16xf32>
    %c59 = arith.constant 59 : index
    %510 = memref.load %arg4[%c59] : memref<98xf32, #tpu.memory_space<smem>>
    %c1_293 = arith.constant 1 : index
    %c1_294 = arith.constant 1 : index
    %c3_295 = arith.constant 3 : index
    %511 = vector.load %arg6[%c1_293, %c1_294, %c3_295] : memref<2x22x22xf32, #tpu.memory_space<vmem>>, vector<1x16x16xf32>
    %512 = vector.shape_cast %511 : vector<1x16x16xf32> to vector<16x16xf32>
    %513 = vector.broadcast %510 : f32 to vector<16x16xf32>
    %514 = arith.mulf %513, %512 : vector<16x16xf32>
    %515 = arith.addf %509, %514 : vector<16x16xf32>
    %c60 = arith.constant 60 : index
    %516 = memref.load %arg4[%c60] : memref<98xf32, #tpu.memory_space<smem>>
    %c1_296 = arith.constant 1 : index
    %c1_297 = arith.constant 1 : index
    %c4_298 = arith.constant 4 : index
    %517 = vector.load %arg6[%c1_296, %c1_297, %c4_298] : memref<2x22x22xf32, #tpu.memory_space<vmem>>, vector<1x16x16xf32>
    %518 = vector.shape_cast %517 : vector<1x16x16xf32> to vector<16x16xf32>
    %519 = vector.broadcast %516 : f32 to vector<16x16xf32>
    %520 = arith.mulf %519, %518 : vector<16x16xf32>
    %521 = arith.addf %515, %520 : vector<16x16xf32>
    %c61 = arith.constant 61 : index
    %522 = memref.load %arg4[%c61] : memref<98xf32, #tpu.memory_space<smem>>
    %c1_299 = arith.constant 1 : index
    %c1_300 = arith.constant 1 : index
    %c5_301 = arith.constant 5 : index
    %523 = vector.load %arg6[%c1_299, %c1_300, %c5_301] : memref<2x22x22xf32, #tpu.memory_space<vmem>>, vector<1x16x16xf32>
    %524 = vector.shape_cast %523 : vector<1x16x16xf32> to vector<16x16xf32>
    %525 = vector.broadcast %522 : f32 to vector<16x16xf32>
    %526 = arith.mulf %525, %524 : vector<16x16xf32>
    %527 = arith.addf %521, %526 : vector<16x16xf32>
    %c62 = arith.constant 62 : index
    %528 = memref.load %arg4[%c62] : memref<98xf32, #tpu.memory_space<smem>>
    %c1_302 = arith.constant 1 : index
    %c1_303 = arith.constant 1 : index
    %c6_304 = arith.constant 6 : index
    %529 = vector.load %arg6[%c1_302, %c1_303, %c6_304] : memref<2x22x22xf32, #tpu.memory_space<vmem>>, vector<1x16x16xf32>
    %530 = vector.shape_cast %529 : vector<1x16x16xf32> to vector<16x16xf32>
    %531 = vector.broadcast %528 : f32 to vector<16x16xf32>
    %532 = arith.mulf %531, %530 : vector<16x16xf32>
    %533 = arith.addf %527, %532 : vector<16x16xf32>
    %c63 = arith.constant 63 : index
    %534 = memref.load %arg4[%c63] : memref<98xf32, #tpu.memory_space<smem>>
    %c1_305 = arith.constant 1 : index
    %c2_306 = arith.constant 2 : index
    %c0_307 = arith.constant 0 : index
    %535 = vector.load %arg6[%c1_305, %c2_306, %c0_307] : memref<2x22x22xf32, #tpu.memory_space<vmem>>, vector<1x16x16xf32>
    %536 = vector.shape_cast %535 : vector<1x16x16xf32> to vector<16x16xf32>
    %537 = vector.broadcast %534 : f32 to vector<16x16xf32>
    %538 = arith.mulf %537, %536 : vector<16x16xf32>
    %539 = arith.addf %533, %538 : vector<16x16xf32>
    %c64 = arith.constant 64 : index
    %540 = memref.load %arg4[%c64] : memref<98xf32, #tpu.memory_space<smem>>
    %c1_308 = arith.constant 1 : index
    %c2_309 = arith.constant 2 : index
    %c1_310 = arith.constant 1 : index
    %541 = vector.load %arg6[%c1_308, %c2_309, %c1_310] : memref<2x22x22xf32, #tpu.memory_space<vmem>>, vector<1x16x16xf32>
    %542 = vector.shape_cast %541 : vector<1x16x16xf32> to vector<16x16xf32>
    %543 = vector.broadcast %540 : f32 to vector<16x16xf32>
    %544 = arith.mulf %543, %542 : vector<16x16xf32>
    %545 = arith.addf %539, %544 : vector<16x16xf32>
    %c65 = arith.constant 65 : index
    %546 = memref.load %arg4[%c65] : memref<98xf32, #tpu.memory_space<smem>>
    %c1_311 = arith.constant 1 : index
    %c2_312 = arith.constant 2 : index
    %c2_313 = arith.constant 2 : index
    %547 = vector.load %arg6[%c1_311, %c2_312, %c2_313] : memref<2x22x22xf32, #tpu.memory_space<vmem>>, vector<1x16x16xf32>
    %548 = vector.shape_cast %547 : vector<1x16x16xf32> to vector<16x16xf32>
    %549 = vector.broadcast %546 : f32 to vector<16x16xf32>
    %550 = arith.mulf %549, %548 : vector<16x16xf32>
    %551 = arith.addf %545, %550 : vector<16x16xf32>
    %c66 = arith.constant 66 : index
    %552 = memref.load %arg4[%c66] : memref<98xf32, #tpu.memory_space<smem>>
    %c1_314 = arith.constant 1 : index
    %c2_315 = arith.constant 2 : index
    %c3_316 = arith.constant 3 : index
    %553 = vector.load %arg6[%c1_314, %c2_315, %c3_316] : memref<2x22x22xf32, #tpu.memory_space<vmem>>, vector<1x16x16xf32>
    %554 = vector.shape_cast %553 : vector<1x16x16xf32> to vector<16x16xf32>
    %555 = vector.broadcast %552 : f32 to vector<16x16xf32>
    %556 = arith.mulf %555, %554 : vector<16x16xf32>
    %557 = arith.addf %551, %556 : vector<16x16xf32>
    %c67 = arith.constant 67 : index
    %558 = memref.load %arg4[%c67] : memref<98xf32, #tpu.memory_space<smem>>
    %c1_317 = arith.constant 1 : index
    %c2_318 = arith.constant 2 : index
    %c4_319 = arith.constant 4 : index
    %559 = vector.load %arg6[%c1_317, %c2_318, %c4_319] : memref<2x22x22xf32, #tpu.memory_space<vmem>>, vector<1x16x16xf32>
    %560 = vector.shape_cast %559 : vector<1x16x16xf32> to vector<16x16xf32>
    %561 = vector.broadcast %558 : f32 to vector<16x16xf32>
    %562 = arith.mulf %561, %560 : vector<16x16xf32>
    %563 = arith.addf %557, %562 : vector<16x16xf32>
    %c68 = arith.constant 68 : index
    %564 = memref.load %arg4[%c68] : memref<98xf32, #tpu.memory_space<smem>>
    %c1_320 = arith.constant 1 : index
    %c2_321 = arith.constant 2 : index
    %c5_322 = arith.constant 5 : index
    %565 = vector.load %arg6[%c1_320, %c2_321, %c5_322] : memref<2x22x22xf32, #tpu.memory_space<vmem>>, vector<1x16x16xf32>
    %566 = vector.shape_cast %565 : vector<1x16x16xf32> to vector<16x16xf32>
    %567 = vector.broadcast %564 : f32 to vector<16x16xf32>
    %568 = arith.mulf %567, %566 : vector<16x16xf32>
    %569 = arith.addf %563, %568 : vector<16x16xf32>
    %c69 = arith.constant 69 : index
    %570 = memref.load %arg4[%c69] : memref<98xf32, #tpu.memory_space<smem>>
    %c1_323 = arith.constant 1 : index
    %c2_324 = arith.constant 2 : index
    %c6_325 = arith.constant 6 : index
    %571 = vector.load %arg6[%c1_323, %c2_324, %c6_325] : memref<2x22x22xf32, #tpu.memory_space<vmem>>, vector<1x16x16xf32>
    %572 = vector.shape_cast %571 : vector<1x16x16xf32> to vector<16x16xf32>
    %573 = vector.broadcast %570 : f32 to vector<16x16xf32>
    %574 = arith.mulf %573, %572 : vector<16x16xf32>
    %575 = arith.addf %569, %574 : vector<16x16xf32>
    %c70 = arith.constant 70 : index
    %576 = memref.load %arg4[%c70] : memref<98xf32, #tpu.memory_space<smem>>
    %c1_326 = arith.constant 1 : index
    %c3_327 = arith.constant 3 : index
    %c0_328 = arith.constant 0 : index
    %577 = vector.load %arg6[%c1_326, %c3_327, %c0_328] : memref<2x22x22xf32, #tpu.memory_space<vmem>>, vector<1x16x16xf32>
    %578 = vector.shape_cast %577 : vector<1x16x16xf32> to vector<16x16xf32>
    %579 = vector.broadcast %576 : f32 to vector<16x16xf32>
    %580 = arith.mulf %579, %578 : vector<16x16xf32>
    %581 = arith.addf %575, %580 : vector<16x16xf32>
    %c71 = arith.constant 71 : index
    %582 = memref.load %arg4[%c71] : memref<98xf32, #tpu.memory_space<smem>>
    %c1_329 = arith.constant 1 : index
    %c3_330 = arith.constant 3 : index
    %c1_331 = arith.constant 1 : index
    %583 = vector.load %arg6[%c1_329, %c3_330, %c1_331] : memref<2x22x22xf32, #tpu.memory_space<vmem>>, vector<1x16x16xf32>
    %584 = vector.shape_cast %583 : vector<1x16x16xf32> to vector<16x16xf32>
    %585 = vector.broadcast %582 : f32 to vector<16x16xf32>
    %586 = arith.mulf %585, %584 : vector<16x16xf32>
    %587 = arith.addf %581, %586 : vector<16x16xf32>
    %c72 = arith.constant 72 : index
    %588 = memref.load %arg4[%c72] : memref<98xf32, #tpu.memory_space<smem>>
    %c1_332 = arith.constant 1 : index
    %c3_333 = arith.constant 3 : index
    %c2_334 = arith.constant 2 : index
    %589 = vector.load %arg6[%c1_332, %c3_333, %c2_334] : memref<2x22x22xf32, #tpu.memory_space<vmem>>, vector<1x16x16xf32>
    %590 = vector.shape_cast %589 : vector<1x16x16xf32> to vector<16x16xf32>
    %591 = vector.broadcast %588 : f32 to vector<16x16xf32>
    %592 = arith.mulf %591, %590 : vector<16x16xf32>
    %593 = arith.addf %587, %592 : vector<16x16xf32>
    %c73 = arith.constant 73 : index
    %594 = memref.load %arg4[%c73] : memref<98xf32, #tpu.memory_space<smem>>
    %c1_335 = arith.constant 1 : index
    %c3_336 = arith.constant 3 : index
    %c3_337 = arith.constant 3 : index
    %595 = vector.load %arg6[%c1_335, %c3_336, %c3_337] : memref<2x22x22xf32, #tpu.memory_space<vmem>>, vector<1x16x16xf32>
    %596 = vector.shape_cast %595 : vector<1x16x16xf32> to vector<16x16xf32>
    %597 = vector.broadcast %594 : f32 to vector<16x16xf32>
    %598 = arith.mulf %597, %596 : vector<16x16xf32>
    %599 = arith.addf %593, %598 : vector<16x16xf32>
    %c74 = arith.constant 74 : index
    %600 = memref.load %arg4[%c74] : memref<98xf32, #tpu.memory_space<smem>>
    %c1_338 = arith.constant 1 : index
    %c3_339 = arith.constant 3 : index
    %c4_340 = arith.constant 4 : index
    %601 = vector.load %arg6[%c1_338, %c3_339, %c4_340] : memref<2x22x22xf32, #tpu.memory_space<vmem>>, vector<1x16x16xf32>
    %602 = vector.shape_cast %601 : vector<1x16x16xf32> to vector<16x16xf32>
    %603 = vector.broadcast %600 : f32 to vector<16x16xf32>
    %604 = arith.mulf %603, %602 : vector<16x16xf32>
    %605 = arith.addf %599, %604 : vector<16x16xf32>
    %c75 = arith.constant 75 : index
    %606 = memref.load %arg4[%c75] : memref<98xf32, #tpu.memory_space<smem>>
    %c1_341 = arith.constant 1 : index
    %c3_342 = arith.constant 3 : index
    %c5_343 = arith.constant 5 : index
    %607 = vector.load %arg6[%c1_341, %c3_342, %c5_343] : memref<2x22x22xf32, #tpu.memory_space<vmem>>, vector<1x16x16xf32>
    %608 = vector.shape_cast %607 : vector<1x16x16xf32> to vector<16x16xf32>
    %609 = vector.broadcast %606 : f32 to vector<16x16xf32>
    %610 = arith.mulf %609, %608 : vector<16x16xf32>
    %611 = arith.addf %605, %610 : vector<16x16xf32>
    %c76 = arith.constant 76 : index
    %612 = memref.load %arg4[%c76] : memref<98xf32, #tpu.memory_space<smem>>
    %c1_344 = arith.constant 1 : index
    %c3_345 = arith.constant 3 : index
    %c6_346 = arith.constant 6 : index
    %613 = vector.load %arg6[%c1_344, %c3_345, %c6_346] : memref<2x22x22xf32, #tpu.memory_space<vmem>>, vector<1x16x16xf32>
    %614 = vector.shape_cast %613 : vector<1x16x16xf32> to vector<16x16xf32>
    %615 = vector.broadcast %612 : f32 to vector<16x16xf32>
    %616 = arith.mulf %615, %614 : vector<16x16xf32>
    %617 = arith.addf %611, %616 : vector<16x16xf32>
    %c77 = arith.constant 77 : index
    %618 = memref.load %arg4[%c77] : memref<98xf32, #tpu.memory_space<smem>>
    %c1_347 = arith.constant 1 : index
    %c4_348 = arith.constant 4 : index
    %c0_349 = arith.constant 0 : index
    %619 = vector.load %arg6[%c1_347, %c4_348, %c0_349] : memref<2x22x22xf32, #tpu.memory_space<vmem>>, vector<1x16x16xf32>
    %620 = vector.shape_cast %619 : vector<1x16x16xf32> to vector<16x16xf32>
    %621 = vector.broadcast %618 : f32 to vector<16x16xf32>
    %622 = arith.mulf %621, %620 : vector<16x16xf32>
    %623 = arith.addf %617, %622 : vector<16x16xf32>
    %c78 = arith.constant 78 : index
    %624 = memref.load %arg4[%c78] : memref<98xf32, #tpu.memory_space<smem>>
    %c1_350 = arith.constant 1 : index
    %c4_351 = arith.constant 4 : index
    %c1_352 = arith.constant 1 : index
    %625 = vector.load %arg6[%c1_350, %c4_351, %c1_352] : memref<2x22x22xf32, #tpu.memory_space<vmem>>, vector<1x16x16xf32>
    %626 = vector.shape_cast %625 : vector<1x16x16xf32> to vector<16x16xf32>
    %627 = vector.broadcast %624 : f32 to vector<16x16xf32>
    %628 = arith.mulf %627, %626 : vector<16x16xf32>
    %629 = arith.addf %623, %628 : vector<16x16xf32>
    %c79 = arith.constant 79 : index
    %630 = memref.load %arg4[%c79] : memref<98xf32, #tpu.memory_space<smem>>
    %c1_353 = arith.constant 1 : index
    %c4_354 = arith.constant 4 : index
    %c2_355 = arith.constant 2 : index
    %631 = vector.load %arg6[%c1_353, %c4_354, %c2_355] : memref<2x22x22xf32, #tpu.memory_space<vmem>>, vector<1x16x16xf32>
    %632 = vector.shape_cast %631 : vector<1x16x16xf32> to vector<16x16xf32>
    %633 = vector.broadcast %630 : f32 to vector<16x16xf32>
    %634 = arith.mulf %633, %632 : vector<16x16xf32>
    %635 = arith.addf %629, %634 : vector<16x16xf32>
    %c80 = arith.constant 80 : index
    %636 = memref.load %arg4[%c80] : memref<98xf32, #tpu.memory_space<smem>>
    %c1_356 = arith.constant 1 : index
    %c4_357 = arith.constant 4 : index
    %c3_358 = arith.constant 3 : index
    %637 = vector.load %arg6[%c1_356, %c4_357, %c3_358] : memref<2x22x22xf32, #tpu.memory_space<vmem>>, vector<1x16x16xf32>
    %638 = vector.shape_cast %637 : vector<1x16x16xf32> to vector<16x16xf32>
    %639 = vector.broadcast %636 : f32 to vector<16x16xf32>
    %640 = arith.mulf %639, %638 : vector<16x16xf32>
    %641 = arith.addf %635, %640 : vector<16x16xf32>
    %c81 = arith.constant 81 : index
    %642 = memref.load %arg4[%c81] : memref<98xf32, #tpu.memory_space<smem>>
    %c1_359 = arith.constant 1 : index
    %c4_360 = arith.constant 4 : index
    %c4_361 = arith.constant 4 : index
    %643 = vector.load %arg6[%c1_359, %c4_360, %c4_361] : memref<2x22x22xf32, #tpu.memory_space<vmem>>, vector<1x16x16xf32>
    %644 = vector.shape_cast %643 : vector<1x16x16xf32> to vector<16x16xf32>
    %645 = vector.broadcast %642 : f32 to vector<16x16xf32>
    %646 = arith.mulf %645, %644 : vector<16x16xf32>
    %647 = arith.addf %641, %646 : vector<16x16xf32>
    %c82 = arith.constant 82 : index
    %648 = memref.load %arg4[%c82] : memref<98xf32, #tpu.memory_space<smem>>
    %c1_362 = arith.constant 1 : index
    %c4_363 = arith.constant 4 : index
    %c5_364 = arith.constant 5 : index
    %649 = vector.load %arg6[%c1_362, %c4_363, %c5_364] : memref<2x22x22xf32, #tpu.memory_space<vmem>>, vector<1x16x16xf32>
    %650 = vector.shape_cast %649 : vector<1x16x16xf32> to vector<16x16xf32>
    %651 = vector.broadcast %648 : f32 to vector<16x16xf32>
    %652 = arith.mulf %651, %650 : vector<16x16xf32>
    %653 = arith.addf %647, %652 : vector<16x16xf32>
    %c83 = arith.constant 83 : index
    %654 = memref.load %arg4[%c83] : memref<98xf32, #tpu.memory_space<smem>>
    %c1_365 = arith.constant 1 : index
    %c4_366 = arith.constant 4 : index
    %c6_367 = arith.constant 6 : index
    %655 = vector.load %arg6[%c1_365, %c4_366, %c6_367] : memref<2x22x22xf32, #tpu.memory_space<vmem>>, vector<1x16x16xf32>
    %656 = vector.shape_cast %655 : vector<1x16x16xf32> to vector<16x16xf32>
    %657 = vector.broadcast %654 : f32 to vector<16x16xf32>
    %658 = arith.mulf %657, %656 : vector<16x16xf32>
    %659 = arith.addf %653, %658 : vector<16x16xf32>
    %c84 = arith.constant 84 : index
    %660 = memref.load %arg4[%c84] : memref<98xf32, #tpu.memory_space<smem>>
    %c1_368 = arith.constant 1 : index
    %c5_369 = arith.constant 5 : index
    %c0_370 = arith.constant 0 : index
    %661 = vector.load %arg6[%c1_368, %c5_369, %c0_370] : memref<2x22x22xf32, #tpu.memory_space<vmem>>, vector<1x16x16xf32>
    %662 = vector.shape_cast %661 : vector<1x16x16xf32> to vector<16x16xf32>
    %663 = vector.broadcast %660 : f32 to vector<16x16xf32>
    %664 = arith.mulf %663, %662 : vector<16x16xf32>
    %665 = arith.addf %659, %664 : vector<16x16xf32>
    %c85 = arith.constant 85 : index
    %666 = memref.load %arg4[%c85] : memref<98xf32, #tpu.memory_space<smem>>
    %c1_371 = arith.constant 1 : index
    %c5_372 = arith.constant 5 : index
    %c1_373 = arith.constant 1 : index
    %667 = vector.load %arg6[%c1_371, %c5_372, %c1_373] : memref<2x22x22xf32, #tpu.memory_space<vmem>>, vector<1x16x16xf32>
    %668 = vector.shape_cast %667 : vector<1x16x16xf32> to vector<16x16xf32>
    %669 = vector.broadcast %666 : f32 to vector<16x16xf32>
    %670 = arith.mulf %669, %668 : vector<16x16xf32>
    %671 = arith.addf %665, %670 : vector<16x16xf32>
    %c86 = arith.constant 86 : index
    %672 = memref.load %arg4[%c86] : memref<98xf32, #tpu.memory_space<smem>>
    %c1_374 = arith.constant 1 : index
    %c5_375 = arith.constant 5 : index
    %c2_376 = arith.constant 2 : index
    %673 = vector.load %arg6[%c1_374, %c5_375, %c2_376] : memref<2x22x22xf32, #tpu.memory_space<vmem>>, vector<1x16x16xf32>
    %674 = vector.shape_cast %673 : vector<1x16x16xf32> to vector<16x16xf32>
    %675 = vector.broadcast %672 : f32 to vector<16x16xf32>
    %676 = arith.mulf %675, %674 : vector<16x16xf32>
    %677 = arith.addf %671, %676 : vector<16x16xf32>
    %c87 = arith.constant 87 : index
    %678 = memref.load %arg4[%c87] : memref<98xf32, #tpu.memory_space<smem>>
    %c1_377 = arith.constant 1 : index
    %c5_378 = arith.constant 5 : index
    %c3_379 = arith.constant 3 : index
    %679 = vector.load %arg6[%c1_377, %c5_378, %c3_379] : memref<2x22x22xf32, #tpu.memory_space<vmem>>, vector<1x16x16xf32>
    %680 = vector.shape_cast %679 : vector<1x16x16xf32> to vector<16x16xf32>
    %681 = vector.broadcast %678 : f32 to vector<16x16xf32>
    %682 = arith.mulf %681, %680 : vector<16x16xf32>
    %683 = arith.addf %677, %682 : vector<16x16xf32>
    %c88 = arith.constant 88 : index
    %684 = memref.load %arg4[%c88] : memref<98xf32, #tpu.memory_space<smem>>
    %c1_380 = arith.constant 1 : index
    %c5_381 = arith.constant 5 : index
    %c4_382 = arith.constant 4 : index
    %685 = vector.load %arg6[%c1_380, %c5_381, %c4_382] : memref<2x22x22xf32, #tpu.memory_space<vmem>>, vector<1x16x16xf32>
    %686 = vector.shape_cast %685 : vector<1x16x16xf32> to vector<16x16xf32>
    %687 = vector.broadcast %684 : f32 to vector<16x16xf32>
    %688 = arith.mulf %687, %686 : vector<16x16xf32>
    %689 = arith.addf %683, %688 : vector<16x16xf32>
    %c89 = arith.constant 89 : index
    %690 = memref.load %arg4[%c89] : memref<98xf32, #tpu.memory_space<smem>>
    %c1_383 = arith.constant 1 : index
    %c5_384 = arith.constant 5 : index
    %c5_385 = arith.constant 5 : index
    %691 = vector.load %arg6[%c1_383, %c5_384, %c5_385] : memref<2x22x22xf32, #tpu.memory_space<vmem>>, vector<1x16x16xf32>
    %692 = vector.shape_cast %691 : vector<1x16x16xf32> to vector<16x16xf32>
    %693 = vector.broadcast %690 : f32 to vector<16x16xf32>
    %694 = arith.mulf %693, %692 : vector<16x16xf32>
    %695 = arith.addf %689, %694 : vector<16x16xf32>
    %c90 = arith.constant 90 : index
    %696 = memref.load %arg4[%c90] : memref<98xf32, #tpu.memory_space<smem>>
    %c1_386 = arith.constant 1 : index
    %c5_387 = arith.constant 5 : index
    %c6_388 = arith.constant 6 : index
    %697 = vector.load %arg6[%c1_386, %c5_387, %c6_388] : memref<2x22x22xf32, #tpu.memory_space<vmem>>, vector<1x16x16xf32>
    %698 = vector.shape_cast %697 : vector<1x16x16xf32> to vector<16x16xf32>
    %699 = vector.broadcast %696 : f32 to vector<16x16xf32>
    %700 = arith.mulf %699, %698 : vector<16x16xf32>
    %701 = arith.addf %695, %700 : vector<16x16xf32>
    %c91 = arith.constant 91 : index
    %702 = memref.load %arg4[%c91] : memref<98xf32, #tpu.memory_space<smem>>
    %c1_389 = arith.constant 1 : index
    %c6_390 = arith.constant 6 : index
    %c0_391 = arith.constant 0 : index
    %703 = vector.load %arg6[%c1_389, %c6_390, %c0_391] : memref<2x22x22xf32, #tpu.memory_space<vmem>>, vector<1x16x16xf32>
    %704 = vector.shape_cast %703 : vector<1x16x16xf32> to vector<16x16xf32>
    %705 = vector.broadcast %702 : f32 to vector<16x16xf32>
    %706 = arith.mulf %705, %704 : vector<16x16xf32>
    %707 = arith.addf %701, %706 : vector<16x16xf32>
    %c92 = arith.constant 92 : index
    %708 = memref.load %arg4[%c92] : memref<98xf32, #tpu.memory_space<smem>>
    %c1_392 = arith.constant 1 : index
    %c6_393 = arith.constant 6 : index
    %c1_394 = arith.constant 1 : index
    %709 = vector.load %arg6[%c1_392, %c6_393, %c1_394] : memref<2x22x22xf32, #tpu.memory_space<vmem>>, vector<1x16x16xf32>
    %710 = vector.shape_cast %709 : vector<1x16x16xf32> to vector<16x16xf32>
    %711 = vector.broadcast %708 : f32 to vector<16x16xf32>
    %712 = arith.mulf %711, %710 : vector<16x16xf32>
    %713 = arith.addf %707, %712 : vector<16x16xf32>
    %c93 = arith.constant 93 : index
    %714 = memref.load %arg4[%c93] : memref<98xf32, #tpu.memory_space<smem>>
    %c1_395 = arith.constant 1 : index
    %c6_396 = arith.constant 6 : index
    %c2_397 = arith.constant 2 : index
    %715 = vector.load %arg6[%c1_395, %c6_396, %c2_397] : memref<2x22x22xf32, #tpu.memory_space<vmem>>, vector<1x16x16xf32>
    %716 = vector.shape_cast %715 : vector<1x16x16xf32> to vector<16x16xf32>
    %717 = vector.broadcast %714 : f32 to vector<16x16xf32>
    %718 = arith.mulf %717, %716 : vector<16x16xf32>
    %719 = arith.addf %713, %718 : vector<16x16xf32>
    %c94 = arith.constant 94 : index
    %720 = memref.load %arg4[%c94] : memref<98xf32, #tpu.memory_space<smem>>
    %c1_398 = arith.constant 1 : index
    %c6_399 = arith.constant 6 : index
    %c3_400 = arith.constant 3 : index
    %721 = vector.load %arg6[%c1_398, %c6_399, %c3_400] : memref<2x22x22xf32, #tpu.memory_space<vmem>>, vector<1x16x16xf32>
    %722 = vector.shape_cast %721 : vector<1x16x16xf32> to vector<16x16xf32>
    %723 = vector.broadcast %720 : f32 to vector<16x16xf32>
    %724 = arith.mulf %723, %722 : vector<16x16xf32>
    %725 = arith.addf %719, %724 : vector<16x16xf32>
    %c95 = arith.constant 95 : index
    %726 = memref.load %arg4[%c95] : memref<98xf32, #tpu.memory_space<smem>>
    %c1_401 = arith.constant 1 : index
    %c6_402 = arith.constant 6 : index
    %c4_403 = arith.constant 4 : index
    %727 = vector.load %arg6[%c1_401, %c6_402, %c4_403] : memref<2x22x22xf32, #tpu.memory_space<vmem>>, vector<1x16x16xf32>
    %728 = vector.shape_cast %727 : vector<1x16x16xf32> to vector<16x16xf32>
    %729 = vector.broadcast %726 : f32 to vector<16x16xf32>
    %730 = arith.mulf %729, %728 : vector<16x16xf32>
    %731 = arith.addf %725, %730 : vector<16x16xf32>
    %c96 = arith.constant 96 : index
    %732 = memref.load %arg4[%c96] : memref<98xf32, #tpu.memory_space<smem>>
    %c1_404 = arith.constant 1 : index
    %c6_405 = arith.constant 6 : index
    %c5_406 = arith.constant 5 : index
    %733 = vector.load %arg6[%c1_404, %c6_405, %c5_406] : memref<2x22x22xf32, #tpu.memory_space<vmem>>, vector<1x16x16xf32>
    %734 = vector.shape_cast %733 : vector<1x16x16xf32> to vector<16x16xf32>
    %735 = vector.broadcast %732 : f32 to vector<16x16xf32>
    %736 = arith.mulf %735, %734 : vector<16x16xf32>
    %737 = arith.addf %731, %736 : vector<16x16xf32>
    %c97 = arith.constant 97 : index
    %738 = memref.load %arg4[%c97] : memref<98xf32, #tpu.memory_space<smem>>
    %c1_407 = arith.constant 1 : index
    %c6_408 = arith.constant 6 : index
    %c6_409 = arith.constant 6 : index
    %739 = vector.load %arg6[%c1_407, %c6_408, %c6_409] : memref<2x22x22xf32, #tpu.memory_space<vmem>>, vector<1x16x16xf32>
    %740 = vector.shape_cast %739 : vector<1x16x16xf32> to vector<16x16xf32>
    %741 = vector.broadcast %738 : f32 to vector<16x16xf32>
    %742 = arith.mulf %741, %740 : vector<16x16xf32>
    %743 = arith.addf %737, %742 : vector<16x16xf32>
    %cst_410 = arith.constant 0.000000e+00 : f32
    %744 = vector.broadcast %cst_410 : f32 to vector<16x16xf32>
    %745 = arith.subf %744, %743 : vector<16x16xf32>
    %746 = math.exp %745 : vector<16x16xf32>
    %cst_411 = arith.constant 1.000000e+00 : f32
    %747 = vector.broadcast %cst_411 : f32 to vector<16x16xf32>
    %748 = arith.addf %747, %746 : vector<16x16xf32>
    %cst_412 = arith.constant 1.000000e+00 : f32
    %749 = vector.broadcast %cst_412 : f32 to vector<16x16xf32>
    %750 = arith.divf %749, %748 : vector<16x16xf32>
    %751 = vector.extract_strided_slice %750 {offsets = [0, 0], sizes = [1, 16], strides = [1, 1]} : vector<16x16xf32> to vector<1x16xf32>
    %c0_413 = arith.constant 0 : index
    %c0_414 = arith.constant 0 : index
    %752 = vector.load %arg7[%c0_413, %c0_414] : memref<1x256xf32, #tpu.memory_space<vmem>>, vector<1x16xf32>
    tpu.vector_store %arg7[%c0_413, %c0_414], %751 {strides = array<i32>} : memref<1x256xf32, #tpu.memory_space<vmem>>, vector<1x16xf32>,
    %753 = vector.extract_strided_slice %750 {offsets = [1, 0], sizes = [1, 16], strides = [1, 1]} : vector<16x16xf32> to vector<1x16xf32>
    %c0_415 = arith.constant 0 : index
    %c16_416 = arith.constant 16 : index
    %754 = vector.load %arg7[%c0_415, %c16_416] : memref<1x256xf32, #tpu.memory_space<vmem>>, vector<1x16xf32>
    tpu.vector_store %arg7[%c0_415, %c16_416], %753 {strides = array<i32>} : memref<1x256xf32, #tpu.memory_space<vmem>>, vector<1x16xf32>,
    %755 = vector.extract_strided_slice %750 {offsets = [2, 0], sizes = [1, 16], strides = [1, 1]} : vector<16x16xf32> to vector<1x16xf32>
    %c0_417 = arith.constant 0 : index
    %c32_418 = arith.constant 32 : index
    %756 = vector.load %arg7[%c0_417, %c32_418] : memref<1x256xf32, #tpu.memory_space<vmem>>, vector<1x16xf32>
    tpu.vector_store %arg7[%c0_417, %c32_418], %755 {strides = array<i32>} : memref<1x256xf32, #tpu.memory_space<vmem>>, vector<1x16xf32>,
    %757 = vector.extract_strided_slice %750 {offsets = [3, 0], sizes = [1, 16], strides = [1, 1]} : vector<16x16xf32> to vector<1x16xf32>
    %c0_419 = arith.constant 0 : index
    %c48_420 = arith.constant 48 : index
    %758 = vector.load %arg7[%c0_419, %c48_420] : memref<1x256xf32, #tpu.memory_space<vmem>>, vector<1x16xf32>
    tpu.vector_store %arg7[%c0_419, %c48_420], %757 {strides = array<i32>} : memref<1x256xf32, #tpu.memory_space<vmem>>, vector<1x16xf32>,
    %759 = vector.extract_strided_slice %750 {offsets = [4, 0], sizes = [1, 16], strides = [1, 1]} : vector<16x16xf32> to vector<1x16xf32>
    %c0_421 = arith.constant 0 : index
    %c64_422 = arith.constant 64 : index
    %760 = vector.load %arg7[%c0_421, %c64_422] : memref<1x256xf32, #tpu.memory_space<vmem>>, vector<1x16xf32>
    tpu.vector_store %arg7[%c0_421, %c64_422], %759 {strides = array<i32>} : memref<1x256xf32, #tpu.memory_space<vmem>>, vector<1x16xf32>,
    %761 = vector.extract_strided_slice %750 {offsets = [5, 0], sizes = [1, 16], strides = [1, 1]} : vector<16x16xf32> to vector<1x16xf32>
    %c0_423 = arith.constant 0 : index
    %c80_424 = arith.constant 80 : index
    %762 = vector.load %arg7[%c0_423, %c80_424] : memref<1x256xf32, #tpu.memory_space<vmem>>, vector<1x16xf32>
    tpu.vector_store %arg7[%c0_423, %c80_424], %761 {strides = array<i32>} : memref<1x256xf32, #tpu.memory_space<vmem>>, vector<1x16xf32>,
    %763 = vector.extract_strided_slice %750 {offsets = [6, 0], sizes = [1, 16], strides = [1, 1]} : vector<16x16xf32> to vector<1x16xf32>
    %c0_425 = arith.constant 0 : index
    %c96_426 = arith.constant 96 : index
    %764 = vector.load %arg7[%c0_425, %c96_426] : memref<1x256xf32, #tpu.memory_space<vmem>>, vector<1x16xf32>
    tpu.vector_store %arg7[%c0_425, %c96_426], %763 {strides = array<i32>} : memref<1x256xf32, #tpu.memory_space<vmem>>, vector<1x16xf32>,
    %765 = vector.extract_strided_slice %750 {offsets = [7, 0], sizes = [1, 16], strides = [1, 1]} : vector<16x16xf32> to vector<1x16xf32>
    %c0_427 = arith.constant 0 : index
    %c112 = arith.constant 112 : index
    %766 = vector.load %arg7[%c0_427, %c112] : memref<1x256xf32, #tpu.memory_space<vmem>>, vector<1x16xf32>
    tpu.vector_store %arg7[%c0_427, %c112], %765 {strides = array<i32>} : memref<1x256xf32, #tpu.memory_space<vmem>>, vector<1x16xf32>,
    %767 = vector.extract_strided_slice %750 {offsets = [8, 0], sizes = [1, 16], strides = [1, 1]} : vector<16x16xf32> to vector<1x16xf32>
    %c0_428 = arith.constant 0 : index
    %c128 = arith.constant 128 : index
    %768 = vector.load %arg7[%c0_428, %c128] : memref<1x256xf32, #tpu.memory_space<vmem>>, vector<1x16xf32>
    tpu.vector_store %arg7[%c0_428, %c128], %767 {strides = array<i32>} : memref<1x256xf32, #tpu.memory_space<vmem>>, vector<1x16xf32>,
    %769 = vector.extract_strided_slice %750 {offsets = [9, 0], sizes = [1, 16], strides = [1, 1]} : vector<16x16xf32> to vector<1x16xf32>
    %c0_429 = arith.constant 0 : index
    %c144 = arith.constant 144 : index
    %770 = vector.load %arg7[%c0_429, %c144] : memref<1x256xf32, #tpu.memory_space<vmem>>, vector<1x16xf32>
    tpu.vector_store %arg7[%c0_429, %c144], %769 {strides = array<i32>} : memref<1x256xf32, #tpu.memory_space<vmem>>, vector<1x16xf32>,
    %771 = vector.extract_strided_slice %750 {offsets = [10, 0], sizes = [1, 16], strides = [1, 1]} : vector<16x16xf32> to vector<1x16xf32>
    %c0_430 = arith.constant 0 : index
    %c160 = arith.constant 160 : index
    %772 = vector.load %arg7[%c0_430, %c160] : memref<1x256xf32, #tpu.memory_space<vmem>>, vector<1x16xf32>
    tpu.vector_store %arg7[%c0_430, %c160], %771 {strides = array<i32>} : memref<1x256xf32, #tpu.memory_space<vmem>>, vector<1x16xf32>,
    %773 = vector.extract_strided_slice %750 {offsets = [11, 0], sizes = [1, 16], strides = [1, 1]} : vector<16x16xf32> to vector<1x16xf32>
    %c0_431 = arith.constant 0 : index
    %c176 = arith.constant 176 : index
    %774 = vector.load %arg7[%c0_431, %c176] : memref<1x256xf32, #tpu.memory_space<vmem>>, vector<1x16xf32>
    tpu.vector_store %arg7[%c0_431, %c176], %773 {strides = array<i32>} : memref<1x256xf32, #tpu.memory_space<vmem>>, vector<1x16xf32>,
    %775 = vector.extract_strided_slice %750 {offsets = [12, 0], sizes = [1, 16], strides = [1, 1]} : vector<16x16xf32> to vector<1x16xf32>
    %c0_432 = arith.constant 0 : index
    %c192 = arith.constant 192 : index
    %776 = vector.load %arg7[%c0_432, %c192] : memref<1x256xf32, #tpu.memory_space<vmem>>, vector<1x16xf32>
    tpu.vector_store %arg7[%c0_432, %c192], %775 {strides = array<i32>} : memref<1x256xf32, #tpu.memory_space<vmem>>, vector<1x16xf32>,
    %777 = vector.extract_strided_slice %750 {offsets = [13, 0], sizes = [1, 16], strides = [1, 1]} : vector<16x16xf32> to vector<1x16xf32>
    %c0_433 = arith.constant 0 : index
    %c208 = arith.constant 208 : index
    %778 = vector.load %arg7[%c0_433, %c208] : memref<1x256xf32, #tpu.memory_space<vmem>>, vector<1x16xf32>
    tpu.vector_store %arg7[%c0_433, %c208], %777 {strides = array<i32>} : memref<1x256xf32, #tpu.memory_space<vmem>>, vector<1x16xf32>,
    %779 = vector.extract_strided_slice %750 {offsets = [14, 0], sizes = [1, 16], strides = [1, 1]} : vector<16x16xf32> to vector<1x16xf32>
    %c0_434 = arith.constant 0 : index
    %c224 = arith.constant 224 : index
    %780 = vector.load %arg7[%c0_434, %c224] : memref<1x256xf32, #tpu.memory_space<vmem>>, vector<1x16xf32>
    tpu.vector_store %arg7[%c0_434, %c224], %779 {strides = array<i32>} : memref<1x256xf32, #tpu.memory_space<vmem>>, vector<1x16xf32>,
    %781 = vector.extract_strided_slice %750 {offsets = [15, 0], sizes = [1, 16], strides = [1, 1]} : vector<16x16xf32> to vector<1x16xf32>
    %c0_435 = arith.constant 0 : index
    %c240 = arith.constant 240 : index
    %782 = vector.load %arg7[%c0_435, %c240] : memref<1x256xf32, #tpu.memory_space<vmem>>, vector<1x16xf32>
    tpu.vector_store %arg7[%c0_435, %c240], %781 {strides = array<i32>} : memref<1x256xf32, #tpu.memory_space<vmem>>, vector<1x16xf32>,
    %c0_436 = arith.constant 0 : index
    %c0_437 = arith.constant 0 : index
    %783 = vector.load %arg7[%c0_436, %c0_437] : memref<1x256xf32, #tpu.memory_space<vmem>>, vector<1x256xf32>
    %784 = vector.broadcast %783 : vector<1x256xf32> to vector<4x256xf32>
    %785 = arith.mulf %18, %784 : vector<4x256xf32>
    %c0_438 = arith.constant 0 : index
    %c0_439 = arith.constant 0 : index
    %c0_440 = arith.constant 0 : index
    %786 = vector.load %arg5[%c0_438, %c0_439, %c0_440] : memref<1x4x256xf32, #tpu.memory_space<vmem>>, vector<1x4x256xf32>
    %787 = vector.shape_cast %786 : vector<1x4x256xf32> to vector<4x256xf32>
    %788 = vector.shape_cast %785 : vector<4x256xf32> to vector<1x4x256xf32>
    tpu.vector_store %arg5[%c0_438, %c0_439, %c0_440], %788 {strides = array<i32>} : memref<1x4x256xf32, #tpu.memory_space<vmem>>, vector<1x4x256xf32>,
    return
  }
  func.func @transform_0(%arg0: i32) -> (i32, i32, i32) {
    %c0_i32 = arith.constant 0 : i32
    %c0_i32_0 = arith.constant 0 : i32
    %c0_i32_1 = arith.constant 0 : i32
    return %arg0, %c0_i32, %c0_i32_0 : i32, i32, i32
  }
  func.func @transform_1(%arg0: i32) -> (i32, i32) {
    %c0_i32 = arith.constant 0 : i32
    %c0_i32_0 = arith.constant 0 : i32
    %c0_i32_1 = arith.constant 0 : i32
    return %c0_i32, %c0_i32_0 : i32, i32
  }
  func.func @transform_2(%arg0: i32) -> (i32, i32) {
    %c0_i32 = arith.constant 0 : i32
    %c0_i32_0 = arith.constant 0 : i32
    %c0_i32_1 = arith.constant 0 : i32
    return %c0_i32, %c0_i32_0 : i32, i32
  }
  func.func @transform_3(%arg0: i32) -> i32 {
    %c0_i32 = arith.constant 0 : i32
    %c0_i32_0 = arith.constant 0 : i32
    return %c0_i32 : i32
  }
  func.func @transform_4(%arg0: i32) -> (i32, i32, i32) {
    %c0_i32 = arith.constant 0 : i32
    %c0_i32_0 = arith.constant 0 : i32
    %c0_i32_1 = arith.constant 0 : i32
    return %arg0, %c0_i32, %c0_i32_0 : i32, i32, i32
  }
}

</mosaic_0001>

<llo_original>
// kernel: tpu_custom_call.1
$region0: #{tpu_custom_call.1}
  #allocation0 [shape = 'u32[]', space=smem, size = 0x4, offset = 0x4, fixed_abs, tag = 'smem constant byte address 0x4 - core index']
  #allocation1 [shape = 'u32[144,128]{1,0:T(1,128)}', space=vmem, size = 0x12000, scoped, tag = 'internal scratch']
  #allocation2 [shape = 'f32[2,22,22]{2,1,0:T(8,128)}', space=vmem, size = 0x6000, scoped, tag = 'scratch operand']
  #allocation3 [shape = 'f32[1,256]{1,0:T(1,128)}', space=vmem, size = 0x400, scoped, tag = 'scratch operand']
  %s0 = inlined_call_operand.hbm [shape: f32[2,4,256], index: 0, kind: input, shape index: {}]
  %s1 = inlined_call_operand.vmem [shape: f32[4,4], index: 1, kind: input, shape index: {}]
  %s2 = inlined_call_operand.vmem [shape: f32[4,1], index: 2, kind: input, shape index: {}]
  %s3 = inlined_call_operand.vmem [shape: f32[98], index: 3, kind: input, shape index: {}]
  %s4 = inlined_call_operand.hbm [shape: f32[2,4,256], index: 4, kind: output, shape index: {}]
  %s5 = sld [smem:[#allocation0]]
  $region57: #{tpu_custom_call.1} parent=0
    _
  %s7 = ssub.s32 1, %s5
  %s8 = scalar_select 0, %s7, %s5
  $region1: #{tpu_custom_call.1} parent=0
    #allocation4 [shape = 'u8[8192]{0}', space=vmem, size = 0x2000, scoped, tag = 'input window, operand 0']
    #allocation5 [shape = 's32[2]{0}', space=sflag, size = 0x8, scoped, tag = 'scoped memory for tpu_custom_call.1']
    #allocation6 [shape = 's32[2]{0}', space=sflag, size = 0x8, scoped, tag = 'scoped memory for tpu_custom_call.1']
    #allocation7 [shape = 's32[2]{0}', space=sflag, size = 0x8, scoped, tag = 'scoped memory for tpu_custom_call.1']
    #allocation8 [shape = 'u8[512]{0}', space=smem, size = 0x200, scoped, tag = 'input window, operand 3, single buffered']
    #allocation9 [shape = 'u8[8192]{0}', space=vmem, size = 0x2000, scoped, tag = 'output window, operand 0']
    %9 = vsyncpa [#allocation5], 0
    %s10 = scalar_lea.sflag [#allocation5], 1
    %11 = vsyncpa %s10, 0
    %12 = vsyncpa [#allocation7], 0
    %13 = vsyncpa [#allocation6], 0
    %s14 = scalar_lea.sflag [#allocation6], 1
    %15 = vsyncpa %s14, 0
    loop: start=0, step=1, limit=4
    $region2: #{tpu_custom_call.1} parent=1 // loop_pre_header
      _
    $region3: #{tpu_custom_call.1} parent=1 // loop_header
      %s17 = sphi 0, %s21
      %p18 = scmp.ge.s32.totalorder %s17, 4
      %s27 = sphi 0, %s29
      %s30 = sphi 0, %s27
      %s31 = sphi 0, %s30
      %s47 = sphi 0, %s31
      %s51 = sphi 0, %s51
      %s53 = sphi 0, %s51
      %s54 = sphi 0, %s53
      %s68 = sphi 0, %s54
      %s72 = sphi 0, %s72
      %s74 = sphi 0, %s72
      %s75 = sphi 0, %s74
      %s89 = sphi 0, %s75
      %s93 = sphi 0, %s93
      %s95 = sphi 0, %s93
      %s96 = sphi 0, %s95
      %s110 = sphi 0, %s96
      %s116 = sphi 0, %s118
      %s119 = sphi 0, %s116
      %s120 = sphi 0, %s119
      %s136 = sphi 0, %s120
    $region4: #{tpu_custom_call.1} parent=1 // loop_header_branch
      %20 = sbr.rel (%p18) target = $region8
    $region5: #{tpu_custom_call.1} parent=1 // loop_body
      %s22 = ssub.s32 %s17, 1
      %s23 = ssub.s32 %s17, 2
      %s24 = sadd.s32 %s17, 1
      %s25 = ssub.s32 %s17, %s24
      %p26 = scmp.eq.s32.totalorder %s25, 0
      %s28 = sadd.s32 %s27, 1
      %s29 = scalar_select %p26, %s27, %s28
      %p32 = pneg %p26
      %p33 = scmp.eq.s32.totalorder %s17, 1
      %p34 = por %p32, %p33
      %p35 = scmp.ne.s32.totalorder %s27, %s30
      %p36 = scmp.eq.s32.totalorder %s17, 0
      %p37 = por %p35, %p36
      %p38 = scmp.ne.s32.totalorder %s27, %s30
      %p39 = scmp.eq.s32.totalorder %s22, 1
      %p40 = por %p38, %p39
      %p41 = scmp.ne.s32.totalorder %s30, %s31
      %p42 = scmp.eq.s32.totalorder %s22, 0
      %p43 = por %p41, %p42
      %p44 = scmp.ne.s32.totalorder %s30, %s31
      %p45 = scmp.eq.s32.totalorder %s23, 1
      %p46 = por %p44, %p45
      %p48 = scmp.ne.s32.totalorder %s31, %s47
      %p49 = scmp.eq.s32.totalorder %s23, 0
      %p50 = por %p48, %p49
      %s52 = sadd.s32 %s51, 1
      %p55 = scmp.eq.s32.totalorder %s17, 1
      %p56 = scmp.ne.s32.totalorder %s51, %s53
      %p57 = scmp.eq.s32.totalorder %s17, 0
      %p58 = por %p56, %p57
      %p59 = scmp.ne.s32.totalorder %s51, %s53
      %p60 = scmp.eq.s32.totalorder %s22, 1
      %p61 = por %p59, %p60
      %p62 = scmp.ne.s32.totalorder %s53, %s54
      %p63 = scmp.eq.s32.totalorder %s22, 0
      %p64 = por %p62, %p63
      %p65 = scmp.ne.s32.totalorder %s53, %s54
      %p66 = scmp.eq.s32.totalorder %s23, 1
      %p67 = por %p65, %p66
      %p69 = scmp.ne.s32.totalorder %s54, %s68
      %p70 = scmp.eq.s32.totalorder %s23, 0
      %p71 = por %p69, %p70
      %s73 = sadd.s32 %s72, 1
      %p76 = scmp.eq.s32.totalorder %s17, 1
      %p77 = scmp.ne.s32.totalorder %s72, %s74
      %p78 = scmp.eq.s32.totalorder %s17, 0
      %p79 = por %p77, %p78
      %p80 = scmp.ne.s32.totalorder %s72, %s74
      %p81 = scmp.eq.s32.totalorder %s22, 1
      %p82 = por %p80, %p81
      %p83 = scmp.ne.s32.totalorder %s74, %s75
      %p84 = scmp.eq.s32.totalorder %s22, 0
      %p85 = por %p83, %p84
      %p86 = scmp.ne.s32.totalorder %s74, %s75
      %p87 = scmp.eq.s32.totalorder %s23, 1
      %p88 = por %p86, %p87
      %p90 = scmp.ne.s32.totalorder %s75, %s89
      %p91 = scmp.eq.s32.totalorder %s23, 0
      %p92 = por %p90, %p91
      %s94 = sadd.s32 %s93, 1
      %p97 = scmp.eq.s32.totalorder %s17, 1
      %p98 = scmp.ne.s32.totalorder %s93, %s95
      %p99 = scmp.eq.s32.totalorder %s17, 0
      %p100 = por %p98, %p99
      %p101 = scmp.ne.s32.totalorder %s93, %s95
      %p102 = scmp.eq.s32.totalorder %s22, 1
      %p103 = por %p101, %p102
      %p104 = scmp.ne.s32.totalorder %s95, %s96
      %p105 = scmp.eq.s32.totalorder %s22, 0
      %p106 = por %p104, %p105
      %p107 = scmp.ne.s32.totalorder %s95, %s96
      %p108 = scmp.eq.s32.totalorder %s23, 1
      %p109 = por %p107, %p108
      %p111 = scmp.ne.s32.totalorder %s96, %s110
      %p112 = scmp.eq.s32.totalorder %s23, 0
      %p113 = por %p111, %p112
      %s114 = ssub.s32 %s17, %s24
      %p115 = scmp.eq.s32.totalorder %s114, 0
      %s117 = sadd.s32 %s116, 1
      %s118 = scalar_select %p115, %s116, %s117
      %p121 = pneg %p115
      %p122 = scmp.eq.s32.totalorder %s17, 1
      %p123 = por %p121, %p122
      %p124 = scmp.ne.s32.totalorder %s116, %s119
      %p125 = scmp.eq.s32.totalorder %s17, 0
      %p126 = por %p124, %p125
      %p127 = scmp.ne.s32.totalorder %s116, %s119
      %p128 = scmp.eq.s32.totalorder %s22, 1
      %p129 = por %p127, %p128
      %p130 = scmp.ne.s32.totalorder %s119, %s120
      %p131 = scmp.eq.s32.totalorder %s22, 0
      %p132 = por %p130, %p131
      %p133 = scmp.ne.s32.totalorder %s119, %s120
      %p134 = scmp.eq.s32.totalorder %s23, 1
      %p135 = por %p133, %p134
      %p137 = scmp.ne.s32.totalorder %s120, %s136
      %p138 = scmp.eq.s32.totalorder %s23, 0
      %p139 = por %p137, %p138
      %p140 = scmp.le.s32.totalorder 1, %s17
      %p141 = scmp.lt.s32.totalorder %s17, 3
      %p142 = pnand %p140, %p141
      %p143 = pneg %p142
      // Predicated region
      $region9: #{tpu_custom_call.1} parent=5 // pred_check
        _
      $region10: #{tpu_custom_call.1} parent=5 // pred_check_branch
        %145 = sbr.rel (%p142) target = $region12
      $region11: #{tpu_custom_call.1} parent=5 // pred_region
        %s146 = ssub.s32 %s17, 1
        // Predicated region
        $region13: #{tpu_custom_call.1} parent=11 // pred_check
          %p147 = pneg %p64
        $region14: #{tpu_custom_call.1} parent=11 // pred_check_branch
          %149 = sbr.rel (%p147) target = $region16
        $region15: #{tpu_custom_call.1} parent=11 // pred_region
          _
        $region16: #{tpu_custom_call.1} parent=11 // pred_fallthru
          _
        // Predicated region
        $region17: #{tpu_custom_call.1} parent=11 // pred_check
          %p150 = pneg %p85
        $region18: #{tpu_custom_call.1} parent=11 // pred_check_branch
          %152 = sbr.rel (%p150) target = $region20
        $region19: #{tpu_custom_call.1} parent=11 // pred_region
          _
        $region20: #{tpu_custom_call.1} parent=11 // pred_fallthru
          _
        // Predicated region
        $region21: #{tpu_custom_call.1} parent=11 // pred_check
          %p153 = pneg %p106
        $region22: #{tpu_custom_call.1} parent=11 // pred_check_branch
          %155 = sbr.rel (%p153) target = $region24
        $region23: #{tpu_custom_call.1} parent=11 // pred_region
          %s157 = ssub.s32 16, 16
          %158 = vsyncadd [#allocation7], %s157
          %s160 = sshll.u32 %s3, 4
          %s161 = int_to_ptr.vmem [resolvable:$true] %s160
          %163 = dma.vmem_to_smem %s161, 16, [#allocation8], [#allocation7]
        $region24: #{tpu_custom_call.1} parent=11 // pred_fallthru
          _
      $region12: #{tpu_custom_call.1} parent=5 // pred_fallthru
        _
      %p164 = scmp.lt.s32.totalorder %s17, 2
      // Predicated region
      $region25: #{tpu_custom_call.1} parent=5 // pred_check
        %p165 = pneg %p164
      $region26: #{tpu_custom_call.1} parent=5 // pred_check_branch
        %167 = sbr.rel (%p165) target = $region28
      $region27: #{tpu_custom_call.1} parent=5 // pred_region
        // Predicated region
        $region29: #{tpu_custom_call.1} parent=27 // pred_check
          %p168 = pneg %p37
        $region30: #{tpu_custom_call.1} parent=27 // pred_check_branch
          %170 = sbr.rel (%p168) target = $region32
        $region31: #{tpu_custom_call.1} parent=27 // pred_region
          %s171 = sand.u32 %s27, 1
          %s172 = scalar_lea.sflag [#allocation5], %s171
          %s173 = sand.u32 %s27, 1
          %s174 = smul.addr %s173, 8
          %s175 = scalar_lea.vmem [#allocation4], %s174
          %s177 = ssub.s32 128, 128
          %178 = vsyncadd %s172, %s177
          %s179 = smul.addr %s17, 2
          %s180 = smul.addr %s179, 64
          %s181 = scalar_lea.hbm %s0, %s180
          %s183 = sshll.u32 %s175, 4
          %s184 = int_to_ptr.vmem [resolvable:$true] %s183
          %186 = dma.hbm_to_vmem [thread:$0]  %s181, 128, %s184, %s172
        $region32: #{tpu_custom_call.1} parent=27 // pred_fallthru
          _
      $region28: #{tpu_custom_call.1} parent=5 // pred_fallthru
        _
      %p187 = scmp.le.s32.totalorder 1, %s17
      %p188 = scmp.lt.s32.totalorder %s17, 3
      %p189 = pnand %p187, %p188
      %p190 = pneg %p189
      // Predicated region
      $region33: #{tpu_custom_call.1} parent=5 // pred_check
        _
      $region34: #{tpu_custom_call.1} parent=5 // pred_check_branch
        %192 = sbr.rel (%p189) target = $region36
      $region35: #{tpu_custom_call.1} parent=5 // pred_region
        %s193 = ssub.s32 %s17, 1
        %s194 = sand.u32 %s30, 1
        %s195 = scalar_lea.sflag [#allocation5], %s194
        %s196 = sand.u32 %s30, 1
        %s197 = smul.addr %s196, 8
        %s198 = scalar_lea.vmem [#allocation4], %s197
        // Predicated region
        $region37: #{tpu_custom_call.1} parent=35 // pred_check
          %p199 = pneg %p43
        $region38: #{tpu_custom_call.1} parent=35 // pred_check_branch
          %201 = sbr.rel (%p199) target = $region40
        $region39: #{tpu_custom_call.1} parent=35 // pred_region
          %202 = dma.done %s195, 128
        $region40: #{tpu_custom_call.1} parent=35 // pred_fallthru
          _
        // Predicated region
        $region41: #{tpu_custom_call.1} parent=35 // pred_check
          %p203 = pneg %p106
        $region42: #{tpu_custom_call.1} parent=35 // pred_check_branch
          %205 = sbr.rel (%p203) target = $region44
        $region43: #{tpu_custom_call.1} parent=35 // pred_region
          %206 = dma.done [#allocation7], 16
        $region44: #{tpu_custom_call.1} parent=35 // pred_fallthru
          _
        %207 = sfence
        %s208 = sand.u32 %s30, 1
        %s209 = scalar_lea.sflag [#allocation5], %s208
        %s210 = sand.u32 %s30, 1
        %s211 = smul.addr %s210, 8
        %s212 = scalar_lea.vmem [#allocation4], %s211
        %p213 = pneg %p43
        %p214 = pneg %p40
        %p215 = pneg %p64
        %p216 = pneg %p61
        %p217 = pneg %p85
        %p218 = pneg %p82
        %p219 = pneg %p106
        %p220 = pneg %p103
        %p221 = pneg %p132
        %p222 = pneg %p129
        %s223 = sand.u32 %s119, 1
        %s224 = scalar_lea.sflag [#allocation6], %s223
        %s225 = sand.u32 %s119, 1
        %s226 = smul.addr %s225, 8
        %s227 = scalar_lea.vmem [#allocation9], %s226
        %v228 = vld [vmem:[%s198] sm:$0xff]
        %v230 = vcombine.high %v228, %v228
        %vm232 = vcmask 1043456
        %v233 = vsel %vm232, %v228, 0.0
        %v234 = vsel %vm232, %v230, 0.0
        %v235 = vadd.f32 %v233, %v234
        %236 = vadd.xlane.f32.xlu0 %v235
        %v237 = vpop.xlane.xlu0 %236
        %v238 = vmul.f32 %v237, 0.00390625
        %v239 = vld [vmem:[%s1] sm:$0xf]
        %v240 = vld [vmem:[%s2] sm:$0xf]
        %vm241 = vcmask 31744
        %v243 = vsel %vm241, %v239, 0
        %v246 = vsel %vm232, %v238, 0
        %248 = vmatprep.subr.mxu0 0.0
        %249 = vmatpush1.msra.mxu0 0.0
        %250 = vmatprep.subr.mxu0 0.0
        %251 = vmatpush1.msra.mxu0 0.0
        %252 = vmatprep.subr.mxu0 0.0
        %253 = vmatpush1.msra.mxu0 0.0
        %254 = vmatprep.subr.mxu0 0.0
        %255 = vmatpush1.msra.mxu0 0.0
        %256 = vmatprep.subr.mxu0 0.0
        %257 = vmatpush1.msra.mxu0 0.0
        %258 = vmatprep.subr.mxu0 0.0
        %259 = vmatpush1.msra.mxu0 0.0
        %260 = vmatprep.subr.mxu0 0.0
        %261 = vmatpush1.msra.mxu0 0.0
        %262 = vmatprep.subr.mxu0 0.0
        %263 = vmatpush1.msra.mxu0 0.0
        %264 = vmatprep.subr.mxu0 0.0
        %265 = vmatpush1.msra.mxu0 0.0
        %266 = vmatprep.subr.mxu0 0.0
        %267 = vmatpush1.msra.mxu0 0.0
        %268 = vmatprep.subr.mxu0 0.0
        %269 = vmatpush1.msra.mxu0 0.0
        %270 = vmatprep.subr.mxu0 0.0
        %271 = vmatpush1.msra.mxu0 0.0
        %272 = vmatprep.subr.mxu0 0.0
        %273 = vmatpush1.msra.mxu0 0.0
        %274 = vmatprep.subr.mxu0 0.0
        %275 = vmatpush1.msra.mxu0 0.0
        %276 = vmatprep.subr.mxu0 0.0
        %277 = vmatpush1.msra.mxu0 0.0
        %278 = vmatprep.subr.mxu0 0.0
        %279 = vmatpush1.msra.mxu0 %v246
        %280 = vmatprep.subr.mxu0 0.0
        %281 = vmatpush2.msra.mxu0 0.0
        %282 = vmatprep.subr.mxu0 0.0
        %283 = vmatpush2.msra.mxu0 0.0
        %284 = vmatprep.subr.mxu0 0.0
        %285 = vmatpush2.msra.mxu0 0.0
        %286 = vmatprep.subr.mxu0 0.0
        %287 = vmatpush2.msra.mxu0 0.0
        %288 = vmatprep.subr.mxu0 0.0
        %289 = vmatpush2.msra.mxu0 0.0
        %290 = vmatprep.subr.mxu0 0.0
        %291 = vmatpush2.msra.mxu0 0.0
        %292 = vmatprep.subr.mxu0 0.0
        %293 = vmatpush2.msra.mxu0 0.0
        %294 = vmatprep.subr.mxu0 0.0
        %295 = vmatpush2.msra.mxu0 0.0
        %296 = vmatprep.subr.mxu0 0.0
        %297 = vmatpush2.msra.mxu0 0.0
        %298 = vmatprep.subr.mxu0 0.0
        %299 = vmatpush2.msra.mxu0 0.0
        %300 = vmatprep.subr.mxu0 0.0
        %301 = vmatpush2.msra.mxu0 0.0
        %302 = vmatprep.subr.mxu0 0.0
        %303 = vmatpush2.msra.mxu0 0.0
        %304 = vmatprep.subr.mxu0 0.0
        %305 = vmatpush2.msra.mxu0 0.0
        %306 = vmatprep.subr.mxu0 0.0
        %307 = vmatpush2.msra.mxu0 0.0
        %308 = vmatprep.subr.mxu0 0.0
        %309 = vmatpush2.msra.mxu0 0.0
        %310 = vmatprep.subr.mxu0 0.0
        %311 = vmatpush2.msra.mxu0 0.0
        %312 = vmatprep.mubr.f32.mxu0 0.0
        %313 = vmatmul.mubr.f32.gmra.mxu0 %v243
        %v314 = vpop.f32.mrf.mxu0
        %v315 = vadd.f32 %v240, %v314
        %v316 = vpop.f32.mrf.mxu0
        %317 = vdwg.mxu0
        %v318 = vsub.f32 0.0, %v315
        %v319 = vmul.f32 %v318, 1.442695
        %v320 = vpow.pop %v319
        %v321 = vadd.f32 %v320, 1.0
        %v322 = vrcp.pop %v321
        %v323 = vmul.f32 1.0, %v322
        %325 = vset.pattern.permute.xlu0 0
        %326 = vperm.xlu0 %325, %v323
        %v327 = vpop.permute.xlu0 %326
        %v329 = vunpack.c.l.s4 839922192
        %v330 = vunpack.c.0.s8 %v329
        %v331 = vlaneseq
        %v332 = vshrl.u32 %v331, 7
        %v333 = vsub.s32 %v330, %v332
        %v334 = vrot.slane %v327, %v333
        %v336 = vmul.f32 %v228, %v334
        %v338 = vcombine.high %v336, %v336
        %v340 = vsel %vm232, %v336, 0.0
        %v341 = vrot.slane %v340, 4
        %v342 = vadd.f32 %v340, %v341
        %v343 = vrot.slane %v342, 2
        %v344 = vadd.f32 %v342, %v343
        %v345 = vrot.slane %v344, 1
        %v346 = vadd.f32 %v344, %v345
        %v347 = vsel %vm232, %v338, 0.0
        %v348 = vrot.slane %v347, 4
        %v349 = vadd.f32 %v347, %v348
        %v350 = vrot.slane %v349, 2
        %v351 = vadd.f32 %v349, %v350
        %v352 = vrot.slane %v351, 1
        %v353 = vadd.f32 %v351, %v352
        %v354 = vmul.f32 %v346, 0.25
        %v355 = vmul.f32 %v353, 0.25
        %v356 = vsel %vm232, %v336, -inf
        %v357 = vrot.slane %v356, 4
        %v358 = vmax.f32 %v356, %v357
        %v359 = vrot.slane %v358, 2
        %v360 = vmax.f32 %v358, %v359
        %v361 = vrot.slane %v360, 1
        %v362 = vmax.f32 %v360, %v361
        %v363 = vsel %vm232, %v338, -inf
        %v364 = vrot.slane %v363, 4
        %v365 = vmax.f32 %v363, %v364
        %v366 = vrot.slane %v365, 2
        %v367 = vmax.f32 %v365, %v366
        %v368 = vrot.slane %v367, 1
        %v369 = vmax.f32 %v367, %v368
        %vm370 = vcmask 179200
        %371 = vst.msk [vmem:[#allocation2] sm:$0xff] %vm370, 0.0
        %372 = vst.msk [vmem:[#allocation2 + $0x8] sm:$0xff] %vm370, 0.0
        %vm373 = vcmask 177152
        %374 = vst.msk [vmem:[#allocation2 + $0x10] sm:$0x3f] %vm373, 0.0
        %375 = vst.msk [vmem:[#allocation2 + $0x18] sm:$0xff] %vm370, 0.0
        %376 = vst.msk [vmem:[#allocation2 + $0x20] sm:$0xff] %vm370, 0.0
        %377 = vst.msk [vmem:[#allocation2 + $0x28] sm:$0x3f] %vm373, 0.0
        %379 = vrot.lane.b32.xlu0 %v354, 3
        %v380 = vpop.permute.xlu0 %379
        %vm382 = vcmask 147480
        %383 = vst.msk [vmem:[#allocation2 + $0x3] sm:$0x1] %vm382, %v380
        %385 = vrot.lane.b32.xlu0 %v362, 3
        %v386 = vpop.permute.xlu0 %385
        %s388 = scalar_lea.vmem [#allocation2], 24
        %389 = vst.msk [vmem:[%s388 + $0x3] sm:$0x1] %vm382, %v386
        %390 = vrot.lane.b32.xlu0 %v354, 115
        %v391 = vpop.permute.xlu0 %390
        %393 = vst.msk [vmem:[#allocation2 + $0x4] sm:$0x1] %vm382, %v391
        %394 = vrot.lane.b32.xlu0 %v362, 115
        %v395 = vpop.permute.xlu0 %394
        %397 = vst.msk [vmem:[%s388 + $0x4] sm:$0x1] %vm382, %v395
        %398 = vrot.lane.b32.xlu0 %v354, 99
        %v399 = vpop.permute.xlu0 %398
        %401 = vst.msk [vmem:[#allocation2 + $0x5] sm:$0x1] %vm382, %v399
        %402 = vrot.lane.b32.xlu0 %v362, 99
        %v403 = vpop.permute.xlu0 %402
        %405 = vst.msk [vmem:[%s388 + $0x5] sm:$0x1] %vm382, %v403
        %406 = vrot.lane.b32.xlu0 %v354, 83
        %v407 = vpop.permute.xlu0 %406
        %409 = vst.msk [vmem:[#allocation2 + $0x6] sm:$0x1] %vm382, %v407
        %410 = vrot.lane.b32.xlu0 %v362, 83
        %v411 = vpop.permute.xlu0 %410
        %413 = vst.msk [vmem:[%s388 + $0x6] sm:$0x1] %vm382, %v411
        %414 = vrot.lane.b32.xlu0 %v354, 67
        %v415 = vpop.permute.xlu0 %414
        %417 = vst.msk [vmem:[#allocation2 + $0x7] sm:$0x1] %vm382, %v415
        %418 = vrot.lane.b32.xlu0 %v362, 67
        %v419 = vpop.permute.xlu0 %418
        %421 = vst.msk [vmem:[%s388 + $0x7] sm:$0x1] %vm382, %v419
        %422 = vrot.lane.b32.xlu0 %v354, 51
        %v423 = vpop.permute.xlu0 %422
        %425 = vst.msk [vmem:[#allocation2 + $0x8] sm:$0x1] %vm382, %v423
        %426 = vrot.lane.b32.xlu0 %v362, 51
        %v427 = vpop.permute.xlu0 %426
        %429 = vst.msk [vmem:[%s388 + $0x8] sm:$0x1] %vm382, %v427
        %430 = vrot.lane.b32.xlu0 %v354, 35
        %v431 = vpop.permute.xlu0 %430
        %433 = vst.msk [vmem:[#allocation2 + $0x9] sm:$0x1] %vm382, %v431
        %434 = vrot.lane.b32.xlu0 %v362, 35
        %v435 = vpop.permute.xlu0 %434
        %437 = vst.msk [vmem:[%s388 + $0x9] sm:$0x1] %vm382, %v435
        %438 = vrot.lane.b32.xlu0 %v354, 19
        %v439 = vpop.permute.xlu0 %438
        %441 = vst.msk [vmem:[#allocation2 + $0xa] sm:$0x1] %vm382, %v439
        %442 = vrot.lane.b32.xlu0 %v362, 19
        %v443 = vpop.permute.xlu0 %442
        %445 = vst.msk [vmem:[%s388 + $0xa] sm:$0x1] %vm382, %v443
        %447 = vrot.lane.b32.xlu0 %v355, 3
        %v448 = vpop.permute.xlu0 %447
        %450 = vst.msk [vmem:[#allocation2 + $0xb] sm:$0x1] %vm382, %v448
        %452 = vrot.lane.b32.xlu0 %v369, 3
        %v453 = vpop.permute.xlu0 %452
        %455 = vst.msk [vmem:[%s388 + $0xb] sm:$0x1] %vm382, %v453
        %456 = vrot.lane.b32.xlu0 %v355, 115
        %v457 = vpop.permute.xlu0 %456
        %459 = vst.msk [vmem:[#allocation2 + $0xc] sm:$0x1] %vm382, %v457
        %460 = vrot.lane.b32.xlu0 %v369, 115
        %v461 = vpop.permute.xlu0 %460
        %463 = vst.msk [vmem:[%s388 + $0xc] sm:$0x1] %vm382, %v461
        %464 = vrot.lane.b32.xlu0 %v355, 99
        %v465 = vpop.permute.xlu0 %464
        %467 = vst.msk [vmem:[#allocation2 + $0xd] sm:$0x1] %vm382, %v465
        %468 = vrot.lane.b32.xlu0 %v369, 99
        %v469 = vpop.permute.xlu0 %468
        %471 = vst.msk [vmem:[%s388 + $0xd] sm:$0x1] %vm382, %v469
        %472 = vrot.lane.b32.xlu0 %v355, 83
        %v473 = vpop.permute.xlu0 %472
        %475 = vst.msk [vmem:[#allocation2 + $0xe] sm:$0x1] %vm382, %v473
        %476 = vrot.lane.b32.xlu0 %v369, 83
        %v477 = vpop.permute.xlu0 %476
        %479 = vst.msk [vmem:[%s388 + $0xe] sm:$0x1] %vm382, %v477
        %480 = vrot.lane.b32.xlu0 %v355, 67
        %v481 = vpop.permute.xlu0 %480
        %483 = vst.msk [vmem:[#allocation2 + $0xf] sm:$0x1] %vm382, %v481
        %484 = vrot.lane.b32.xlu0 %v369, 67
        %v485 = vpop.permute.xlu0 %484
        %487 = vst.msk [vmem:[%s388 + $0xf] sm:$0x1] %vm382, %v485
        %488 = vrot.lane.b32.xlu0 %v355, 51
        %v489 = vpop.permute.xlu0 %488
        %491 = vst.msk [vmem:[#allocation2 + $0x10] sm:$0x1] %vm382, %v489
        %492 = vrot.lane.b32.xlu0 %v369, 51
        %v493 = vpop.permute.xlu0 %492
        %495 = vst.msk [vmem:[%s388 + $0x10] sm:$0x1] %vm382, %v493
        %496 = vrot.lane.b32.xlu0 %v355, 35
        %v497 = vpop.permute.xlu0 %496
        %499 = vst.msk [vmem:[#allocation2 + $0x11] sm:$0x1] %vm382, %v497
        %500 = vrot.lane.b32.xlu0 %v369, 35
        %v501 = vpop.permute.xlu0 %500
        %503 = vst.msk [vmem:[%s388 + $0x11] sm:$0x1] %vm382, %v501
        %504 = vrot.lane.b32.xlu0 %v355, 19
        %v505 = vpop.permute.xlu0 %504
        %507 = vst.msk [vmem:[#allocation2 + $0x12] sm:$0x1] %vm382, %v505
        %508 = vrot.lane.b32.xlu0 %v369, 19
        %v509 = vpop.permute.xlu0 %508
        %511 = vst.msk [vmem:[%s388 + $0x12] sm:$0x1] %vm382, %v509
        %s512 = sld [smem:[#allocation8]]
        %v513 = vld [vmem:[#allocation2] sm:$0xff]
        %v514 = vld [vmem:[#allocation2 + $0x8] sm:$0xff]
        %v515 = vstv %s512
        %v516 = vmul.f32 %v515, %v513
        %v517 = vmul.f32 %v515, %v514
        %v518 = vadd.f32 %v516, 0.0
        %v519 = vadd.f32 %v517, 0.0
        %s520 = sld [smem:[#allocation8 + $0x1]]
        %v521 = vstv %s520
        %v522 = vmul.f32 %v521, %v513
        %v523 = vmul.f32 %v521, %v514
        %526 = vrot.lane.b32.xlu0 %v522, 127
        %v527 = vpop.permute.xlu0 %526
        %528 = vrot.lane.b32.xlu0 %v523, 127
        %v529 = vpop.permute.xlu0 %528
        %v532 = vadd.f32 %v518, %v527
        %v533 = vadd.f32 %v519, %v529
        %s534 = sld [smem:[#allocation8 + $0x2]]
        %v535 = vstv %s534
        %v536 = vmul.f32 %v535, %v513
        %v537 = vmul.f32 %v535, %v514
        %540 = vrot.lane.b32.xlu0 %v536, 126
        %v541 = vpop.permute.xlu0 %540
        %542 = vrot.lane.b32.xlu0 %v537, 126
        %v543 = vpop.permute.xlu0 %542
        %v546 = vadd.f32 %v532, %v541
        %v547 = vadd.f32 %v533, %v543
        %s548 = sld [smem:[#allocation8 + $0x3]]
        %v549 = vstv %s548
        %v550 = vmul.f32 %v549, %v513
        %v551 = vmul.f32 %v549, %v514
        %554 = vrot.lane.b32.xlu0 %v550, 125
        %v555 = vpop.permute.xlu0 %554
        %556 = vrot.lane.b32.xlu0 %v551, 125
        %v557 = vpop.permute.xlu0 %556
        %v560 = vadd.f32 %v546, %v555
        %v561 = vadd.f32 %v547, %v557
        %s562 = sld [smem:[#allocation8 + $0x4]]
        %v563 = vstv %s562
        %v564 = vmul.f32 %v563, %v513
        %v565 = vmul.f32 %v563, %v514
        %568 = vrot.lane.b32.xlu0 %v564, 124
        %v569 = vpop.permute.xlu0 %568
        %570 = vrot.lane.b32.xlu0 %v565, 124
        %v571 = vpop.permute.xlu0 %570
        %v574 = vadd.f32 %v560, %v569
        %v575 = vadd.f32 %v561, %v571
        %s576 = sld [smem:[#allocation8 + $0x5]]
        %v577 = vstv %s576
        %v578 = vmul.f32 %v577, %v513
        %v579 = vmul.f32 %v577, %v514
        %582 = vrot.lane.b32.xlu0 %v578, 123
        %v583 = vpop.permute.xlu0 %582
        %584 = vrot.lane.b32.xlu0 %v579, 123
        %v585 = vpop.permute.xlu0 %584
        %v588 = vadd.f32 %v574, %v583
        %v589 = vadd.f32 %v575, %v585
        %s590 = sld [smem:[#allocation8 + $0x6]]
        %v591 = vstv %s590
        %v592 = vmul.f32 %v591, %v513
        %v593 = vmul.f32 %v591, %v514
        %596 = vrot.lane.b32.xlu0 %v592, 122
        %v597 = vpop.permute.xlu0 %596
        %598 = vrot.lane.b32.xlu0 %v593, 122
        %v599 = vpop.permute.xlu0 %598
        %v602 = vadd.f32 %v588, %v597
        %v603 = vadd.f32 %v589, %v599
        %s604 = sld [smem:[#allocation8 + $0x7]]
        %v605 = vld [vmem:[#allocation2 + $0x1] sm:$0xff]
        %v606 = vld [vmem:[#allocation2 + $0x9] sm:$0xff]
        %v607 = vstv %s604
        %v608 = vmul.f32 %v607, %v605
        %v609 = vmul.f32 %v607, %v606
        %v610 = vadd.f32 %v602, %v608
        %v611 = vadd.f32 %v603, %v609
        %s612 = sld [smem:[#allocation8 + $0x8]]
        %v613 = vstv %s612
        %v614 = vmul.f32 %v613, %v605
        %v615 = vmul.f32 %v613, %v606
        %618 = vrot.lane.b32.xlu0 %v614, 127
        %v619 = vpop.permute.xlu0 %618
        %620 = vrot.lane.b32.xlu0 %v615, 127
        %v621 = vpop.permute.xlu0 %620
        %v624 = vadd.f32 %v610, %v619
        %v625 = vadd.f32 %v611, %v621
        %s626 = sld [smem:[#allocation8 + $0x9]]
        %v627 = vstv %s626
        %v628 = vmul.f32 %v627, %v605
        %v629 = vmul.f32 %v627, %v606
        %632 = vrot.lane.b32.xlu0 %v628, 126
        %v633 = vpop.permute.xlu0 %632
        %634 = vrot.lane.b32.xlu0 %v629, 126
        %v635 = vpop.permute.xlu0 %634
        %v638 = vadd.f32 %v624, %v633
        %v639 = vadd.f32 %v625, %v635
        %s640 = sld [smem:[#allocation8 + $0xa]]
        %v641 = vstv %s640
        %v642 = vmul.f32 %v641, %v605
        %v643 = vmul.f32 %v641, %v606
        %646 = vrot.lane.b32.xlu0 %v642, 125
        %v647 = vpop.permute.xlu0 %646
        %648 = vrot.lane.b32.xlu0 %v643, 125
        %v649 = vpop.permute.xlu0 %648
        %v652 = vadd.f32 %v638, %v647
        %v653 = vadd.f32 %v639, %v649
        %s654 = sld [smem:[#allocation8 + $0xb]]
        %v655 = vstv %s654
        %v656 = vmul.f32 %v655, %v605
        %v657 = vmul.f32 %v655, %v606
        %660 = vrot.lane.b32.xlu0 %v656, 124
        %v661 = vpop.permute.xlu0 %660
        %662 = vrot.lane.b32.xlu0 %v657, 124
        %v663 = vpop.permute.xlu0 %662
        %v666 = vadd.f32 %v652, %v661
        %v667 = vadd.f32 %v653, %v663
        %s668 = sld [smem:[#allocation8 + $0xc]]
        %v669 = vstv %s668
        %v670 = vmul.f32 %v669, %v605
        %v671 = vmul.f32 %v669, %v606
        %674 = vrot.lane.b32.xlu0 %v670, 123
        %v675 = vpop.permute.xlu0 %674
        %676 = vrot.lane.b32.xlu0 %v671, 123
        %v677 = vpop.permute.xlu0 %676
        %v680 = vadd.f32 %v666, %v675
        %v681 = vadd.f32 %v667, %v677
        %s682 = sld [smem:[#allocation8 + $0xd]]
        %v683 = vstv %s682
        %v684 = vmul.f32 %v683, %v605
        %v685 = vmul.f32 %v683, %v606
        %688 = vrot.lane.b32.xlu0 %v684, 122
        %v689 = vpop.permute.xlu0 %688
        %690 = vrot.lane.b32.xlu0 %v685, 122
        %v691 = vpop.permute.xlu0 %690
        %v694 = vadd.f32 %v680, %v689
        %v695 = vadd.f32 %v681, %v691
        %s696 = sld [smem:[#allocation8 + $0xe]]
        %v697 = vld [vmem:[#allocation2 + $0x2] sm:$0xff]
        %v698 = vld [vmem:[#allocation2 + $0xa] sm:$0xff]
        %v699 = vstv %s696
        %v700 = vmul.f32 %v699, %v697
        %v701 = vmul.f32 %v699, %v698
        %v702 = vadd.f32 %v694, %v700
        %v703 = vadd.f32 %v695, %v701
        %s704 = sld [smem:[#allocation8 + $0xf]]
        %v705 = vstv %s704
        %v706 = vmul.f32 %v705, %v697
        %v707 = vmul.f32 %v705, %v698
        %710 = vrot.lane.b32.xlu0 %v706, 127
        %v711 = vpop.permute.xlu0 %710
        %712 = vrot.lane.b32.xlu0 %v707, 127
        %v713 = vpop.permute.xlu0 %712
        %v716 = vadd.f32 %v702, %v711
        %v717 = vadd.f32 %v703, %v713
        %s718 = sld [smem:[#allocation8 + $0x10]]
        %v719 = vstv %s718
        %v720 = vmul.f32 %v719, %v697
        %v721 = vmul.f32 %v719, %v698
        %724 = vrot.lane.b32.xlu0 %v720, 126
        %v725 = vpop.permute.xlu0 %724
        %726 = vrot.lane.b32.xlu0 %v721, 126
        %v727 = vpop.permute.xlu0 %726
        %v730 = vadd.f32 %v716, %v725
        %v731 = vadd.f32 %v717, %v727
        %s732 = sld [smem:[#allocation8 + $0x11]]
        %v733 = vstv %s732
        %v734 = vmul.f32 %v733, %v697
        %v735 = vmul.f32 %v733, %v698
        %738 = vrot.lane.b32.xlu0 %v734, 125
        %v739 = vpop.permute.xlu0 %738
        %740 = vrot.lane.b32.xlu0 %v735, 125
        %v741 = vpop.permute.xlu0 %740
        %v744 = vadd.f32 %v730, %v739
        %v745 = vadd.f32 %v731, %v741
        %s746 = sld [smem:[#allocation8 + $0x12]]
        %v747 = vstv %s746
        %v748 = vmul.f32 %v747, %v697
        %v749 = vmul.f32 %v747, %v698
        %752 = vrot.lane.b32.xlu0 %v748, 124
        %v753 = vpop.permute.xlu0 %752
        %754 = vrot.lane.b32.xlu0 %v749, 124
        %v755 = vpop.permute.xlu0 %754
        %v758 = vadd.f32 %v744, %v753
        %v759 = vadd.f32 %v745, %v755
        %s760 = sld [smem:[#allocation8 + $0x13]]
        %v761 = vstv %s760
        %v762 = vmul.f32 %v761, %v697
        %v763 = vmul.f32 %v761, %v698
        %766 = vrot.lane.b32.xlu0 %v762, 123
        %v767 = vpop.permute.xlu0 %766
        %768 = vrot.lane.b32.xlu0 %v763, 123
        %v769 = vpop.permute.xlu0 %768
        %v772 = vadd.f32 %v758, %v767
        %v773 = vadd.f32 %v759, %v769
        %s774 = sld [smem:[#allocation8 + $0x14]]
        %v775 = vstv %s774
        %v776 = vmul.f32 %v775, %v697
        %v777 = vmul.f32 %v775, %v698
        %780 = vrot.lane.b32.xlu0 %v776, 122
        %v781 = vpop.permute.xlu0 %780
        %782 = vrot.lane.b32.xlu0 %v777, 122
        %v783 = vpop.permute.xlu0 %782
        %v786 = vadd.f32 %v772, %v781
        %v787 = vadd.f32 %v773, %v783
        %s788 = sld [smem:[#allocation8 + $0x15]]
        %v789 = vld [vmem:[#allocation2 + $0x3] sm:$0xff]
        %v790 = vld [vmem:[#allocation2 + $0xb] sm:$0xff]
        %v791 = vstv %s788
        %v792 = vmul.f32 %v791, %v789
        %v793 = vmul.f32 %v791, %v790
        %v794 = vadd.f32 %v786, %v792
        %v795 = vadd.f32 %v787, %v793
        %s796 = sld [smem:[#allocation8 + $0x16]]
        %v797 = vstv %s796
        %v798 = vmul.f32 %v797, %v789
        %v799 = vmul.f32 %v797, %v790
        %802 = vrot.lane.b32.xlu0 %v798, 127
        %v803 = vpop.permute.xlu0 %802
        %804 = vrot.lane.b32.xlu0 %v799, 127
        %v805 = vpop.permute.xlu0 %804
        %v808 = vadd.f32 %v794, %v803
        %v809 = vadd.f32 %v795, %v805
        %s810 = sld [smem:[#allocation8 + $0x17]]
        %v811 = vstv %s810
        %v812 = vmul.f32 %v811, %v789
        %v813 = vmul.f32 %v811, %v790
        %816 = vrot.lane.b32.xlu0 %v812, 126
        %v817 = vpop.permute.xlu0 %816
        %818 = vrot.lane.b32.xlu0 %v813, 126
        %v819 = vpop.permute.xlu0 %818
        %v822 = vadd.f32 %v808, %v817
        %v823 = vadd.f32 %v809, %v819
        %s824 = sld [smem:[#allocation8 + $0x18]]
        %v825 = vstv %s824
        %v826 = vmul.f32 %v825, %v789
        %v827 = vmul.f32 %v825, %v790
        %830 = vrot.lane.b32.xlu0 %v826, 125
        %v831 = vpop.permute.xlu0 %830
        %832 = vrot.lane.b32.xlu0 %v827, 125
        %v833 = vpop.permute.xlu0 %832
        %v836 = vadd.f32 %v822, %v831
        %v837 = vadd.f32 %v823, %v833
        %s838 = sld [smem:[#allocation8 + $0x19]]
        %v839 = vstv %s838
        %v840 = vmul.f32 %v839, %v789
        %v841 = vmul.f32 %v839, %v790
        %844 = vrot.lane.b32.xlu0 %v840, 124
        %v845 = vpop.permute.xlu0 %844
        %846 = vrot.lane.b32.xlu0 %v841, 124
        %v847 = vpop.permute.xlu0 %846
        %v850 = vadd.f32 %v836, %v845
        %v851 = vadd.f32 %v837, %v847
        %s852 = sld [smem:[#allocation8 + $0x1a]]
        %v853 = vstv %s852
        %v854 = vmul.f32 %v853, %v789
        %v855 = vmul.f32 %v853, %v790
        %858 = vrot.lane.b32.xlu0 %v854, 123
        %v859 = vpop.permute.xlu0 %858
        %860 = vrot.lane.b32.xlu0 %v855, 123
        %v861 = vpop.permute.xlu0 %860
        %v864 = vadd.f32 %v850, %v859
        %v865 = vadd.f32 %v851, %v861
        %s866 = sld [smem:[#allocation8 + $0x1b]]
        %v867 = vstv %s866
        %v868 = vmul.f32 %v867, %v789
        %v869 = vmul.f32 %v867, %v790
        %872 = vrot.lane.b32.xlu0 %v868, 122
        %v873 = vpop.permute.xlu0 %872
        %874 = vrot.lane.b32.xlu0 %v869, 122
        %v875 = vpop.permute.xlu0 %874
        %v878 = vadd.f32 %v864, %v873
        %v879 = vadd.f32 %v865, %v875
        %s880 = sld [smem:[#allocation8 + $0x1c]]
        %v881 = vld [vmem:[#allocation2 + $0x4] sm:$0xff]
        %v882 = vld [vmem:[#allocation2 + $0xc] sm:$0xff]
        %v883 = vstv %s880
        %v884 = vmul.f32 %v883, %v881
        %v885 = vmul.f32 %v883, %v882
        %v886 = vadd.f32 %v878, %v884
        %v887 = vadd.f32 %v879, %v885
        %s888 = sld [smem:[#allocation8 + $0x1d]]
        %v889 = vstv %s888
        %v890 = vmul.f32 %v889, %v881
        %v891 = vmul.f32 %v889, %v882
        %894 = vrot.lane.b32.xlu0 %v890, 127
        %v895 = vpop.permute.xlu0 %894
        %896 = vrot.lane.b32.xlu0 %v891, 127
        %v897 = vpop.permute.xlu0 %896
        %v900 = vadd.f32 %v886, %v895
        %v901 = vadd.f32 %v887, %v897
        %s902 = sld [smem:[#allocation8 + $0x1e]]
        %v903 = vstv %s902
        %v904 = vmul.f32 %v903, %v881
        %v905 = vmul.f32 %v903, %v882
        %908 = vrot.lane.b32.xlu0 %v904, 126
        %v909 = vpop.permute.xlu0 %908
        %910 = vrot.lane.b32.xlu0 %v905, 126
        %v911 = vpop.permute.xlu0 %910
        %v914 = vadd.f32 %v900, %v909
        %v915 = vadd.f32 %v901, %v911
        %s916 = sld [smem:[#allocation8 + $0x1f]]
        %v917 = vstv %s916
        %v918 = vmul.f32 %v917, %v881
        %v919 = vmul.f32 %v917, %v882
        %922 = vrot.lane.b32.xlu0 %v918, 125
        %v923 = vpop.permute.xlu0 %922
        %924 = vrot.lane.b32.xlu0 %v919, 125
        %v925 = vpop.permute.xlu0 %924
        %v928 = vadd.f32 %v914, %v923
        %v929 = vadd.f32 %v915, %v925
        %s930 = sld [smem:[#allocation8 + $0x20]]
        %v931 = vstv %s930
        %v932 = vmul.f32 %v931, %v881
        %v933 = vmul.f32 %v931, %v882
        %936 = vrot.lane.b32.xlu0 %v932, 124
        %v937 = vpop.permute.xlu0 %936
        %938 = vrot.lane.b32.xlu0 %v933, 124
        %v939 = vpop.permute.xlu0 %938
        %v942 = vadd.f32 %v928, %v937
        %v943 = vadd.f32 %v929, %v939
        %s944 = sld [smem:[#allocation8 + $0x21]]
        %v945 = vstv %s944
        %v946 = vmul.f32 %v945, %v881
        %v947 = vmul.f32 %v945, %v882
        %950 = vrot.lane.b32.xlu0 %v946, 123
        %v951 = vpop.permute.xlu0 %950
        %952 = vrot.lane.b32.xlu0 %v947, 123
        %v953 = vpop.permute.xlu0 %952
        %v956 = vadd.f32 %v942, %v951
        %v957 = vadd.f32 %v943, %v953
        %s958 = sld [smem:[#allocation8 + $0x22]]
        %v959 = vstv %s958
        %v960 = vmul.f32 %v959, %v881
        %v961 = vmul.f32 %v959, %v882
        %964 = vrot.lane.b32.xlu0 %v960, 122
        %v965 = vpop.permute.xlu0 %964
        %966 = vrot.lane.b32.xlu0 %v961, 122
        %v967 = vpop.permute.xlu0 %966
        %v970 = vadd.f32 %v956, %v965
        %v971 = vadd.f32 %v957, %v967
        %s972 = sld [smem:[#allocation8 + $0x23]]
        %v973 = vld [vmem:[#allocation2 + $0x5] sm:$0xff]
        %v974 = vld [vmem:[#allocation2 + $0xd] sm:$0xff]
        %v975 = vstv %s972
        %v976 = vmul.f32 %v975, %v973
        %v977 = vmul.f32 %v975, %v974
        %v978 = vadd.f32 %v970, %v976
        %v979 = vadd.f32 %v971, %v977
        %s980 = sld [smem:[#allocation8 + $0x24]]
        %v981 = vstv %s980
        %v982 = vmul.f32 %v981, %v973
        %v983 = vmul.f32 %v981, %v974
        %986 = vrot.lane.b32.xlu0 %v982, 127
        %v987 = vpop.permute.xlu0 %986
        %988 = vrot.lane.b32.xlu0 %v983, 127
        %v989 = vpop.permute.xlu0 %988
        %v992 = vadd.f32 %v978, %v987
        %v993 = vadd.f32 %v979, %v989
        %s994 = sld [smem:[#allocation8 + $0x25]]
        %v995 = vstv %s994
        %v996 = vmul.f32 %v995, %v973
        %v997 = vmul.f32 %v995, %v974
        %1000 = vrot.lane.b32.xlu0 %v996, 126
        %v1001 = vpop.permute.xlu0 %1000
        %1002 = vrot.lane.b32.xlu0 %v997, 126
        %v1003 = vpop.permute.xlu0 %1002
        %v1006 = vadd.f32 %v992, %v1001
        %v1007 = vadd.f32 %v993, %v1003
        %s1008 = sld [smem:[#allocation8 + $0x26]]
        %v1009 = vstv %s1008
        %v1010 = vmul.f32 %v1009, %v973
        %v1011 = vmul.f32 %v1009, %v974
        %1014 = vrot.lane.b32.xlu0 %v1010, 125
        %v1015 = vpop.permute.xlu0 %1014
        %1016 = vrot.lane.b32.xlu0 %v1011, 125
        %v1017 = vpop.permute.xlu0 %1016
        %v1020 = vadd.f32 %v1006, %v1015
        %v1021 = vadd.f32 %v1007, %v1017
        %s1022 = sld [smem:[#allocation8 + $0x27]]
        %v1023 = vstv %s1022
        %v1024 = vmul.f32 %v1023, %v973
        %v1025 = vmul.f32 %v1023, %v974
        %1028 = vrot.lane.b32.xlu0 %v1024, 124
        %v1029 = vpop.permute.xlu0 %1028
        %1030 = vrot.lane.b32.xlu0 %v1025, 124
        %v1031 = vpop.permute.xlu0 %1030
        %v1034 = vadd.f32 %v1020, %v1029
        %v1035 = vadd.f32 %v1021, %v1031
        %s1036 = sld [smem:[#allocation8 + $0x28]]
        %v1037 = vstv %s1036
        %v1038 = vmul.f32 %v1037, %v973
        %v1039 = vmul.f32 %v1037, %v974
        %1042 = vrot.lane.b32.xlu0 %v1038, 123
        %v1043 = vpop.permute.xlu0 %1042
        %1044 = vrot.lane.b32.xlu0 %v1039, 123
        %v1045 = vpop.permute.xlu0 %1044
        %v1048 = vadd.f32 %v1034, %v1043
        %v1049 = vadd.f32 %v1035, %v1045
        %s1050 = sld [smem:[#allocation8 + $0x29]]
        %v1051 = vstv %s1050
        %v1052 = vmul.f32 %v1051, %v973
        %v1053 = vmul.f32 %v1051, %v974
        %1056 = vrot.lane.b32.xlu0 %v1052, 122
        %v1057 = vpop.permute.xlu0 %1056
        %1058 = vrot.lane.b32.xlu0 %v1053, 122
        %v1059 = vpop.permute.xlu0 %1058
        %v1062 = vadd.f32 %v1048, %v1057
        %v1063 = vadd.f32 %v1049, %v1059
        %s1064 = sld [smem:[#allocation8 + $0x2a]]
        %v1065 = vld [vmem:[#allocation2 + $0x6] sm:$0xff]
        %v1066 = vld [vmem:[#allocation2 + $0xe] sm:$0xff]
        %v1067 = vstv %s1064
        %v1068 = vmul.f32 %v1067, %v1065
        %v1069 = vmul.f32 %v1067, %v1066
        %v1070 = vadd.f32 %v1062, %v1068
        %v1071 = vadd.f32 %v1063, %v1069
        %s1072 = sld [smem:[#allocation8 + $0x2b]]
        %v1073 = vstv %s1072
        %v1074 = vmul.f32 %v1073, %v1065
        %v1075 = vmul.f32 %v1073, %v1066
        %1078 = vrot.lane.b32.xlu0 %v1074, 127
        %v1079 = vpop.permute.xlu0 %1078
        %1080 = vrot.lane.b32.xlu0 %v1075, 127
        %v1081 = vpop.permute.xlu0 %1080
        %v1084 = vadd.f32 %v1070, %v1079
        %v1085 = vadd.f32 %v1071, %v1081
        %s1086 = sld [smem:[#allocation8 + $0x2c]]
        %v1087 = vstv %s1086
        %v1088 = vmul.f32 %v1087, %v1065
        %v1089 = vmul.f32 %v1087, %v1066
        %1092 = vrot.lane.b32.xlu0 %v1088, 126
        %v1093 = vpop.permute.xlu0 %1092
        %1094 = vrot.lane.b32.xlu0 %v1089, 126
        %v1095 = vpop.permute.xlu0 %1094
        %v1098 = vadd.f32 %v1084, %v1093
        %v1099 = vadd.f32 %v1085, %v1095
        %s1100 = sld [smem:[#allocation8 + $0x2d]]
        %v1101 = vstv %s1100
        %v1102 = vmul.f32 %v1101, %v1065
        %v1103 = vmul.f32 %v1101, %v1066
        %1106 = vrot.lane.b32.xlu0 %v1102, 125
        %v1107 = vpop.permute.xlu0 %1106
        %1108 = vrot.lane.b32.xlu0 %v1103, 125
        %v1109 = vpop.permute.xlu0 %1108
        %v1112 = vadd.f32 %v1098, %v1107
        %v1113 = vadd.f32 %v1099, %v1109
        %s1114 = sld [smem:[#allocation8 + $0x2e]]
        %v1115 = vstv %s1114
        %v1116 = vmul.f32 %v1115, %v1065
        %v1117 = vmul.f32 %v1115, %v1066
        %1120 = vrot.lane.b32.xlu0 %v1116, 124
        %v1121 = vpop.permute.xlu0 %1120
        %1122 = vrot.lane.b32.xlu0 %v1117, 124
        %v1123 = vpop.permute.xlu0 %1122
        %v1126 = vadd.f32 %v1112, %v1121
        %v1127 = vadd.f32 %v1113, %v1123
        %s1128 = sld [smem:[#allocation8 + $0x2f]]
        %v1129 = vstv %s1128
        %v1130 = vmul.f32 %v1129, %v1065
        %v1131 = vmul.f32 %v1129, %v1066
        %1134 = vrot.lane.b32.xlu0 %v1130, 123
        %v1135 = vpop.permute.xlu0 %1134
        %1136 = vrot.lane.b32.xlu0 %v1131, 123
        %v1137 = vpop.permute.xlu0 %1136
        %v1140 = vadd.f32 %v1126, %v1135
        %v1141 = vadd.f32 %v1127, %v1137
        %s1142 = sld [smem:[#allocation8 + $0x30]]
        %v1143 = vstv %s1142
        %v1144 = vmul.f32 %v1143, %v1065
        %v1145 = vmul.f32 %v1143, %v1066
        %1148 = vrot.lane.b32.xlu0 %v1144, 122
        %v1149 = vpop.permute.xlu0 %1148
        %1150 = vrot.lane.b32.xlu0 %v1145, 122
        %v1151 = vpop.permute.xlu0 %1150
        %v1154 = vadd.f32 %v1140, %v1149
        %v1155 = vadd.f32 %v1141, %v1151
        %s1156 = sld [smem:[#allocation8 + $0x31]]
        %v1157 = vld [vmem:[%s388] sm:$0xff]
        %v1158 = vld [vmem:[%s388 + $0x8] sm:$0xff]
        %v1159 = vstv %s1156
        %v1160 = vmul.f32 %v1159, %v1157
        %v1161 = vmul.f32 %v1159, %v1158
        %v1162 = vadd.f32 %v1154, %v1160
        %v1163 = vadd.f32 %v1155, %v1161
        %s1164 = sld [smem:[#allocation8 + $0x32]]
        %v1165 = vstv %s1164
        %v1166 = vmul.f32 %v1165, %v1157
        %v1167 = vmul.f32 %v1165, %v1158
        %1170 = vrot.lane.b32.xlu0 %v1166, 127
        %v1171 = vpop.permute.xlu0 %1170
        %1172 = vrot.lane.b32.xlu0 %v1167, 127
        %v1173 = vpop.permute.xlu0 %1172
        %v1176 = vadd.f32 %v1162, %v1171
        %v1177 = vadd.f32 %v1163, %v1173
        %s1178 = sld [smem:[#allocation8 + $0x33]]
        %v1179 = vstv %s1178
        %v1180 = vmul.f32 %v1179, %v1157
        %v1181 = vmul.f32 %v1179, %v1158
        %1184 = vrot.lane.b32.xlu0 %v1180, 126
        %v1185 = vpop.permute.xlu0 %1184
        %1186 = vrot.lane.b32.xlu0 %v1181, 126
        %v1187 = vpop.permute.xlu0 %1186
        %v1190 = vadd.f32 %v1176, %v1185
        %v1191 = vadd.f32 %v1177, %v1187
        %s1192 = sld [smem:[#allocation8 + $0x34]]
        %v1193 = vstv %s1192
        %v1194 = vmul.f32 %v1193, %v1157
        %v1195 = vmul.f32 %v1193, %v1158
        %1198 = vrot.lane.b32.xlu0 %v1194, 125
        %v1199 = vpop.permute.xlu0 %1198
        %1200 = vrot.lane.b32.xlu0 %v1195, 125
        %v1201 = vpop.permute.xlu0 %1200
        %v1204 = vadd.f32 %v1190, %v1199
        %v1205 = vadd.f32 %v1191, %v1201
        %s1206 = sld [smem:[#allocation8 + $0x35]]
        %v1207 = vstv %s1206
        %v1208 = vmul.f32 %v1207, %v1157
        %v1209 = vmul.f32 %v1207, %v1158
        %1212 = vrot.lane.b32.xlu0 %v1208, 124
        %v1213 = vpop.permute.xlu0 %1212
        %1214 = vrot.lane.b32.xlu0 %v1209, 124
        %v1215 = vpop.permute.xlu0 %1214
        %v1218 = vadd.f32 %v1204, %v1213
        %v1219 = vadd.f32 %v1205, %v1215
        %s1220 = sld [smem:[#allocation8 + $0x36]]
        %v1221 = vstv %s1220
        %v1222 = vmul.f32 %v1221, %v1157
        %v1223 = vmul.f32 %v1221, %v1158
        %1226 = vrot.lane.b32.xlu0 %v1222, 123
        %v1227 = vpop.permute.xlu0 %1226
        %1228 = vrot.lane.b32.xlu0 %v1223, 123
        %v1229 = vpop.permute.xlu0 %1228
        %v1232 = vadd.f32 %v1218, %v1227
        %v1233 = vadd.f32 %v1219, %v1229
        %s1234 = sld [smem:[#allocation8 + $0x37]]
        %v1235 = vstv %s1234
        %v1236 = vmul.f32 %v1235, %v1157
        %v1237 = vmul.f32 %v1235, %v1158
        %1240 = vrot.lane.b32.xlu0 %v1236, 122
        %v1241 = vpop.permute.xlu0 %1240
        %1242 = vrot.lane.b32.xlu0 %v1237, 122
        %v1243 = vpop.permute.xlu0 %1242
        %v1246 = vadd.f32 %v1232, %v1241
        %v1247 = vadd.f32 %v1233, %v1243
        %s1248 = sld [smem:[#allocation8 + $0x38]]
        %v1249 = vld [vmem:[%s388 + $0x1] sm:$0xff]
        %v1250 = vld [vmem:[%s388 + $0x9] sm:$0xff]
        %v1251 = vstv %s1248
        %v1252 = vmul.f32 %v1251, %v1249
        %v1253 = vmul.f32 %v1251, %v1250
        %v1254 = vadd.f32 %v1246, %v1252
        %v1255 = vadd.f32 %v1247, %v1253
        %s1256 = sld [smem:[#allocation8 + $0x39]]
        %v1257 = vstv %s1256
        %v1258 = vmul.f32 %v1257, %v1249
        %v1259 = vmul.f32 %v1257, %v1250
        %1262 = vrot.lane.b32.xlu0 %v1258, 127
        %v1263 = vpop.permute.xlu0 %1262
        %1264 = vrot.lane.b32.xlu0 %v1259, 127
        %v1265 = vpop.permute.xlu0 %1264
        %v1268 = vadd.f32 %v1254, %v1263
        %v1269 = vadd.f32 %v1255, %v1265
        %s1270 = sld [smem:[#allocation8 + $0x3a]]
        %v1271 = vstv %s1270
        %v1272 = vmul.f32 %v1271, %v1249
        %v1273 = vmul.f32 %v1271, %v1250
        %1276 = vrot.lane.b32.xlu0 %v1272, 126
        %v1277 = vpop.permute.xlu0 %1276
        %1278 = vrot.lane.b32.xlu0 %v1273, 126
        %v1279 = vpop.permute.xlu0 %1278
        %v1282 = vadd.f32 %v1268, %v1277
        %v1283 = vadd.f32 %v1269, %v1279
        %s1284 = sld [smem:[#allocation8 + $0x3b]]
        %v1285 = vstv %s1284
        %v1286 = vmul.f32 %v1285, %v1249
        %v1287 = vmul.f32 %v1285, %v1250
        %1290 = vrot.lane.b32.xlu0 %v1286, 125
        %v1291 = vpop.permute.xlu0 %1290
        %1292 = vrot.lane.b32.xlu0 %v1287, 125
        %v1293 = vpop.permute.xlu0 %1292
        %v1296 = vadd.f32 %v1282, %v1291
        %v1297 = vadd.f32 %v1283, %v1293
        %s1298 = sld [smem:[#allocation8 + $0x3c]]
        %v1299 = vstv %s1298
        %v1300 = vmul.f32 %v1299, %v1249
        %v1301 = vmul.f32 %v1299, %v1250
        %1304 = vrot.lane.b32.xlu0 %v1300, 124
        %v1305 = vpop.permute.xlu0 %1304
        %1306 = vrot.lane.b32.xlu0 %v1301, 124
        %v1307 = vpop.permute.xlu0 %1306
        %v1310 = vadd.f32 %v1296, %v1305
        %v1311 = vadd.f32 %v1297, %v1307
        %s1312 = sld [smem:[#allocation8 + $0x3d]]
        %v1313 = vstv %s1312
        %v1314 = vmul.f32 %v1313, %v1249
        %v1315 = vmul.f32 %v1313, %v1250
        %1318 = vrot.lane.b32.xlu0 %v1314, 123
        %v1319 = vpop.permute.xlu0 %1318
        %1320 = vrot.lane.b32.xlu0 %v1315, 123
        %v1321 = vpop.permute.xlu0 %1320
        %v1324 = vadd.f32 %v1310, %v1319
        %v1325 = vadd.f32 %v1311, %v1321
        %s1326 = sld [smem:[#allocation8 + $0x3e]]
        %v1327 = vstv %s1326
        %v1328 = vmul.f32 %v1327, %v1249
        %v1329 = vmul.f32 %v1327, %v1250
        %1332 = vrot.lane.b32.xlu0 %v1328, 122
        %v1333 = vpop.permute.xlu0 %1332
        %1334 = vrot.lane.b32.xlu0 %v1329, 122
        %v1335 = vpop.permute.xlu0 %1334
        %v1338 = vadd.f32 %v1324, %v1333
        %v1339 = vadd.f32 %v1325, %v1335
        %s1340 = sld [smem:[#allocation8 + $0x3f]]
        %v1341 = vld [vmem:[%s388 + $0x2] sm:$0xff]
        %v1342 = vld [vmem:[%s388 + $0xa] sm:$0xff]
        %v1343 = vstv %s1340
        %v1344 = vmul.f32 %v1343, %v1341
        %v1345 = vmul.f32 %v1343, %v1342
        %v1346 = vadd.f32 %v1338, %v1344
        %v1347 = vadd.f32 %v1339, %v1345
        %s1348 = sld [smem:[#allocation8 + $0x40]]
        %v1349 = vstv %s1348
        %v1350 = vmul.f32 %v1349, %v1341
        %v1351 = vmul.f32 %v1349, %v1342
        %1354 = vrot.lane.b32.xlu0 %v1350, 127
        %v1355 = vpop.permute.xlu0 %1354
        %1356 = vrot.lane.b32.xlu0 %v1351, 127
        %v1357 = vpop.permute.xlu0 %1356
        %v1360 = vadd.f32 %v1346, %v1355
        %v1361 = vadd.f32 %v1347, %v1357
        %s1362 = sld [smem:[#allocation8 + $0x41]]
        %v1363 = vstv %s1362
        %v1364 = vmul.f32 %v1363, %v1341
        %v1365 = vmul.f32 %v1363, %v1342
        %1368 = vrot.lane.b32.xlu0 %v1364, 126
        %v1369 = vpop.permute.xlu0 %1368
        %1370 = vrot.lane.b32.xlu0 %v1365, 126
        %v1371 = vpop.permute.xlu0 %1370
        %v1374 = vadd.f32 %v1360, %v1369
        %v1375 = vadd.f32 %v1361, %v1371
        %s1376 = sld [smem:[#allocation8 + $0x42]]
        %v1377 = vstv %s1376
        %v1378 = vmul.f32 %v1377, %v1341
        %v1379 = vmul.f32 %v1377, %v1342
        %1382 = vrot.lane.b32.xlu0 %v1378, 125
        %v1383 = vpop.permute.xlu0 %1382
        %1384 = vrot.lane.b32.xlu0 %v1379, 125
        %v1385 = vpop.permute.xlu0 %1384
        %v1388 = vadd.f32 %v1374, %v1383
        %v1389 = vadd.f32 %v1375, %v1385
        %s1390 = sld [smem:[#allocation8 + $0x43]]
        %v1391 = vstv %s1390
        %v1392 = vmul.f32 %v1391, %v1341
        %v1393 = vmul.f32 %v1391, %v1342
        %1396 = vrot.lane.b32.xlu0 %v1392, 124
        %v1397 = vpop.permute.xlu0 %1396
        %1398 = vrot.lane.b32.xlu0 %v1393, 124
        %v1399 = vpop.permute.xlu0 %1398
        %v1402 = vadd.f32 %v1388, %v1397
        %v1403 = vadd.f32 %v1389, %v1399
        %s1404 = sld [smem:[#allocation8 + $0x44]]
        %v1405 = vstv %s1404
        %v1406 = vmul.f32 %v1405, %v1341
        %v1407 = vmul.f32 %v1405, %v1342
        %1410 = vrot.lane.b32.xlu0 %v1406, 123
        %v1411 = vpop.permute.xlu0 %1410
        %1412 = vrot.lane.b32.xlu0 %v1407, 123
        %v1413 = vpop.permute.xlu0 %1412
        %v1416 = vadd.f32 %v1402, %v1411
        %v1417 = vadd.f32 %v1403, %v1413
        %s1418 = sld [smem:[#allocation8 + $0x45]]
        %v1419 = vstv %s1418
        %v1420 = vmul.f32 %v1419, %v1341
        %v1421 = vmul.f32 %v1419, %v1342
        %1424 = vrot.lane.b32.xlu0 %v1420, 122
        %v1425 = vpop.permute.xlu0 %1424
        %1426 = vrot.lane.b32.xlu0 %v1421, 122
        %v1427 = vpop.permute.xlu0 %1426
        %v1430 = vadd.f32 %v1416, %v1425
        %v1431 = vadd.f32 %v1417, %v1427
        %s1432 = sld [smem:[#allocation8 + $0x46]]
        %v1433 = vld [vmem:[%s388 + $0x3] sm:$0xff]
        %v1434 = vld [vmem:[%s388 + $0xb] sm:$0xff]
        %v1435 = vstv %s1432
        %v1436 = vmul.f32 %v1435, %v1433
        %v1437 = vmul.f32 %v1435, %v1434
        %v1438 = vadd.f32 %v1430, %v1436
        %v1439 = vadd.f32 %v1431, %v1437
        %s1440 = sld [smem:[#allocation8 + $0x47]]
        %v1441 = vstv %s1440
        %v1442 = vmul.f32 %v1441, %v1433
        %v1443 = vmul.f32 %v1441, %v1434
        %1446 = vrot.lane.b32.xlu0 %v1442, 127
        %v1447 = vpop.permute.xlu0 %1446
        %1448 = vrot.lane.b32.xlu0 %v1443, 127
        %v1449 = vpop.permute.xlu0 %1448
        %v1452 = vadd.f32 %v1438, %v1447
        %v1453 = vadd.f32 %v1439, %v1449
        %s1454 = sld [smem:[#allocation8 + $0x48]]
        %v1455 = vstv %s1454
        %v1456 = vmul.f32 %v1455, %v1433
        %v1457 = vmul.f32 %v1455, %v1434
        %1460 = vrot.lane.b32.xlu0 %v1456, 126
        %v1461 = vpop.permute.xlu0 %1460
        %1462 = vrot.lane.b32.xlu0 %v1457, 126
        %v1463 = vpop.permute.xlu0 %1462
        %v1466 = vadd.f32 %v1452, %v1461
        %v1467 = vadd.f32 %v1453, %v1463
        %s1468 = sld [smem:[#allocation8 + $0x49]]
        %v1469 = vstv %s1468
        %v1470 = vmul.f32 %v1469, %v1433
        %v1471 = vmul.f32 %v1469, %v1434
        %1474 = vrot.lane.b32.xlu0 %v1470, 125
        %v1475 = vpop.permute.xlu0 %1474
        %1476 = vrot.lane.b32.xlu0 %v1471, 125
        %v1477 = vpop.permute.xlu0 %1476
        %v1480 = vadd.f32 %v1466, %v1475
        %v1481 = vadd.f32 %v1467, %v1477
        %s1482 = sld [smem:[#allocation8 + $0x4a]]
        %v1483 = vstv %s1482
        %v1484 = vmul.f32 %v1483, %v1433
        %v1485 = vmul.f32 %v1483, %v1434
        %1488 = vrot.lane.b32.xlu0 %v1484, 124
        %v1489 = vpop.permute.xlu0 %1488
        %1490 = vrot.lane.b32.xlu0 %v1485, 124
        %v1491 = vpop.permute.xlu0 %1490
        %v1494 = vadd.f32 %v1480, %v1489
        %v1495 = vadd.f32 %v1481, %v1491
        %s1496 = sld [smem:[#allocation8 + $0x4b]]
        %v1497 = vstv %s1496
        %v1498 = vmul.f32 %v1497, %v1433
        %v1499 = vmul.f32 %v1497, %v1434
        %1502 = vrot.lane.b32.xlu0 %v1498, 123
        %v1503 = vpop.permute.xlu0 %1502
        %1504 = vrot.lane.b32.xlu0 %v1499, 123
        %v1505 = vpop.permute.xlu0 %1504
        %v1508 = vadd.f32 %v1494, %v1503
        %v1509 = vadd.f32 %v1495, %v1505
        %s1510 = sld [smem:[#allocation8 + $0x4c]]
        %v1511 = vstv %s1510
        %v1512 = vmul.f32 %v1511, %v1433
        %v1513 = vmul.f32 %v1511, %v1434
        %1516 = vrot.lane.b32.xlu0 %v1512, 122
        %v1517 = vpop.permute.xlu0 %1516
        %1518 = vrot.lane.b32.xlu0 %v1513, 122
        %v1519 = vpop.permute.xlu0 %1518
        %v1522 = vadd.f32 %v1508, %v1517
        %v1523 = vadd.f32 %v1509, %v1519
        %s1524 = sld [smem:[#allocation8 + $0x4d]]
        %v1525 = vld [vmem:[%s388 + $0x4] sm:$0xff]
        %v1526 = vld [vmem:[%s388 + $0xc] sm:$0xff]
        %v1527 = vstv %s1524
        %v1528 = vmul.f32 %v1527, %v1525
        %v1529 = vmul.f32 %v1527, %v1526
        %v1530 = vadd.f32 %v1522, %v1528
        %v1531 = vadd.f32 %v1523, %v1529
        %s1532 = sld [smem:[#allocation8 + $0x4e]]
        %v1533 = vstv %s1532
        %v1534 = vmul.f32 %v1533, %v1525
        %v1535 = vmul.f32 %v1533, %v1526
        %1538 = vrot.lane.b32.xlu0 %v1534, 127
        %v1539 = vpop.permute.xlu0 %1538
        %1540 = vrot.lane.b32.xlu0 %v1535, 127
        %v1541 = vpop.permute.xlu0 %1540
        %v1544 = vadd.f32 %v1530, %v1539
        %v1545 = vadd.f32 %v1531, %v1541
        %s1546 = sld [smem:[#allocation8 + $0x4f]]
        %v1547 = vstv %s1546
        %v1548 = vmul.f32 %v1547, %v1525
        %v1549 = vmul.f32 %v1547, %v1526
        %1552 = vrot.lane.b32.xlu0 %v1548, 126
        %v1553 = vpop.permute.xlu0 %1552
        %1554 = vrot.lane.b32.xlu0 %v1549, 126
        %v1555 = vpop.permute.xlu0 %1554
        %v1558 = vadd.f32 %v1544, %v1553
        %v1559 = vadd.f32 %v1545, %v1555
        %s1560 = sld [smem:[#allocation8 + $0x50]]
        %v1561 = vstv %s1560
        %v1562 = vmul.f32 %v1561, %v1525
        %v1563 = vmul.f32 %v1561, %v1526
        %1566 = vrot.lane.b32.xlu0 %v1562, 125
        %v1567 = vpop.permute.xlu0 %1566
        %1568 = vrot.lane.b32.xlu0 %v1563, 125
        %v1569 = vpop.permute.xlu0 %1568
        %v1572 = vadd.f32 %v1558, %v1567
        %v1573 = vadd.f32 %v1559, %v1569
        %s1574 = sld [smem:[#allocation8 + $0x51]]
        %v1575 = vstv %s1574
        %v1576 = vmul.f32 %v1575, %v1525
        %v1577 = vmul.f32 %v1575, %v1526
        %1580 = vrot.lane.b32.xlu0 %v1576, 124
        %v1581 = vpop.permute.xlu0 %1580
        %1582 = vrot.lane.b32.xlu0 %v1577, 124
        %v1583 = vpop.permute.xlu0 %1582
        %v1586 = vadd.f32 %v1572, %v1581
        %v1587 = vadd.f32 %v1573, %v1583
        %s1588 = sld [smem:[#allocation8 + $0x52]]
        %v1589 = vstv %s1588
        %v1590 = vmul.f32 %v1589, %v1525
        %v1591 = vmul.f32 %v1589, %v1526
        %1594 = vrot.lane.b32.xlu0 %v1590, 123
        %v1595 = vpop.permute.xlu0 %1594
        %1596 = vrot.lane.b32.xlu0 %v1591, 123
        %v1597 = vpop.permute.xlu0 %1596
        %v1600 = vadd.f32 %v1586, %v1595
        %v1601 = vadd.f32 %v1587, %v1597
        %s1602 = sld [smem:[#allocation8 + $0x53]]
        %v1603 = vstv %s1602
        %v1604 = vmul.f32 %v1603, %v1525
        %v1605 = vmul.f32 %v1603, %v1526
        %1608 = vrot.lane.b32.xlu0 %v1604, 122
        %v1609 = vpop.permute.xlu0 %1608
        %1610 = vrot.lane.b32.xlu0 %v1605, 122
        %v1611 = vpop.permute.xlu0 %1610
        %v1614 = vadd.f32 %v1600, %v1609
        %v1615 = vadd.f32 %v1601, %v1611
        %s1616 = sld [smem:[#allocation8 + $0x54]]
        %v1617 = vld [vmem:[%s388 + $0x5] sm:$0xff]
        %v1618 = vld [vmem:[%s388 + $0xd] sm:$0xff]
        %v1619 = vstv %s1616
        %v1620 = vmul.f32 %v1619, %v1617
        %v1621 = vmul.f32 %v1619, %v1618
        %v1622 = vadd.f32 %v1614, %v1620
        %v1623 = vadd.f32 %v1615, %v1621
        %s1624 = sld [smem:[#allocation8 + $0x55]]
        %v1625 = vstv %s1624
        %v1626 = vmul.f32 %v1625, %v1617
        %v1627 = vmul.f32 %v1625, %v1618
        %1630 = vrot.lane.b32.xlu0 %v1626, 127
        %v1631 = vpop.permute.xlu0 %1630
        %1632 = vrot.lane.b32.xlu0 %v1627, 127
        %v1633 = vpop.permute.xlu0 %1632
        %v1636 = vadd.f32 %v1622, %v1631
        %v1637 = vadd.f32 %v1623, %v1633
        %s1638 = sld [smem:[#allocation8 + $0x56]]
        %v1639 = vstv %s1638
        %v1640 = vmul.f32 %v1639, %v1617
        %v1641 = vmul.f32 %v1639, %v1618
        %1644 = vrot.lane.b32.xlu0 %v1640, 126
        %v1645 = vpop.permute.xlu0 %1644
        %1646 = vrot.lane.b32.xlu0 %v1641, 126
        %v1647 = vpop.permute.xlu0 %1646
        %v1650 = vadd.f32 %v1636, %v1645
        %v1651 = vadd.f32 %v1637, %v1647
        %s1652 = sld [smem:[#allocation8 + $0x57]]
        %v1653 = vstv %s1652
        %v1654 = vmul.f32 %v1653, %v1617
        %v1655 = vmul.f32 %v1653, %v1618
        %1658 = vrot.lane.b32.xlu0 %v1654, 125
        %v1659 = vpop.permute.xlu0 %1658
        %1660 = vrot.lane.b32.xlu0 %v1655, 125
        %v1661 = vpop.permute.xlu0 %1660
        %v1664 = vadd.f32 %v1650, %v1659
        %v1665 = vadd.f32 %v1651, %v1661
        %s1666 = sld [smem:[#allocation8 + $0x58]]
        %v1667 = vstv %s1666
        %v1668 = vmul.f32 %v1667, %v1617
        %v1669 = vmul.f32 %v1667, %v1618
        %1672 = vrot.lane.b32.xlu0 %v1668, 124
        %v1673 = vpop.permute.xlu0 %1672
        %1674 = vrot.lane.b32.xlu0 %v1669, 124
        %v1675 = vpop.permute.xlu0 %1674
        %v1678 = vadd.f32 %v1664, %v1673
        %v1679 = vadd.f32 %v1665, %v1675
        %s1680 = sld [smem:[#allocation8 + $0x59]]
        %v1681 = vstv %s1680
        %v1682 = vmul.f32 %v1681, %v1617
        %v1683 = vmul.f32 %v1681, %v1618
        %1686 = vrot.lane.b32.xlu0 %v1682, 123
        %v1687 = vpop.permute.xlu0 %1686
        %1688 = vrot.lane.b32.xlu0 %v1683, 123
        %v1689 = vpop.permute.xlu0 %1688
        %v1692 = vadd.f32 %v1678, %v1687
        %v1693 = vadd.f32 %v1679, %v1689
        %s1694 = sld [smem:[#allocation8 + $0x5a]]
        %v1695 = vstv %s1694
        %v1696 = vmul.f32 %v1695, %v1617
        %v1697 = vmul.f32 %v1695, %v1618
        %1700 = vrot.lane.b32.xlu0 %v1696, 122
        %v1701 = vpop.permute.xlu0 %1700
        %1702 = vrot.lane.b32.xlu0 %v1697, 122
        %v1703 = vpop.permute.xlu0 %1702
        %v1706 = vadd.f32 %v1692, %v1701
        %v1707 = vadd.f32 %v1693, %v1703
        %s1708 = sld [smem:[#allocation8 + $0x5b]]
        %v1709 = vld [vmem:[%s388 + $0x6] sm:$0xff]
        %v1710 = vld [vmem:[%s388 + $0xe] sm:$0xff]
        %v1711 = vstv %s1708
        %v1712 = vmul.f32 %v1711, %v1709
        %v1713 = vmul.f32 %v1711, %v1710
        %v1714 = vadd.f32 %v1706, %v1712
        %v1715 = vadd.f32 %v1707, %v1713
        %s1716 = sld [smem:[#allocation8 + $0x5c]]
        %v1717 = vstv %s1716
        %v1718 = vmul.f32 %v1717, %v1709
        %v1719 = vmul.f32 %v1717, %v1710
        %1722 = vrot.lane.b32.xlu0 %v1718, 127
        %v1723 = vpop.permute.xlu0 %1722
        %1724 = vrot.lane.b32.xlu0 %v1719, 127
        %v1725 = vpop.permute.xlu0 %1724
        %v1728 = vadd.f32 %v1714, %v1723
        %v1729 = vadd.f32 %v1715, %v1725
        %s1730 = sld [smem:[#allocation8 + $0x5d]]
        %v1731 = vstv %s1730
        %v1732 = vmul.f32 %v1731, %v1709
        %v1733 = vmul.f32 %v1731, %v1710
        %1736 = vrot.lane.b32.xlu0 %v1732, 126
        %v1737 = vpop.permute.xlu0 %1736
        %1738 = vrot.lane.b32.xlu0 %v1733, 126
        %v1739 = vpop.permute.xlu0 %1738
        %v1742 = vadd.f32 %v1728, %v1737
        %v1743 = vadd.f32 %v1729, %v1739
        %s1744 = sld [smem:[#allocation8 + $0x5e]]
        %v1745 = vstv %s1744
        %v1746 = vmul.f32 %v1745, %v1709
        %v1747 = vmul.f32 %v1745, %v1710
        %1750 = vrot.lane.b32.xlu0 %v1746, 125
        %v1751 = vpop.permute.xlu0 %1750
        %1752 = vrot.lane.b32.xlu0 %v1747, 125
        %v1753 = vpop.permute.xlu0 %1752
        %v1756 = vadd.f32 %v1742, %v1751
        %v1757 = vadd.f32 %v1743, %v1753
        %s1758 = sld [smem:[#allocation8 + $0x5f]]
        %v1759 = vstv %s1758
        %v1760 = vmul.f32 %v1759, %v1709
        %v1761 = vmul.f32 %v1759, %v1710
        %1764 = vrot.lane.b32.xlu0 %v1760, 124
        %v1765 = vpop.permute.xlu0 %1764
        %1766 = vrot.lane.b32.xlu0 %v1761, 124
        %v1767 = vpop.permute.xlu0 %1766
        %v1770 = vadd.f32 %v1756, %v1765
        %v1771 = vadd.f32 %v1757, %v1767
        %s1772 = sld [smem:[#allocation8 + $0x60]]
        %v1773 = vstv %s1772
        %v1774 = vmul.f32 %v1773, %v1709
        %v1775 = vmul.f32 %v1773, %v1710
        %1778 = vrot.lane.b32.xlu0 %v1774, 123
        %v1779 = vpop.permute.xlu0 %1778
        %1780 = vrot.lane.b32.xlu0 %v1775, 123
        %v1781 = vpop.permute.xlu0 %1780
        %v1784 = vadd.f32 %v1770, %v1779
        %v1785 = vadd.f32 %v1771, %v1781
        %s1786 = sld [smem:[#allocation8 + $0x61]]
        %v1787 = vstv %s1786
        %v1788 = vmul.f32 %v1787, %v1709
        %v1789 = vmul.f32 %v1787, %v1710
        %1792 = vrot.lane.b32.xlu0 %v1788, 122
        %v1793 = vpop.permute.xlu0 %1792
        %1794 = vrot.lane.b32.xlu0 %v1789, 122
        %v1795 = vpop.permute.xlu0 %1794
        %v1798 = vadd.f32 %v1784, %v1793
        %v1799 = vadd.f32 %v1785, %v1795
        %v1800 = vsub.f32 0.0, %v1798
        %v1801 = vsub.f32 0.0, %v1799
        %v1802 = vmul.f32 %v1800, 1.442695
        %v1803 = vpow.pop %v1802
        %v1804 = vmul.f32 %v1801, 1.442695
        %v1805 = vpow.pop %v1804
        %v1806 = vadd.f32 %v1803, 1.0
        %v1807 = vadd.f32 %v1805, 1.0
        %v1808 = vrcp.pop %v1806
        %v1809 = vmul.f32 1.0, %v1808
        %v1810 = vrcp.pop %v1807
        %v1811 = vmul.f32 1.0, %v1810
        %v1812 = vlaneseq
        %vm1813 = vcmp.ge.s32.totalorder %v1812, 0
        %vm1814 = vcmp.lt.s32.totalorder %v1812, 16
        %vm1815 = vmand %vm1813, %vm1814
        %1816 = vst.msk [vmem:[#allocation3] sm:$0x1] %vm1815, %v1809
        %v1819 = vunpack.c.l.s4 1966171168
        %v1820 = vunpack.c.0.s8 %v1819
        %v1821 = vlaneseq
        %v1822 = vshrl.u32 %v1821, 7
        %v1823 = vsub.s32 %v1820, %v1822
        %v1824 = vrot.slane %v1809, %v1823
        %v1825 = vcombine.high %v1824, %v1824
        %v1827 = vunpack.c.l.s4 1966171168
        %v1828 = vunpack.c.0.s8 %v1827
        %v1829 = vlaneseq
        %v1830 = vshrl.u32 %v1829, 7
        %v1831 = vsub.s32 %v1828, %v1830
        %v1832 = vrot.slane %v1824, %v1831
        %v1834 = vunpack.c.l.s4 1966171168
        %v1835 = vunpack.c.0.s8 %v1834
        %v1836 = vlaneseq
        %v1837 = vshrl.u32 %v1836, 7
        %v1838 = vsub.s32 %v1835, %v1837
        %v1839 = vrot.slane %v1825, %v1838
        %1840 = vrot.lane.b32.xlu0 %v1839, 16
        %v1841 = vpop.permute.xlu0 %1840
        %vm1843 = vcmp.ge.s32.totalorder %v1812, 16
        %vm1844 = vcmp.lt.s32.totalorder %v1812, 32
        %vm1845 = vmand %vm1843, %vm1844
        %1846 = vst.msk [vmem:[#allocation3] sm:$0x1] %vm1845, %v1841
        %v1847 = vcombine.high %v1832, %v1832
        %1848 = vrot.lane.b32.xlu0 %v1847, 32
        %v1849 = vpop.permute.xlu0 %1848
        %vm1851 = vcmp.ge.s32.totalorder %v1812, 32
        %vm1852 = vcmp.lt.s32.totalorder %v1812, 48
        %vm1853 = vmand %vm1851, %vm1852
        %1854 = vst.msk [vmem:[#allocation3] sm:$0x1] %vm1853, %v1849
        %v1855 = vcombine.high %v1839, %v1839
        %1856 = vrot.lane.b32.xlu0 %v1855, 48
        %v1857 = vpop.permute.xlu0 %1856
        %vm1859 = vcmp.ge.s32.totalorder %v1812, 48
        %vm1860 = vcmp.lt.s32.totalorder %v1812, 64
        %vm1861 = vmand %vm1859, %vm1860
        %1862 = vst.msk [vmem:[#allocation3] sm:$0x1] %vm1861, %v1857
        %v1863 = vcombine.high %v1809, %v1809
        %v1865 = vunpack.c.l.s4 1966171168
        %v1866 = vunpack.c.0.s8 %v1865
        %v1867 = vlaneseq
        %v1868 = vshrl.u32 %v1867, 7
        %v1869 = vsub.s32 %v1866, %v1868
        %v1870 = vrot.slane %v1863, %v1869
        %v1872 = vunpack.c.l.s4 1966171168
        %v1873 = vunpack.c.0.s8 %v1872
        %v1874 = vlaneseq
        %v1875 = vshrl.u32 %v1874, 7
        %v1876 = vsub.s32 %v1873, %v1875
        %v1877 = vrot.slane %v1870, %v1876
        %1878 = vrot.lane.b32.xlu0 %v1877, 64
        %v1879 = vpop.permute.xlu0 %1878
        %vm1881 = vcmp.ge.s32.totalorder %v1812, 64
        %vm1882 = vcmp.lt.s32.totalorder %v1812, 80
        %vm1883 = vmand %vm1881, %vm1882
        %1884 = vst.msk [vmem:[#allocation3] sm:$0x1] %vm1883, %v1879
        %v1885 = vcombine.high %v1870, %v1870
        %v1887 = vunpack.c.l.s4 1966171168
        %v1888 = vunpack.c.0.s8 %v1887
        %v1889 = vlaneseq
        %v1890 = vshrl.u32 %v1889, 7
        %v1891 = vsub.s32 %v1888, %v1890
        %v1892 = vrot.slane %v1885, %v1891
        %1893 = vrot.lane.b32.xlu0 %v1892, 80
        %v1894 = vpop.permute.xlu0 %1893
        %vm1896 = vcmp.ge.s32.totalorder %v1812, 80
        %vm1897 = vcmp.lt.s32.totalorder %v1812, 96
        %vm1898 = vmand %vm1896, %vm1897
        %1899 = vst.msk [vmem:[#allocation3] sm:$0x1] %vm1898, %v1894
        %v1900 = vcombine.high %v1877, %v1877
        %1901 = vrot.lane.b32.xlu0 %v1900, 96
        %v1902 = vpop.permute.xlu0 %1901
        %vm1904 = vcmp.ge.s32.totalorder %v1812, 96
        %vm1905 = vcmp.lt.s32.totalorder %v1812, 112
        %vm1906 = vmand %vm1904, %vm1905
        %1907 = vst.msk [vmem:[#allocation3] sm:$0x1] %vm1906, %v1902
        %v1908 = vcombine.high %v1892, %v1892
        %1909 = vrot.lane.b32.xlu0 %v1908, 112
        %v1910 = vpop.permute.xlu0 %1909
        %vm1912 = vcmp.ge.s32.totalorder %v1812, 112
        %vm1913 = vcmp.lt.s32.totalorder %v1812, 128
        %vm1914 = vmand %vm1912, %vm1913
        %1915 = vst.msk [vmem:[#allocation3] sm:$0x1] %vm1914, %v1910
        %1916 = vst.msk [vmem:[#allocation3 + $0x1] sm:$0x1] %vm1815, %v1811
        %v1919 = vunpack.c.l.s4 1966171168
        %v1920 = vunpack.c.0.s8 %v1919
        %v1921 = vlaneseq
        %v1922 = vshrl.u32 %v1921, 7
        %v1923 = vsub.s32 %v1920, %v1922
        %v1924 = vrot.slane %v1811, %v1923
        %v1925 = vcombine.high %v1924, %v1924
        %v1927 = vunpack.c.l.s4 1966171168
        %v1928 = vunpack.c.0.s8 %v1927
        %v1929 = vlaneseq
        %v1930 = vshrl.u32 %v1929, 7
        %v1931 = vsub.s32 %v1928, %v1930
        %v1932 = vrot.slane %v1924, %v1931
        %v1934 = vunpack.c.l.s4 1966171168
        %v1935 = vunpack.c.0.s8 %v1934
        %v1936 = vlaneseq
        %v1937 = vshrl.u32 %v1936, 7
        %v1938 = vsub.s32 %v1935, %v1937
        %v1939 = vrot.slane %v1925, %v1938
        %1940 = vrot.lane.b32.xlu0 %v1939, 16
        %v1941 = vpop.permute.xlu0 %1940
        %1943 = vst.msk [vmem:[#allocation3 + $0x1] sm:$0x1] %vm1845, %v1941
        %v1944 = vcombine.high %v1932, %v1932
        %1945 = vrot.lane.b32.xlu0 %v1944, 32
        %v1946 = vpop.permute.xlu0 %1945
        %1948 = vst.msk [vmem:[#allocation3 + $0x1] sm:$0x1] %vm1853, %v1946
        %v1949 = vcombine.high %v1939, %v1939
        %1950 = vrot.lane.b32.xlu0 %v1949, 48
        %v1951 = vpop.permute.xlu0 %1950
        %1953 = vst.msk [vmem:[#allocation3 + $0x1] sm:$0x1] %vm1861, %v1951
        %v1954 = vcombine.high %v1811, %v1811
        %v1956 = vunpack.c.l.s4 1966171168
        %v1957 = vunpack.c.0.s8 %v1956
        %v1958 = vlaneseq
        %v1959 = vshrl.u32 %v1958, 7
        %v1960 = vsub.s32 %v1957, %v1959
        %v1961 = vrot.slane %v1954, %v1960
        %v1963 = vunpack.c.l.s4 1966171168
        %v1964 = vunpack.c.0.s8 %v1963
        %v1965 = vlaneseq
        %v1966 = vshrl.u32 %v1965, 7
        %v1967 = vsub.s32 %v1964, %v1966
        %v1968 = vrot.slane %v1961, %v1967
        %1969 = vrot.lane.b32.xlu0 %v1968, 64
        %v1970 = vpop.permute.xlu0 %1969
        %1972 = vst.msk [vmem:[#allocation3 + $0x1] sm:$0x1] %vm1883, %v1970
        %v1973 = vcombine.high %v1961, %v1961
        %v1975 = vunpack.c.l.s4 1966171168
        %v1976 = vunpack.c.0.s8 %v1975
        %v1977 = vlaneseq
        %v1978 = vshrl.u32 %v1977, 7
        %v1979 = vsub.s32 %v1976, %v1978
        %v1980 = vrot.slane %v1973, %v1979
        %1981 = vrot.lane.b32.xlu0 %v1980, 80
        %v1982 = vpop.permute.xlu0 %1981
        %1984 = vst.msk [vmem:[#allocation3 + $0x1] sm:$0x1] %vm1898, %v1982
        %v1985 = vcombine.high %v1968, %v1968
        %1986 = vrot.lane.b32.xlu0 %v1985, 96
        %v1987 = vpop.permute.xlu0 %1986
        %1989 = vst.msk [vmem:[#allocation3 + $0x1] sm:$0x1] %vm1906, %v1987
        %v1990 = vcombine.high %v1980, %v1980
        %1991 = vrot.lane.b32.xlu0 %v1990, 112
        %v1992 = vpop.permute.xlu0 %1991
        %1994 = vst.msk [vmem:[#allocation3 + $0x1] sm:$0x1] %vm1914, %v1992
        %v1995 = vld [vmem:[#allocation3] sm:$0x3]
        %v1997 = vlaneseq
        %v1998 = vshrl.u32 %v1997, 7
        %v1999 = vsub.s32 0, %v1998
        %v2000 = vrot.slane %v1995, %v1999
        %v2001 = vlaneseq
        %v2002 = vshrl.u32 %v2001, 7
        %v2003 = vsub.s32 1, %v2002
        %v2004 = vrot.slane %v1995, %v2003
        %v2005 = vcombine.low %v2000, %v2004
        %v2007 = vmul.f32 %v336, %v2005
        %2008 = vst [vmem:[%s227] sm:$0xff] %v2007
        %s2009 = sand.u32 %s119, 1
        %s2010 = scalar_lea.sflag [#allocation6], %s2009
        %s2011 = sand.u32 %s119, 1
        %s2012 = smul.addr %s2011, 8
        %s2013 = scalar_lea.vmem [#allocation9], %s2012
        // Predicated region
        $region45: #{tpu_custom_call.1} parent=35 // pred_check
          %p2014 = pneg %p129
        $region46: #{tpu_custom_call.1} parent=35 // pred_check_branch
          %2016 = sbr.rel (%p2014) target = $region48
        $region47: #{tpu_custom_call.1} parent=35 // pred_region
          %s2018 = ssub.s32 128, 128
          %2019 = vsyncadd %s2010, %s2018
          %s2020 = smul.addr %s22, 2
          %s2021 = smul.addr %s2020, 64
          %s2022 = scalar_lea.hbm %s4, %s2021
          %s2024 = sshll.u32 %s2013, 4
          %s2025 = int_to_ptr.vmem [resolvable:$true] %s2024
          %2027 = dma.vmem_to_hbm [thread:$0]  %s2025, 128, %s2022, %s2010
        $region48: #{tpu_custom_call.1} parent=35 // pred_fallthru
          _
      $region36: #{tpu_custom_call.1} parent=5 // pred_fallthru
        _
      %p2028 = scmp.le.s32.totalorder 2, %s17
      // Predicated region
      $region49: #{tpu_custom_call.1} parent=5 // pred_check
        %p2029 = pneg %p2028
      $region50: #{tpu_custom_call.1} parent=5 // pred_check_branch
        %2031 = sbr.rel (%p2029) target = $region52
      $region51: #{tpu_custom_call.1} parent=5 // pred_region
        %s2032 = ssub.s32 %s17, 2
        // Predicated region
        $region53: #{tpu_custom_call.1} parent=51 // pred_check
          %p2033 = pneg %p135
        $region54: #{tpu_custom_call.1} parent=51 // pred_check_branch
          %2035 = sbr.rel (%p2033) target = $region56
        $region55: #{tpu_custom_call.1} parent=51 // pred_region
          %s2036 = sand.u32 %s120, 1
          %s2037 = scalar_lea.sflag [#allocation6], %s2036
          %s2038 = sand.u32 %s120, 1
          %s2039 = smul.addr %s2038, 8
          %s2040 = scalar_lea.vmem [#allocation9], %s2039
          %2041 = dma.done %s2037, 128
        $region56: #{tpu_custom_call.1} parent=51 // pred_fallthru
          _
      $region52: #{tpu_custom_call.1} parent=5 // pred_fallthru
        _
    $region6: #{tpu_custom_call.1} parent=1 // loop_footer
      %s21 = sadd.s32 1, %s17
    $region7: #{tpu_custom_call.1} parent=1 // loop_footer_branch
      %16 = sbr.rel target = $region3
    $region8: #{tpu_custom_call.1} parent=1 // loop_exit
      _
    %2042 = vsyncpa [#allocation5], 1
    %s2043 = scalar_lea.sflag [#allocation5], 1
    %2044 = vsyncpa %s2043, 1
    %2045 = vsyncpa [#allocation6], 1
    %s2046 = scalar_lea.sflag [#allocation6], 1
    %2047 = vsyncpa %s2046, 1
    %2048 = vsyncpa [#allocation7], 1
    %s2049 = scalar_lea.sflag [#allocation7], 1
    %2050 = vsyncpa %s2049, 1

</llo_original>
